<compile_context>
chip_gen: v7x
topology: tpu7x:2x2x1
jax: 0.10.0
libtpu: 0.0.40
codegen_flags: <defaults>
</compile_context>

<pallas_src>
import math
from functools import partial

import jax
import jax.numpy as jnp
from jax.experimental import pallas as pl
from jax.experimental.pallas import tpu as pltpu

_VMEM = pl.BlockSpec(memory_space=pltpu.MemorySpace.VMEM)
_BN_EPS = 1e-5
_LN_EPS = 1e-5
_NEG_INF = -1e30


def _mm(a, b):
    """a @ b, bf16 operands, fp32 accumulation (MXU)."""
    return jax.lax.dot_general(
        a.astype(jnp.bfloat16), b.astype(jnp.bfloat16),
        (((1,), (0,)), ((), ())), preferred_element_type=jnp.float32)


def _mm_nt(a, b):
    """a @ b.T, bf16 operands, fp32 accumulation (MXU)."""
    return jax.lax.dot_general(
        a.astype(jnp.bfloat16), b.astype(jnp.bfloat16),
        (((1,), (1,)), ((), ())), preferred_element_type=jnp.float32)


def _heads_to_rows(t, n_heads, width):
    """(Gp, H*width) -> (H*Gp, width); block h = t[:, h*width:(h+1)*width]."""
    return jnp.concatenate(
        [t[:, h * width:(h + 1) * width] for h in range(n_heads)], axis=0)


def _heads_to_lanes(p, n_heads, rows):
    """(H*rows, C) -> (rows, H*C); block h = p[h*rows:(h+1)*rows, :]."""
    return jnp.concatenate(
        [p[h * rows:(h + 1) * rows, :] for h in range(n_heads)], axis=1)


# ----------------------------------------------------------------------------
# Fused kernel: init_embed + PE + all encoder layers + decoder head
# ----------------------------------------------------------------------------
def fused_model_kernel(x_ref, bpe_ref, rowmask_ref, keybias_ref, iw_ref,
                       attw_ref,
                       bn1w_ref, bn1b_ref,
                       ff1w_ref, ff1b_ref, ff2w_ref, ff2b_ref,
                       bn2w_ref, bn2b_ref,
                       d1w_ref, d1b_ref, nw_ref, nb_ref, d2w_ref, d2b_ref,
                       out_ref, emb_ref, attn_ref,
                       *, n_heads, graph_size, g_pad):
    H, G, Gp = n_heads, graph_size, g_pad
    BGp = x_ref.shape[0]
    B = BGp // Gp
    L, E, two_he = attw_ref.shape
    HE = two_he // 2
    inv_n = 1.0 / float(B * G)

    row_mask = rowmask_ref[...]            # (B*Gp, 1) fp32: 1 real row / 0 pad
    key_bias = keybias_ref[...]            # (1, Gp)   fp32: 0 real key / -1e30

    def batch_norm(v, w, b):
        # training-mode batch stats over the B*G real rows only (pad masked)
        mean = jnp.sum(v * row_mask, axis=0, keepdims=True) * inv_n
        d = (v - mean) * row_mask
        var = jnp.sum(d * d, axis=0, keepdims=True) * inv_n
        return (v - mean) * jax.lax.rsqrt(var + _BN_EPS) * w + b

    # ---- init embedding + positional encoding (fp32, K = input_dim) --------
    h = jnp.dot(x_ref[...], iw_ref[...],
                preferred_element_type=jnp.float32) + bpe_ref[...]   # (B*Gp,E)

    # ---- encoder layers -----------------------------------------------------
    for l in range(L):
        w_l = attw_ref[l]                                    # (E, 2*H*E) bf16
        # all heads' (h M_h) and (h N_h), batched over B: one 512-wide matmul
        tu = _mm(h, w_l)                                     # (B*Gp, 2*H*E)

        att_rows = []
        for b in range(B):
            hb = h[b * Gp:(b + 1) * Gp]                      # (Gp, E) fp32
            tu_b = tu[b * Gp:(b + 1) * Gp]                   # (Gp, 2*H*E)
            t_stk = _heads_to_rows(tu_b[:, :HE], H, E)       # (H*Gp, E)
            v_stk = _heads_to_rows(tu_b[:, HE:], H, E)       # (H*Gp, E)

            # all heads' scores in one matmul; one softmax over (H*Gp, Gp)
            s = _mm_nt(t_stk, hb) + key_bias                 # (H*Gp, Gp)
            s = s - jnp.max(s, axis=-1, keepdims=True)
            p = jnp.exp(s)
            p = p * pl.reciprocal(jnp.sum(p, axis=-1, keepdims=True),
                                  approx=True)
            if l == L - 1:                                   # last-layer attn
                attn_ref[b] = p                              # one store/batch

            # sum_h P_h (h N_h): single K = H*Gp matmul, residual folded in
            p_pv = _heads_to_lanes(p, H, Gp)                 # (Gp, H*Gp)
            att_rows.append(hb + _mm(p_pv, v_stk))           # (Gp, E)
        x_att = jnp.concatenate(att_rows, axis=0)            # (B*Gp, E)

        xn = batch_norm(x_att, bn1w_ref[l], bn1b_ref[l])

        # feed-forward + residual, batched over B (and the pad rows)
        hid = jnp.maximum(_mm(xn, ff1w_ref[l]) + ff1b_ref[l], 0.0)
        y = xn + _mm(hid, ff2w_ref[l]) + ff2b_ref[l]

        h = batch_norm(y, bn2w_ref[l], bn2b_ref[l])

    # ---- flatten to (B, G*E) lane-densely; fused decoder head ---------------
    emb = jnp.concatenate(
        [jnp.concatenate(
            [h[b * Gp + g:b * Gp + g + 1, :] for g in range(G)], axis=1)
         for b in range(B)], axis=0)                          # (B, G*E)
    emb_ref[...] = emb.astype(emb_ref.dtype)

    h1 = _mm(emb, d1w_ref[...]) + d1b_ref[...]                # (B, E)
    mu = jnp.mean(h1, axis=-1, keepdims=True)
    var = jnp.mean((h1 - mu) ** 2, axis=-1, keepdims=True)
    hn = (h1 - mu) * jax.lax.rsqrt(var + _LN_EPS) * nw_ref[...] + nb_ref[...]
    out_ref[...] = (_mm(hn, d2w_ref[...]) + d2b_ref[...]).astype(out_ref.dtype)


# ----------------------------------------------------------------------------
# Parameter construction (deterministic, synthetic)
# ----------------------------------------------------------------------------
def make_params(key, input_dim, embedding_dim, hidden_dim, output_dim,
                n_layers, n_heads, graph_size):
    E, H, F = embedding_dim, n_heads, hidden_dim
    dh = E // H
    keys = iter(jax.random.split(key, 8 + 12 * n_layers))

    def w(shape, fan_in):
        return (jax.random.normal(next(keys), shape, jnp.float32)
                / math.sqrt(fan_in))

    params = {
        "init_embed_w": w((input_dim, E), input_dim),         # stored (D, E)
        "init_embed_b": w((1, E), input_dim),
        "dec1_w": w((graph_size * E, E), graph_size * E),     # row = g*E + e
        "dec1_b": w((1, E), graph_size * E),
        "norm_w": jnp.ones((1, E), jnp.float32),
        "norm_b": jnp.zeros((1, E), jnp.float32),
        "dec2_w": w((E, output_dim), E),
        "dec2_b": w((1, output_dim), E),
        "layers": [],
    }
    for _ in range(n_layers):
        params["layers"].append({
            # per-head projections (merged algebraically in the wrapper)
            "wq": w((H, E, dh), E),
            "wk": w((H, E, dh), E),
            "wv": w((H, E, dh), E),
            "wo": w((H, dh, E), E),
            "bn1_w": jnp.ones((1, E), jnp.float32),
            "bn1_b": jnp.zeros((1, E), jnp.float32),
            "ff1_w": w((E, F), E),
            "ff1_b": w((1, F), E),
            "ff2_w": w((F, E), F),
            "ff2_b": w((1, E), F),
            "bn2_w": jnp.ones((1, E), jnp.float32),
            "bn2_b": jnp.zeros((1, E), jnp.float32),
        })
    return params


def sinusoidal_pe(graph_size, embedding_dim):
    pos = jnp.arange(graph_size, dtype=jnp.float32)[:, None]
    div = jnp.exp(jnp.arange(0, embedding_dim, 2, dtype=jnp.float32)
                  * (-math.log(10000.0) / embedding_dim))
    pe = jnp.zeros((graph_size, embedding_dim), jnp.float32)
    pe = pe.at[:, 0::2].set(jnp.sin(pos * div))
    pe = pe.at[:, 1::2].set(jnp.cos(pos * div))
    return pe


# ----------------------------------------------------------------------------
# Forward pass (== AttentionModel.functional_forward)
# ----------------------------------------------------------------------------
@partial(jax.jit, static_argnames=("n_heads", "n_layers"))
def attention_model_forward(x, params, *, n_heads, n_layers):
    B, G, D = x.shape
    E = params["init_embed_w"].shape[1]
    O = params["dec2_w"].shape[1]
    H = n_heads
    dh = E // H
    scale = 1.0 / math.sqrt(dh)
    Gp = ((G + 7) // 8) * 8                 # pad graph axis to sublane multiple
    layers = params["layers"]

    # Exact algebraic head merge + head concatenation (wrapper side, free):
    #   M_h = Wq_h Wk_h^T / sqrt(dh)  (scores),  N_h = Wv_h Wo_h  (PV.Wo)
    #   attw[l] = [M_1 .. M_H | N_1 .. N_H]   -> (E, 2*H*E)
    attw = jnp.stack(
        [jnp.concatenate(
            [(jnp.einsum("hid,hjd->ihj", p_["wq"], p_["wk"]) * scale
              ).reshape(E, H * E),
             jnp.einsum("hid,hde->ihe", p_["wv"], p_["wo"]).reshape(E, H * E)],
            axis=1)
         for p_ in layers], axis=0).astype(jnp.bfloat16)          # (L,E,2HE)
    bn1w = jnp.stack([p_["bn1_w"] for p_ in layers], axis=0)       # (L,1,E)
    bn1b = jnp.stack([p_["bn1_b"] for p_ in layers], axis=0)
    ff1w = jnp.stack([p_["ff1_w"] for p_ in layers], axis=0).astype(jnp.bfloat16)
    ff1b = jnp.stack([p_["ff1_b"] for p_ in layers], axis=0)
    ff2w = jnp.stack([p_["ff2_w"] for p_ in layers], axis=0).astype(jnp.bfloat16)
    ff2b = jnp.stack([p_["ff2_b"] for p_ in layers], axis=0)
    bn2w = jnp.stack([p_["bn2_w"] for p_ in layers], axis=0)
    bn2b = jnp.stack([p_["bn2_b"] for p_ in layers], axis=0)

    # padded inputs, PE, and masks (XLA side, trivial)
    x_pad = jnp.pad(x, ((0, 0), (0, Gp - G), (0, 0))).reshape(B * Gp, D)
    bias_pe = jnp.pad(params["init_embed_b"] + sinusoidal_pe(G, E),
                      ((0, Gp - G), (0, 0)))
    bias_pe = jnp.tile(bias_pe, (B, 1))                            # (B*Gp, E)
    gid = jnp.arange(Gp)
    row_mask = jnp.tile((gid < G).astype(jnp.float32), (B,))[:, None]
    key_bias = jnp.where(gid < G, 0.0, _NEG_INF).astype(jnp.float32)[None, :]

    kernel = partial(fused_model_kernel, n_heads=H, graph_size=G, g_pad=Gp)
    outputs, emb, attn_pad = pl.pallas_call(
        kernel,
        out_shape=(jax.ShapeDtypeStruct((B, O), jnp.float32),
                   jax.ShapeDtypeStruct((B, G * E), jnp.float32),
                   jax.ShapeDtypeStruct((B, H * Gp, Gp), jnp.float32)),
        in_specs=[_VMEM] * 20,
        out_specs=(_VMEM, _VMEM, _VMEM),
    )(x_pad, bias_pe, row_mask, key_bias,
      params["init_embed_w"],
      attw, bn1w, bn1b, ff1w, ff1b, ff2w, ff2b, bn2w, bn2b,
      params["dec1_w"].astype(jnp.bfloat16), params["dec1_b"],
      params["norm_w"], params["norm_b"],
      params["dec2_w"].astype(jnp.bfloat16), params["dec2_b"])

    attn = attn_pad.reshape(B, H, Gp, Gp)[:, :, :G, :G]
    return outputs, emb, attn


if __name__ == "__main__":
    # graph_size must be 20 because decoder1 = Linear(embedding_dim * 20, ...)
    B, G, D = 2, 20, 4
    E, F, O = 32, 64, 8
    n_heads, n_layers = 8, 2

    key = jax.random.PRNGKey(0)
    k_inp, k_par = jax.random.split(key)
    x = jax.random.normal(k_inp, (B, G, D), jnp.float32)
    params = make_params(k_par, D, E, F, O, n_layers, n_heads, G)

    outputs, embeddings, attn = attention_model_forward(
        x, params, n_heads=n_heads, n_layers=n_layers)
    jax.block_until_ready((outputs, embeddings, attn))

    assert outputs.shape == (B, O)
    assert embeddings.shape == (B, G * E)
    assert attn.shape == (B, n_heads, G, G)
    assert bool(jnp.all(jnp.isfinite(outputs)))
    assert bool(jnp.all(jnp.isfinite(embeddings)))
    assert bool(jnp.all(jnp.isfinite(attn)))
    print("KERNEL_OK")
</pallas_src>

<mosaic_0001>
module attributes {stable_mosaic.version = 11 : i64} {
  func.func @fused_model_kernel(%arg0: memref<48x4xf32, #tpu.memory_space<vmem>>, %arg1: memref<48x32xf32, #tpu.memory_space<vmem>>, %arg2: memref<48x1xf32, #tpu.memory_space<vmem>>, %arg3: memref<1x24xf32, #tpu.memory_space<vmem>>, %arg4: memref<4x32xf32, #tpu.memory_space<vmem>>, %arg5: memref<2x32x512xbf16, #tpu.memory_space<vmem>>, %arg6: memref<2x1x32xf32, #tpu.memory_space<vmem>>, %arg7: memref<2x1x32xf32, #tpu.memory_space<vmem>>, %arg8: memref<2x32x64xbf16, #tpu.memory_space<vmem>>, %arg9: memref<2x1x64xf32, #tpu.memory_space<vmem>>, %arg10: memref<2x64x32xbf16, #tpu.memory_space<vmem>>, %arg11: memref<2x1x32xf32, #tpu.memory_space<vmem>>, %arg12: memref<2x1x32xf32, #tpu.memory_space<vmem>>, %arg13: memref<2x1x32xf32, #tpu.memory_space<vmem>>, %arg14: memref<640x32xbf16, #tpu.memory_space<vmem>>, %arg15: memref<1x32xf32, #tpu.memory_space<vmem>>, %arg16: memref<1x32xf32, #tpu.memory_space<vmem>>, %arg17: memref<1x32xf32, #tpu.memory_space<vmem>>, %arg18: memref<32x8xbf16, #tpu.memory_space<vmem>>, %arg19: memref<1x8xf32, #tpu.memory_space<vmem>>, %arg20: memref<2x8xf32, #tpu.memory_space<vmem>>, %arg21: memref<2x640xf32, #tpu.memory_space<vmem>>, %arg22: memref<2x192x24xf32, #tpu.memory_space<vmem>>) attributes {dimension_semantics = [], scalar_prefetch = 0 : i64, scratch_operands = 0 : i64, tpu.core_type = #tpu.core_type<tc>} {
    %c0 = arith.constant 0 : index
    %c0_0 = arith.constant 0 : index
    %0 = vector.load %arg2[%c0, %c0_0] : memref<48x1xf32, #tpu.memory_space<vmem>>, vector<48x1xf32>
    %c0_1 = arith.constant 0 : index
    %c0_2 = arith.constant 0 : index
    %1 = vector.load %arg3[%c0_1, %c0_2] : memref<1x24xf32, #tpu.memory_space<vmem>>, vector<1x24xf32>
    %c0_3 = arith.constant 0 : index
    %c0_4 = arith.constant 0 : index
    %2 = vector.load %arg0[%c0_3, %c0_4] : memref<48x4xf32, #tpu.memory_space<vmem>>, vector<48x4xf32>
    %c0_5 = arith.constant 0 : index
    %c0_6 = arith.constant 0 : index
    %3 = vector.load %arg4[%c0_5, %c0_6] : memref<4x32xf32, #tpu.memory_space<vmem>>, vector<4x32xf32>
    %cst = arith.constant dense<0.000000e+00> : vector<48x32xf32>
    %4 = tpu.matmul %2, %3, %cst {dimension_numbers = #tpu.dot_dimension_numbers<[1], [0], [0], [1], [0, 0, 1, 1], [], []>} : vector<48x4xf32>, vector<4x32xf32>, vector<48x32xf32> -> vector<48x32xf32>
    %c0_7 = arith.constant 0 : index
    %c0_8 = arith.constant 0 : index
    %5 = vector.load %arg1[%c0_7, %c0_8] : memref<48x32xf32, #tpu.memory_space<vmem>>, vector<48x32xf32>
    %6 = arith.addf %4, %5 : vector<48x32xf32>
    %c0_9 = arith.constant 0 : index
    %c0_10 = arith.constant 0 : index
    %c0_11 = arith.constant 0 : index
    %7 = vector.load %arg5[%c0_9, %c0_10, %c0_11] : memref<2x32x512xbf16, #tpu.memory_space<vmem>>, vector<1x32x512xbf16>
    %8 = vector.shape_cast %7 : vector<1x32x512xbf16> to vector<32x512xbf16>
    %9 = arith.truncf %6 : vector<48x32xf32> to vector<48x32xbf16>
    %cst_12 = arith.constant dense<0.000000e+00> : vector<48x512xf32>
    %10 = tpu.matmul %9, %8, %cst_12 {dimension_numbers = #tpu.dot_dimension_numbers<[1], [0], [0], [1], [0, 0, 1, 1], [], []>} : vector<48x32xbf16>, vector<32x512xbf16>, vector<48x512xf32> -> vector<48x512xf32>
    %11 = vector.extract_strided_slice %6 {offsets = [0, 0], sizes = [24, 32], strides = [1, 1]} : vector<48x32xf32> to vector<24x32xf32>
    %12 = vector.extract_strided_slice %10 {offsets = [0, 0], sizes = [24, 512], strides = [1, 1]} : vector<48x512xf32> to vector<24x512xf32>
    %13 = vector.extract_strided_slice %12 {offsets = [0, 0], sizes = [24, 256], strides = [1, 1]} : vector<24x512xf32> to vector<24x256xf32>
    %14 = vector.extract_strided_slice %13 {offsets = [0, 0], sizes = [24, 32], strides = [1, 1]} : vector<24x256xf32> to vector<24x32xf32>
    %15 = vector.extract_strided_slice %13 {offsets = [0, 32], sizes = [24, 32], strides = [1, 1]} : vector<24x256xf32> to vector<24x32xf32>
    %16 = vector.extract_strided_slice %13 {offsets = [0, 64], sizes = [24, 32], strides = [1, 1]} : vector<24x256xf32> to vector<24x32xf32>
    %17 = vector.extract_strided_slice %13 {offsets = [0, 96], sizes = [24, 32], strides = [1, 1]} : vector<24x256xf32> to vector<24x32xf32>
    %18 = vector.extract_strided_slice %13 {offsets = [0, 128], sizes = [24, 32], strides = [1, 1]} : vector<24x256xf32> to vector<24x32xf32>
    %19 = vector.extract_strided_slice %13 {offsets = [0, 160], sizes = [24, 32], strides = [1, 1]} : vector<24x256xf32> to vector<24x32xf32>
    %20 = vector.extract_strided_slice %13 {offsets = [0, 192], sizes = [24, 32], strides = [1, 1]} : vector<24x256xf32> to vector<24x32xf32>
    %21 = vector.extract_strided_slice %13 {offsets = [0, 224], sizes = [24, 32], strides = [1, 1]} : vector<24x256xf32> to vector<24x32xf32>
    %22 = tpu.concatenate %14, %15, %16, %17, %18, %19, %20, %21 in 0 : vector<24x32xf32>, vector<24x32xf32>, vector<24x32xf32>, vector<24x32xf32>, vector<24x32xf32>, vector<24x32xf32>, vector<24x32xf32>, vector<24x32xf32> -> vector<192x32xf32>
    %23 = vector.extract_strided_slice %12 {offsets = [0, 256], sizes = [24, 256], strides = [1, 1]} : vector<24x512xf32> to vector<24x256xf32>
    %24 = vector.extract_strided_slice %23 {offsets = [0, 0], sizes = [24, 32], strides = [1, 1]} : vector<24x256xf32> to vector<24x32xf32>
    %25 = vector.extract_strided_slice %23 {offsets = [0, 32], sizes = [24, 32], strides = [1, 1]} : vector<24x256xf32> to vector<24x32xf32>
    %26 = vector.extract_strided_slice %23 {offsets = [0, 64], sizes = [24, 32], strides = [1, 1]} : vector<24x256xf32> to vector<24x32xf32>
    %27 = vector.extract_strided_slice %23 {offsets = [0, 96], sizes = [24, 32], strides = [1, 1]} : vector<24x256xf32> to vector<24x32xf32>
    %28 = vector.extract_strided_slice %23 {offsets = [0, 128], sizes = [24, 32], strides = [1, 1]} : vector<24x256xf32> to vector<24x32xf32>
    %29 = vector.extract_strided_slice %23 {offsets = [0, 160], sizes = [24, 32], strides = [1, 1]} : vector<24x256xf32> to vector<24x32xf32>
    %30 = vector.extract_strided_slice %23 {offsets = [0, 192], sizes = [24, 32], strides = [1, 1]} : vector<24x256xf32> to vector<24x32xf32>
    %31 = vector.extract_strided_slice %23 {offsets = [0, 224], sizes = [24, 32], strides = [1, 1]} : vector<24x256xf32> to vector<24x32xf32>
    %32 = tpu.concatenate %24, %25, %26, %27, %28, %29, %30, %31 in 0 : vector<24x32xf32>, vector<24x32xf32>, vector<24x32xf32>, vector<24x32xf32>, vector<24x32xf32>, vector<24x32xf32>, vector<24x32xf32>, vector<24x32xf32> -> vector<192x32xf32>
    %33 = arith.truncf %22 : vector<192x32xf32> to vector<192x32xbf16>
    %34 = arith.truncf %11 : vector<24x32xf32> to vector<24x32xbf16>
    %cst_13 = arith.constant dense<0.000000e+00> : vector<192x24xf32>
    %35 = tpu.matmul %33, %34, %cst_13 {dimension_numbers = #tpu.dot_dimension_numbers<[1], [1], [0], [0], [0, 0, 1, 0], [], []>} : vector<192x32xbf16>, vector<24x32xbf16>, vector<192x24xf32> -> vector<192x24xf32>
    %36 = vector.broadcast %1 : vector<1x24xf32> to vector<192x24xf32>
    %37 = arith.addf %35, %36 : vector<192x24xf32>
    %cst_14 = arith.constant dense<0xFF800000> : vector<192xf32>
    %38 = vector.multi_reduction <maximumf>, %37, %cst_14 [1] : vector<192x24xf32> to vector<192xf32>
    %39 = vector.shape_cast %38 : vector<192xf32> to vector<192x1xf32>
    %40 = vector.broadcast %39 : vector<192x1xf32> to vector<192x24xf32>
    %41 = arith.subf %37, %40 : vector<192x24xf32>
    %42 = math.exp %41 : vector<192x24xf32>
    %cst_15 = arith.constant dense<0.000000e+00> : vector<192xf32>
    %43 = vector.multi_reduction <add>, %42, %cst_15 [1] : vector<192x24xf32> to vector<192xf32>
    %44 = vector.shape_cast %43 : vector<192xf32> to vector<192x1xf32>
    %45 = tpu.reciprocal %44 {approx = true} : vector<192x1xf32> -> vector<192x1xf32>
    %46 = vector.broadcast %45 : vector<192x1xf32> to vector<192x24xf32>
    %47 = arith.mulf %42, %46 : vector<192x24xf32>
    %48 = vector.extract_strided_slice %47 {offsets = [0, 0], sizes = [24, 24], strides = [1, 1]} : vector<192x24xf32> to vector<24x24xf32>
    %49 = vector.extract_strided_slice %47 {offsets = [24, 0], sizes = [24, 24], strides = [1, 1]} : vector<192x24xf32> to vector<24x24xf32>
    %50 = vector.extract_strided_slice %47 {offsets = [48, 0], sizes = [24, 24], strides = [1, 1]} : vector<192x24xf32> to vector<24x24xf32>
    %51 = vector.extract_strided_slice %47 {offsets = [72, 0], sizes = [24, 24], strides = [1, 1]} : vector<192x24xf32> to vector<24x24xf32>
    %52 = vector.extract_strided_slice %47 {offsets = [96, 0], sizes = [24, 24], strides = [1, 1]} : vector<192x24xf32> to vector<24x24xf32>
    %53 = vector.extract_strided_slice %47 {offsets = [120, 0], sizes = [24, 24], strides = [1, 1]} : vector<192x24xf32> to vector<24x24xf32>
    %54 = vector.extract_strided_slice %47 {offsets = [144, 0], sizes = [24, 24], strides = [1, 1]} : vector<192x24xf32> to vector<24x24xf32>
    %55 = vector.extract_strided_slice %47 {offsets = [168, 0], sizes = [24, 24], strides = [1, 1]} : vector<192x24xf32> to vector<24x24xf32>
    %56 = tpu.concatenate %48, %49, %50, %51, %52, %53, %54, %55 in 1 : vector<24x24xf32>, vector<24x24xf32>, vector<24x24xf32>, vector<24x24xf32>, vector<24x24xf32>, vector<24x24xf32>, vector<24x24xf32>, vector<24x24xf32> -> vector<24x192xf32>
    %57 = arith.truncf %56 : vector<24x192xf32> to vector<24x192xbf16>
    %58 = arith.truncf %32 : vector<192x32xf32> to vector<192x32xbf16>
    %cst_16 = arith.constant dense<0.000000e+00> : vector<24x32xf32>
    %59 = tpu.matmul %57, %58, %cst_16 {dimension_numbers = #tpu.dot_dimension_numbers<[1], [0], [0], [1], [0, 0, 1, 1], [], []>} : vector<24x192xbf16>, vector<192x32xbf16>, vector<24x32xf32> -> vector<24x32xf32>
    %60 = arith.addf %11, %59 : vector<24x32xf32>
    %61 = vector.extract_strided_slice %6 {offsets = [24, 0], sizes = [24, 32], strides = [1, 1]} : vector<48x32xf32> to vector<24x32xf32>
    %62 = vector.extract_strided_slice %10 {offsets = [24, 0], sizes = [24, 512], strides = [1, 1]} : vector<48x512xf32> to vector<24x512xf32>
    %63 = vector.extract_strided_slice %62 {offsets = [0, 0], sizes = [24, 256], strides = [1, 1]} : vector<24x512xf32> to vector<24x256xf32>
    %64 = vector.extract_strided_slice %63 {offsets = [0, 0], sizes = [24, 32], strides = [1, 1]} : vector<24x256xf32> to vector<24x32xf32>
    %65 = vector.extract_strided_slice %63 {offsets = [0, 32], sizes = [24, 32], strides = [1, 1]} : vector<24x256xf32> to vector<24x32xf32>
    %66 = vector.extract_strided_slice %63 {offsets = [0, 64], sizes = [24, 32], strides = [1, 1]} : vector<24x256xf32> to vector<24x32xf32>
    %67 = vector.extract_strided_slice %63 {offsets = [0, 96], sizes = [24, 32], strides = [1, 1]} : vector<24x256xf32> to vector<24x32xf32>
    %68 = vector.extract_strided_slice %63 {offsets = [0, 128], sizes = [24, 32], strides = [1, 1]} : vector<24x256xf32> to vector<24x32xf32>
    %69 = vector.extract_strided_slice %63 {offsets = [0, 160], sizes = [24, 32], strides = [1, 1]} : vector<24x256xf32> to vector<24x32xf32>
    %70 = vector.extract_strided_slice %63 {offsets = [0, 192], sizes = [24, 32], strides = [1, 1]} : vector<24x256xf32> to vector<24x32xf32>
    %71 = vector.extract_strided_slice %63 {offsets = [0, 224], sizes = [24, 32], strides = [1, 1]} : vector<24x256xf32> to vector<24x32xf32>
    %72 = tpu.concatenate %64, %65, %66, %67, %68, %69, %70, %71 in 0 : vector<24x32xf32>, vector<24x32xf32>, vector<24x32xf32>, vector<24x32xf32>, vector<24x32xf32>, vector<24x32xf32>, vector<24x32xf32>, vector<24x32xf32> -> vector<192x32xf32>
    %73 = vector.extract_strided_slice %62 {offsets = [0, 256], sizes = [24, 256], strides = [1, 1]} : vector<24x512xf32> to vector<24x256xf32>
    %74 = vector.extract_strided_slice %73 {offsets = [0, 0], sizes = [24, 32], strides = [1, 1]} : vector<24x256xf32> to vector<24x32xf32>
    %75 = vector.extract_strided_slice %73 {offsets = [0, 32], sizes = [24, 32], strides = [1, 1]} : vector<24x256xf32> to vector<24x32xf32>
    %76 = vector.extract_strided_slice %73 {offsets = [0, 64], sizes = [24, 32], strides = [1, 1]} : vector<24x256xf32> to vector<24x32xf32>
    %77 = vector.extract_strided_slice %73 {offsets = [0, 96], sizes = [24, 32], strides = [1, 1]} : vector<24x256xf32> to vector<24x32xf32>
    %78 = vector.extract_strided_slice %73 {offsets = [0, 128], sizes = [24, 32], strides = [1, 1]} : vector<24x256xf32> to vector<24x32xf32>
    %79 = vector.extract_strided_slice %73 {offsets = [0, 160], sizes = [24, 32], strides = [1, 1]} : vector<24x256xf32> to vector<24x32xf32>
    %80 = vector.extract_strided_slice %73 {offsets = [0, 192], sizes = [24, 32], strides = [1, 1]} : vector<24x256xf32> to vector<24x32xf32>
    %81 = vector.extract_strided_slice %73 {offsets = [0, 224], sizes = [24, 32], strides = [1, 1]} : vector<24x256xf32> to vector<24x32xf32>
    %82 = tpu.concatenate %74, %75, %76, %77, %78, %79, %80, %81 in 0 : vector<24x32xf32>, vector<24x32xf32>, vector<24x32xf32>, vector<24x32xf32>, vector<24x32xf32>, vector<24x32xf32>, vector<24x32xf32>, vector<24x32xf32> -> vector<192x32xf32>
    %83 = arith.truncf %72 : vector<192x32xf32> to vector<192x32xbf16>
    %84 = arith.truncf %61 : vector<24x32xf32> to vector<24x32xbf16>
    %cst_17 = arith.constant dense<0.000000e+00> : vector<192x24xf32>
    %85 = tpu.matmul %83, %84, %cst_17 {dimension_numbers = #tpu.dot_dimension_numbers<[1], [1], [0], [0], [0, 0, 1, 0], [], []>} : vector<192x32xbf16>, vector<24x32xbf16>, vector<192x24xf32> -> vector<192x24xf32>
    %86 = vector.broadcast %1 : vector<1x24xf32> to vector<192x24xf32>
    %87 = arith.addf %85, %86 : vector<192x24xf32>
    %cst_18 = arith.constant dense<0xFF800000> : vector<192xf32>
    %88 = vector.multi_reduction <maximumf>, %87, %cst_18 [1] : vector<192x24xf32> to vector<192xf32>
    %89 = vector.shape_cast %88 : vector<192xf32> to vector<192x1xf32>
    %90 = vector.broadcast %89 : vector<192x1xf32> to vector<192x24xf32>
    %91 = arith.subf %87, %90 : vector<192x24xf32>
    %92 = math.exp %91 : vector<192x24xf32>
    %cst_19 = arith.constant dense<0.000000e+00> : vector<192xf32>
    %93 = vector.multi_reduction <add>, %92, %cst_19 [1] : vector<192x24xf32> to vector<192xf32>
    %94 = vector.shape_cast %93 : vector<192xf32> to vector<192x1xf32>
    %95 = tpu.reciprocal %94 {approx = true} : vector<192x1xf32> -> vector<192x1xf32>
    %96 = vector.broadcast %95 : vector<192x1xf32> to vector<192x24xf32>
    %97 = arith.mulf %92, %96 : vector<192x24xf32>
    %98 = vector.extract_strided_slice %97 {offsets = [0, 0], sizes = [24, 24], strides = [1, 1]} : vector<192x24xf32> to vector<24x24xf32>
    %99 = vector.extract_strided_slice %97 {offsets = [24, 0], sizes = [24, 24], strides = [1, 1]} : vector<192x24xf32> to vector<24x24xf32>
    %100 = vector.extract_strided_slice %97 {offsets = [48, 0], sizes = [24, 24], strides = [1, 1]} : vector<192x24xf32> to vector<24x24xf32>
    %101 = vector.extract_strided_slice %97 {offsets = [72, 0], sizes = [24, 24], strides = [1, 1]} : vector<192x24xf32> to vector<24x24xf32>
    %102 = vector.extract_strided_slice %97 {offsets = [96, 0], sizes = [24, 24], strides = [1, 1]} : vector<192x24xf32> to vector<24x24xf32>
    %103 = vector.extract_strided_slice %97 {offsets = [120, 0], sizes = [24, 24], strides = [1, 1]} : vector<192x24xf32> to vector<24x24xf32>
    %104 = vector.extract_strided_slice %97 {offsets = [144, 0], sizes = [24, 24], strides = [1, 1]} : vector<192x24xf32> to vector<24x24xf32>
    %105 = vector.extract_strided_slice %97 {offsets = [168, 0], sizes = [24, 24], strides = [1, 1]} : vector<192x24xf32> to vector<24x24xf32>
    %106 = tpu.concatenate %98, %99, %100, %101, %102, %103, %104, %105 in 1 : vector<24x24xf32>, vector<24x24xf32>, vector<24x24xf32>, vector<24x24xf32>, vector<24x24xf32>, vector<24x24xf32>, vector<24x24xf32>, vector<24x24xf32> -> vector<24x192xf32>
    %107 = arith.truncf %106 : vector<24x192xf32> to vector<24x192xbf16>
    %108 = arith.truncf %82 : vector<192x32xf32> to vector<192x32xbf16>
    %cst_20 = arith.constant dense<0.000000e+00> : vector<24x32xf32>
    %109 = tpu.matmul %107, %108, %cst_20 {dimension_numbers = #tpu.dot_dimension_numbers<[1], [0], [0], [1], [0, 0, 1, 1], [], []>} : vector<24x192xbf16>, vector<192x32xbf16>, vector<24x32xf32> -> vector<24x32xf32>
    %110 = arith.addf %61, %109 : vector<24x32xf32>
    %111 = tpu.concatenate %60, %110 in 0 : vector<24x32xf32>, vector<24x32xf32> -> vector<48x32xf32>
    %c0_21 = arith.constant 0 : index
    %c0_22 = arith.constant 0 : index
    %c0_23 = arith.constant 0 : index
    %112 = vector.load %arg6[%c0_21, %c0_22, %c0_23] : memref<2x1x32xf32, #tpu.memory_space<vmem>>, vector<1x1x32xf32>
    %113 = vector.shape_cast %112 : vector<1x1x32xf32> to vector<1x32xf32>
    %c0_24 = arith.constant 0 : index
    %c0_25 = arith.constant 0 : index
    %c0_26 = arith.constant 0 : index
    %114 = vector.load %arg7[%c0_24, %c0_25, %c0_26] : memref<2x1x32xf32, #tpu.memory_space<vmem>>, vector<1x1x32xf32>
    %115 = vector.shape_cast %114 : vector<1x1x32xf32> to vector<1x32xf32>
    %116 = vector.broadcast %0 : vector<48x1xf32> to vector<48x32xf32>
    %117 = arith.mulf %111, %116 : vector<48x32xf32>
    %cst_27 = arith.constant dense<0.000000e+00> : vector<32xf32>
    %118 = vector.multi_reduction <add>, %117, %cst_27 [0] : vector<48x32xf32> to vector<32xf32>
    %119 = vector.shape_cast %118 : vector<32xf32> to vector<1x32xf32>
    %cst_28 = arith.constant 2.500000e-02 : f32
    %120 = vector.broadcast %cst_28 : f32 to vector<1x32xf32>
    %121 = arith.mulf %119, %120 : vector<1x32xf32>
    %122 = vector.broadcast %121 : vector<1x32xf32> to vector<48x32xf32>
    %123 = arith.subf %111, %122 : vector<48x32xf32>
    %124 = vector.broadcast %0 : vector<48x1xf32> to vector<48x32xf32>
    %125 = arith.mulf %123, %124 : vector<48x32xf32>
    %126 = arith.mulf %125, %125 : vector<48x32xf32>
    %cst_29 = arith.constant dense<0.000000e+00> : vector<32xf32>
    %127 = vector.multi_reduction <add>, %126, %cst_29 [0] : vector<48x32xf32> to vector<32xf32>
    %128 = vector.shape_cast %127 : vector<32xf32> to vector<1x32xf32>
    %cst_30 = arith.constant 2.500000e-02 : f32
    %129 = vector.broadcast %cst_30 : f32 to vector<1x32xf32>
    %130 = arith.mulf %128, %129 : vector<1x32xf32>
    %131 = vector.broadcast %121 : vector<1x32xf32> to vector<48x32xf32>
    %132 = arith.subf %111, %131 : vector<48x32xf32>
    %cst_31 = arith.constant 9.99999974E-6 : f32
    %133 = vector.broadcast %cst_31 : f32 to vector<1x32xf32>
    %134 = arith.addf %130, %133 : vector<1x32xf32>
    %135 = math.rsqrt %134 : vector<1x32xf32>
    %136 = vector.broadcast %135 : vector<1x32xf32> to vector<48x32xf32>
    %137 = arith.mulf %132, %136 : vector<48x32xf32>
    %138 = vector.broadcast %113 : vector<1x32xf32> to vector<48x32xf32>
    %139 = arith.mulf %137, %138 : vector<48x32xf32>
    %140 = vector.broadcast %115 : vector<1x32xf32> to vector<48x32xf32>
    %141 = arith.addf %139, %140 : vector<48x32xf32>
    %c0_32 = arith.constant 0 : index
    %c0_33 = arith.constant 0 : index
    %c0_34 = arith.constant 0 : index
    %142 = vector.load %arg8[%c0_32, %c0_33, %c0_34] : memref<2x32x64xbf16, #tpu.memory_space<vmem>>, vector<1x32x64xbf16>
    %143 = vector.shape_cast %142 : vector<1x32x64xbf16> to vector<32x64xbf16>
    %144 = arith.truncf %141 : vector<48x32xf32> to vector<48x32xbf16>
    %cst_35 = arith.constant dense<0.000000e+00> : vector<48x64xf32>
    %145 = tpu.matmul %144, %143, %cst_35 {dimension_numbers = #tpu.dot_dimension_numbers<[1], [0], [0], [1], [0, 0, 1, 1], [], []>} : vector<48x32xbf16>, vector<32x64xbf16>, vector<48x64xf32> -> vector<48x64xf32>
    %c0_36 = arith.constant 0 : index
    %c0_37 = arith.constant 0 : index
    %c0_38 = arith.constant 0 : index
    %146 = vector.load %arg9[%c0_36, %c0_37, %c0_38] : memref<2x1x64xf32, #tpu.memory_space<vmem>>, vector<1x1x64xf32>
    %147 = vector.shape_cast %146 : vector<1x1x64xf32> to vector<1x64xf32>
    %148 = vector.broadcast %147 : vector<1x64xf32> to vector<48x64xf32>
    %149 = arith.addf %145, %148 : vector<48x64xf32>
    %cst_39 = arith.constant 0.000000e+00 : f32
    %150 = vector.broadcast %cst_39 : f32 to vector<48x64xf32>
    %151 = arith.maximumf %149, %150 : vector<48x64xf32>
    %c0_40 = arith.constant 0 : index
    %c0_41 = arith.constant 0 : index
    %c0_42 = arith.constant 0 : index
    %152 = vector.load %arg10[%c0_40, %c0_41, %c0_42] : memref<2x64x32xbf16, #tpu.memory_space<vmem>>, vector<1x64x32xbf16>
    %153 = vector.shape_cast %152 : vector<1x64x32xbf16> to vector<64x32xbf16>
    %154 = arith.truncf %151 : vector<48x64xf32> to vector<48x64xbf16>
    %cst_43 = arith.constant dense<0.000000e+00> : vector<48x32xf32>
    %155 = tpu.matmul %154, %153, %cst_43 {dimension_numbers = #tpu.dot_dimension_numbers<[1], [0], [0], [1], [0, 0, 1, 1], [], []>} : vector<48x64xbf16>, vector<64x32xbf16>, vector<48x32xf32> -> vector<48x32xf32>
    %156 = arith.addf %141, %155 : vector<48x32xf32>
    %c0_44 = arith.constant 0 : index
    %c0_45 = arith.constant 0 : index
    %c0_46 = arith.constant 0 : index
    %157 = vector.load %arg11[%c0_44, %c0_45, %c0_46] : memref<2x1x32xf32, #tpu.memory_space<vmem>>, vector<1x1x32xf32>
    %158 = vector.shape_cast %157 : vector<1x1x32xf32> to vector<1x32xf32>
    %159 = vector.broadcast %158 : vector<1x32xf32> to vector<48x32xf32>
    %160 = arith.addf %156, %159 : vector<48x32xf32>
    %c0_47 = arith.constant 0 : index
    %c0_48 = arith.constant 0 : index
    %c0_49 = arith.constant 0 : index
    %161 = vector.load %arg12[%c0_47, %c0_48, %c0_49] : memref<2x1x32xf32, #tpu.memory_space<vmem>>, vector<1x1x32xf32>
    %162 = vector.shape_cast %161 : vector<1x1x32xf32> to vector<1x32xf32>
    %c0_50 = arith.constant 0 : index
    %c0_51 = arith.constant 0 : index
    %c0_52 = arith.constant 0 : index
    %163 = vector.load %arg13[%c0_50, %c0_51, %c0_52] : memref<2x1x32xf32, #tpu.memory_space<vmem>>, vector<1x1x32xf32>
    %164 = vector.shape_cast %163 : vector<1x1x32xf32> to vector<1x32xf32>
    %165 = vector.broadcast %0 : vector<48x1xf32> to vector<48x32xf32>
    %166 = arith.mulf %160, %165 : vector<48x32xf32>
    %cst_53 = arith.constant dense<0.000000e+00> : vector<32xf32>
    %167 = vector.multi_reduction <add>, %166, %cst_53 [0] : vector<48x32xf32> to vector<32xf32>
    %168 = vector.shape_cast %167 : vector<32xf32> to vector<1x32xf32>
    %cst_54 = arith.constant 2.500000e-02 : f32
    %169 = vector.broadcast %cst_54 : f32 to vector<1x32xf32>
    %170 = arith.mulf %168, %169 : vector<1x32xf32>
    %171 = vector.broadcast %170 : vector<1x32xf32> to vector<48x32xf32>
    %172 = arith.subf %160, %171 : vector<48x32xf32>
    %173 = vector.broadcast %0 : vector<48x1xf32> to vector<48x32xf32>
    %174 = arith.mulf %172, %173 : vector<48x32xf32>
    %175 = arith.mulf %174, %174 : vector<48x32xf32>
    %cst_55 = arith.constant dense<0.000000e+00> : vector<32xf32>
    %176 = vector.multi_reduction <add>, %175, %cst_55 [0] : vector<48x32xf32> to vector<32xf32>
    %177 = vector.shape_cast %176 : vector<32xf32> to vector<1x32xf32>
    %cst_56 = arith.constant 2.500000e-02 : f32
    %178 = vector.broadcast %cst_56 : f32 to vector<1x32xf32>
    %179 = arith.mulf %177, %178 : vector<1x32xf32>
    %180 = vector.broadcast %170 : vector<1x32xf32> to vector<48x32xf32>
    %181 = arith.subf %160, %180 : vector<48x32xf32>
    %cst_57 = arith.constant 9.99999974E-6 : f32
    %182 = vector.broadcast %cst_57 : f32 to vector<1x32xf32>
    %183 = arith.addf %179, %182 : vector<1x32xf32>
    %184 = math.rsqrt %183 : vector<1x32xf32>
    %185 = vector.broadcast %184 : vector<1x32xf32> to vector<48x32xf32>
    %186 = arith.mulf %181, %185 : vector<48x32xf32>
    %187 = vector.broadcast %162 : vector<1x32xf32> to vector<48x32xf32>
    %188 = arith.mulf %186, %187 : vector<48x32xf32>
    %189 = vector.broadcast %164 : vector<1x32xf32> to vector<48x32xf32>
    %190 = arith.addf %188, %189 : vector<48x32xf32>
    %c1 = arith.constant 1 : index
    %c0_58 = arith.constant 0 : index
    %c0_59 = arith.constant 0 : index
    %191 = vector.load %arg5[%c1, %c0_58, %c0_59] : memref<2x32x512xbf16, #tpu.memory_space<vmem>>, vector<1x32x512xbf16>
    %192 = vector.shape_cast %191 : vector<1x32x512xbf16> to vector<32x512xbf16>
    %193 = arith.truncf %190 : vector<48x32xf32> to vector<48x32xbf16>
    %cst_60 = arith.constant dense<0.000000e+00> : vector<48x512xf32>
    %194 = tpu.matmul %193, %192, %cst_60 {dimension_numbers = #tpu.dot_dimension_numbers<[1], [0], [0], [1], [0, 0, 1, 1], [], []>} : vector<48x32xbf16>, vector<32x512xbf16>, vector<48x512xf32> -> vector<48x512xf32>
    %195 = vector.extract_strided_slice %190 {offsets = [0, 0], sizes = [24, 32], strides = [1, 1]} : vector<48x32xf32> to vector<24x32xf32>
    %196 = vector.extract_strided_slice %194 {offsets = [0, 0], sizes = [24, 512], strides = [1, 1]} : vector<48x512xf32> to vector<24x512xf32>
    %197 = vector.extract_strided_slice %196 {offsets = [0, 0], sizes = [24, 256], strides = [1, 1]} : vector<24x512xf32> to vector<24x256xf32>
    %198 = vector.extract_strided_slice %197 {offsets = [0, 0], sizes = [24, 32], strides = [1, 1]} : vector<24x256xf32> to vector<24x32xf32>
    %199 = vector.extract_strided_slice %197 {offsets = [0, 32], sizes = [24, 32], strides = [1, 1]} : vector<24x256xf32> to vector<24x32xf32>
    %200 = vector.extract_strided_slice %197 {offsets = [0, 64], sizes = [24, 32], strides = [1, 1]} : vector<24x256xf32> to vector<24x32xf32>
    %201 = vector.extract_strided_slice %197 {offsets = [0, 96], sizes = [24, 32], strides = [1, 1]} : vector<24x256xf32> to vector<24x32xf32>
    %202 = vector.extract_strided_slice %197 {offsets = [0, 128], sizes = [24, 32], strides = [1, 1]} : vector<24x256xf32> to vector<24x32xf32>
    %203 = vector.extract_strided_slice %197 {offsets = [0, 160], sizes = [24, 32], strides = [1, 1]} : vector<24x256xf32> to vector<24x32xf32>
    %204 = vector.extract_strided_slice %197 {offsets = [0, 192], sizes = [24, 32], strides = [1, 1]} : vector<24x256xf32> to vector<24x32xf32>
    %205 = vector.extract_strided_slice %197 {offsets = [0, 224], sizes = [24, 32], strides = [1, 1]} : vector<24x256xf32> to vector<24x32xf32>
    %206 = tpu.concatenate %198, %199, %200, %201, %202, %203, %204, %205 in 0 : vector<24x32xf32>, vector<24x32xf32>, vector<24x32xf32>, vector<24x32xf32>, vector<24x32xf32>, vector<24x32xf32>, vector<24x32xf32>, vector<24x32xf32> -> vector<192x32xf32>
    %207 = vector.extract_strided_slice %196 {offsets = [0, 256], sizes = [24, 256], strides = [1, 1]} : vector<24x512xf32> to vector<24x256xf32>
    %208 = vector.extract_strided_slice %207 {offsets = [0, 0], sizes = [24, 32], strides = [1, 1]} : vector<24x256xf32> to vector<24x32xf32>
    %209 = vector.extract_strided_slice %207 {offsets = [0, 32], sizes = [24, 32], strides = [1, 1]} : vector<24x256xf32> to vector<24x32xf32>
    %210 = vector.extract_strided_slice %207 {offsets = [0, 64], sizes = [24, 32], strides = [1, 1]} : vector<24x256xf32> to vector<24x32xf32>
    %211 = vector.extract_strided_slice %207 {offsets = [0, 96], sizes = [24, 32], strides = [1, 1]} : vector<24x256xf32> to vector<24x32xf32>
    %212 = vector.extract_strided_slice %207 {offsets = [0, 128], sizes = [24, 32], strides = [1, 1]} : vector<24x256xf32> to vector<24x32xf32>
    %213 = vector.extract_strided_slice %207 {offsets = [0, 160], sizes = [24, 32], strides = [1, 1]} : vector<24x256xf32> to vector<24x32xf32>
    %214 = vector.extract_strided_slice %207 {offsets = [0, 192], sizes = [24, 32], strides = [1, 1]} : vector<24x256xf32> to vector<24x32xf32>
    %215 = vector.extract_strided_slice %207 {offsets = [0, 224], sizes = [24, 32], strides = [1, 1]} : vector<24x256xf32> to vector<24x32xf32>
    %216 = tpu.concatenate %208, %209, %210, %211, %212, %213, %214, %215 in 0 : vector<24x32xf32>, vector<24x32xf32>, vector<24x32xf32>, vector<24x32xf32>, vector<24x32xf32>, vector<24x32xf32>, vector<24x32xf32>, vector<24x32xf32> -> vector<192x32xf32>
    %217 = arith.truncf %206 : vector<192x32xf32> to vector<192x32xbf16>
    %218 = arith.truncf %195 : vector<24x32xf32> to vector<24x32xbf16>
    %cst_61 = arith.constant dense<0.000000e+00> : vector<192x24xf32>
    %219 = tpu.matmul %217, %218, %cst_61 {dimension_numbers = #tpu.dot_dimension_numbers<[1], [1], [0], [0], [0, 0, 1, 0], [], []>} : vector<192x32xbf16>, vector<24x32xbf16>, vector<192x24xf32> -> vector<192x24xf32>
    %220 = vector.broadcast %1 : vector<1x24xf32> to vector<192x24xf32>
    %221 = arith.addf %219, %220 : vector<192x24xf32>
    %cst_62 = arith.constant dense<0xFF800000> : vector<192xf32>
    %222 = vector.multi_reduction <maximumf>, %221, %cst_62 [1] : vector<192x24xf32> to vector<192xf32>
    %223 = vector.shape_cast %222 : vector<192xf32> to vector<192x1xf32>
    %224 = vector.broadcast %223 : vector<192x1xf32> to vector<192x24xf32>
    %225 = arith.subf %221, %224 : vector<192x24xf32>
    %226 = math.exp %225 : vector<192x24xf32>
    %cst_63 = arith.constant dense<0.000000e+00> : vector<192xf32>
    %227 = vector.multi_reduction <add>, %226, %cst_63 [1] : vector<192x24xf32> to vector<192xf32>
    %228 = vector.shape_cast %227 : vector<192xf32> to vector<192x1xf32>
    %229 = tpu.reciprocal %228 {approx = true} : vector<192x1xf32> -> vector<192x1xf32>
    %230 = vector.broadcast %229 : vector<192x1xf32> to vector<192x24xf32>
    %231 = arith.mulf %226, %230 : vector<192x24xf32>
    %c0_64 = arith.constant 0 : index
    %c0_65 = arith.constant 0 : index
    %c0_66 = arith.constant 0 : index
    %232 = vector.load %arg22[%c0_64, %c0_65, %c0_66] : memref<2x192x24xf32, #tpu.memory_space<vmem>>, vector<1x192x24xf32>
    %233 = vector.shape_cast %232 : vector<1x192x24xf32> to vector<192x24xf32>
    %234 = vector.shape_cast %231 : vector<192x24xf32> to vector<1x192x24xf32>
    tpu.vector_store %arg22[%c0_64, %c0_65, %c0_66], %234 {strides = array<i32>} : memref<2x192x24xf32, #tpu.memory_space<vmem>>, vector<1x192x24xf32>,
    %235 = vector.extract_strided_slice %231 {offsets = [0, 0], sizes = [24, 24], strides = [1, 1]} : vector<192x24xf32> to vector<24x24xf32>
    %236 = vector.extract_strided_slice %231 {offsets = [24, 0], sizes = [24, 24], strides = [1, 1]} : vector<192x24xf32> to vector<24x24xf32>
    %237 = vector.extract_strided_slice %231 {offsets = [48, 0], sizes = [24, 24], strides = [1, 1]} : vector<192x24xf32> to vector<24x24xf32>
    %238 = vector.extract_strided_slice %231 {offsets = [72, 0], sizes = [24, 24], strides = [1, 1]} : vector<192x24xf32> to vector<24x24xf32>
    %239 = vector.extract_strided_slice %231 {offsets = [96, 0], sizes = [24, 24], strides = [1, 1]} : vector<192x24xf32> to vector<24x24xf32>
    %240 = vector.extract_strided_slice %231 {offsets = [120, 0], sizes = [24, 24], strides = [1, 1]} : vector<192x24xf32> to vector<24x24xf32>
    %241 = vector.extract_strided_slice %231 {offsets = [144, 0], sizes = [24, 24], strides = [1, 1]} : vector<192x24xf32> to vector<24x24xf32>
    %242 = vector.extract_strided_slice %231 {offsets = [168, 0], sizes = [24, 24], strides = [1, 1]} : vector<192x24xf32> to vector<24x24xf32>
    %243 = tpu.concatenate %235, %236, %237, %238, %239, %240, %241, %242 in 1 : vector<24x24xf32>, vector<24x24xf32>, vector<24x24xf32>, vector<24x24xf32>, vector<24x24xf32>, vector<24x24xf32>, vector<24x24xf32>, vector<24x24xf32> -> vector<24x192xf32>
    %244 = arith.truncf %243 : vector<24x192xf32> to vector<24x192xbf16>
    %245 = arith.truncf %216 : vector<192x32xf32> to vector<192x32xbf16>
    %cst_67 = arith.constant dense<0.000000e+00> : vector<24x32xf32>
    %246 = tpu.matmul %244, %245, %cst_67 {dimension_numbers = #tpu.dot_dimension_numbers<[1], [0], [0], [1], [0, 0, 1, 1], [], []>} : vector<24x192xbf16>, vector<192x32xbf16>, vector<24x32xf32> -> vector<24x32xf32>
    %247 = arith.addf %195, %246 : vector<24x32xf32>
    %248 = vector.extract_strided_slice %190 {offsets = [24, 0], sizes = [24, 32], strides = [1, 1]} : vector<48x32xf32> to vector<24x32xf32>
    %249 = vector.extract_strided_slice %194 {offsets = [24, 0], sizes = [24, 512], strides = [1, 1]} : vector<48x512xf32> to vector<24x512xf32>
    %250 = vector.extract_strided_slice %249 {offsets = [0, 0], sizes = [24, 256], strides = [1, 1]} : vector<24x512xf32> to vector<24x256xf32>
    %251 = vector.extract_strided_slice %250 {offsets = [0, 0], sizes = [24, 32], strides = [1, 1]} : vector<24x256xf32> to vector<24x32xf32>
    %252 = vector.extract_strided_slice %250 {offsets = [0, 32], sizes = [24, 32], strides = [1, 1]} : vector<24x256xf32> to vector<24x32xf32>
    %253 = vector.extract_strided_slice %250 {offsets = [0, 64], sizes = [24, 32], strides = [1, 1]} : vector<24x256xf32> to vector<24x32xf32>
    %254 = vector.extract_strided_slice %250 {offsets = [0, 96], sizes = [24, 32], strides = [1, 1]} : vector<24x256xf32> to vector<24x32xf32>
    %255 = vector.extract_strided_slice %250 {offsets = [0, 128], sizes = [24, 32], strides = [1, 1]} : vector<24x256xf32> to vector<24x32xf32>
    %256 = vector.extract_strided_slice %250 {offsets = [0, 160], sizes = [24, 32], strides = [1, 1]} : vector<24x256xf32> to vector<24x32xf32>
    %257 = vector.extract_strided_slice %250 {offsets = [0, 192], sizes = [24, 32], strides = [1, 1]} : vector<24x256xf32> to vector<24x32xf32>
    %258 = vector.extract_strided_slice %250 {offsets = [0, 224], sizes = [24, 32], strides = [1, 1]} : vector<24x256xf32> to vector<24x32xf32>
    %259 = tpu.concatenate %251, %252, %253, %254, %255, %256, %257, %258 in 0 : vector<24x32xf32>, vector<24x32xf32>, vector<24x32xf32>, vector<24x32xf32>, vector<24x32xf32>, vector<24x32xf32>, vector<24x32xf32>, vector<24x32xf32> -> vector<192x32xf32>
    %260 = vector.extract_strided_slice %249 {offsets = [0, 256], sizes = [24, 256], strides = [1, 1]} : vector<24x512xf32> to vector<24x256xf32>
    %261 = vector.extract_strided_slice %260 {offsets = [0, 0], sizes = [24, 32], strides = [1, 1]} : vector<24x256xf32> to vector<24x32xf32>
    %262 = vector.extract_strided_slice %260 {offsets = [0, 32], sizes = [24, 32], strides = [1, 1]} : vector<24x256xf32> to vector<24x32xf32>
    %263 = vector.extract_strided_slice %260 {offsets = [0, 64], sizes = [24, 32], strides = [1, 1]} : vector<24x256xf32> to vector<24x32xf32>
    %264 = vector.extract_strided_slice %260 {offsets = [0, 96], sizes = [24, 32], strides = [1, 1]} : vector<24x256xf32> to vector<24x32xf32>
    %265 = vector.extract_strided_slice %260 {offsets = [0, 128], sizes = [24, 32], strides = [1, 1]} : vector<24x256xf32> to vector<24x32xf32>
    %266 = vector.extract_strided_slice %260 {offsets = [0, 160], sizes = [24, 32], strides = [1, 1]} : vector<24x256xf32> to vector<24x32xf32>
    %267 = vector.extract_strided_slice %260 {offsets = [0, 192], sizes = [24, 32], strides = [1, 1]} : vector<24x256xf32> to vector<24x32xf32>
    %268 = vector.extract_strided_slice %260 {offsets = [0, 224], sizes = [24, 32], strides = [1, 1]} : vector<24x256xf32> to vector<24x32xf32>
    %269 = tpu.concatenate %261, %262, %263, %264, %265, %266, %267, %268 in 0 : vector<24x32xf32>, vector<24x32xf32>, vector<24x32xf32>, vector<24x32xf32>, vector<24x32xf32>, vector<24x32xf32>, vector<24x32xf32>, vector<24x32xf32> -> vector<192x32xf32>
    %270 = arith.truncf %259 : vector<192x32xf32> to vector<192x32xbf16>
    %271 = arith.truncf %248 : vector<24x32xf32> to vector<24x32xbf16>
    %cst_68 = arith.constant dense<0.000000e+00> : vector<192x24xf32>
    %272 = tpu.matmul %270, %271, %cst_68 {dimension_numbers = #tpu.dot_dimension_numbers<[1], [1], [0], [0], [0, 0, 1, 0], [], []>} : vector<192x32xbf16>, vector<24x32xbf16>, vector<192x24xf32> -> vector<192x24xf32>
    %273 = vector.broadcast %1 : vector<1x24xf32> to vector<192x24xf32>
    %274 = arith.addf %272, %273 : vector<192x24xf32>
    %cst_69 = arith.constant dense<0xFF800000> : vector<192xf32>
    %275 = vector.multi_reduction <maximumf>, %274, %cst_69 [1] : vector<192x24xf32> to vector<192xf32>
    %276 = vector.shape_cast %275 : vector<192xf32> to vector<192x1xf32>
    %277 = vector.broadcast %276 : vector<192x1xf32> to vector<192x24xf32>
    %278 = arith.subf %274, %277 : vector<192x24xf32>
    %279 = math.exp %278 : vector<192x24xf32>
    %cst_70 = arith.constant dense<0.000000e+00> : vector<192xf32>
    %280 = vector.multi_reduction <add>, %279, %cst_70 [1] : vector<192x24xf32> to vector<192xf32>
    %281 = vector.shape_cast %280 : vector<192xf32> to vector<192x1xf32>
    %282 = tpu.reciprocal %281 {approx = true} : vector<192x1xf32> -> vector<192x1xf32>
    %283 = vector.broadcast %282 : vector<192x1xf32> to vector<192x24xf32>
    %284 = arith.mulf %279, %283 : vector<192x24xf32>
    %c1_71 = arith.constant 1 : index
    %c0_72 = arith.constant 0 : index
    %c0_73 = arith.constant 0 : index
    %285 = vector.load %arg22[%c1_71, %c0_72, %c0_73] : memref<2x192x24xf32, #tpu.memory_space<vmem>>, vector<1x192x24xf32>
    %286 = vector.shape_cast %285 : vector<1x192x24xf32> to vector<192x24xf32>
    %287 = vector.shape_cast %284 : vector<192x24xf32> to vector<1x192x24xf32>
    tpu.vector_store %arg22[%c1_71, %c0_72, %c0_73], %287 {strides = array<i32>} : memref<2x192x24xf32, #tpu.memory_space<vmem>>, vector<1x192x24xf32>,
    %288 = vector.extract_strided_slice %284 {offsets = [0, 0], sizes = [24, 24], strides = [1, 1]} : vector<192x24xf32> to vector<24x24xf32>
    %289 = vector.extract_strided_slice %284 {offsets = [24, 0], sizes = [24, 24], strides = [1, 1]} : vector<192x24xf32> to vector<24x24xf32>
    %290 = vector.extract_strided_slice %284 {offsets = [48, 0], sizes = [24, 24], strides = [1, 1]} : vector<192x24xf32> to vector<24x24xf32>
    %291 = vector.extract_strided_slice %284 {offsets = [72, 0], sizes = [24, 24], strides = [1, 1]} : vector<192x24xf32> to vector<24x24xf32>
    %292 = vector.extract_strided_slice %284 {offsets = [96, 0], sizes = [24, 24], strides = [1, 1]} : vector<192x24xf32> to vector<24x24xf32>
    %293 = vector.extract_strided_slice %284 {offsets = [120, 0], sizes = [24, 24], strides = [1, 1]} : vector<192x24xf32> to vector<24x24xf32>
    %294 = vector.extract_strided_slice %284 {offsets = [144, 0], sizes = [24, 24], strides = [1, 1]} : vector<192x24xf32> to vector<24x24xf32>
    %295 = vector.extract_strided_slice %284 {offsets = [168, 0], sizes = [24, 24], strides = [1, 1]} : vector<192x24xf32> to vector<24x24xf32>
    %296 = tpu.concatenate %288, %289, %290, %291, %292, %293, %294, %295 in 1 : vector<24x24xf32>, vector<24x24xf32>, vector<24x24xf32>, vector<24x24xf32>, vector<24x24xf32>, vector<24x24xf32>, vector<24x24xf32>, vector<24x24xf32> -> vector<24x192xf32>
    %297 = arith.truncf %296 : vector<24x192xf32> to vector<24x192xbf16>
    %298 = arith.truncf %269 : vector<192x32xf32> to vector<192x32xbf16>
    %cst_74 = arith.constant dense<0.000000e+00> : vector<24x32xf32>
    %299 = tpu.matmul %297, %298, %cst_74 {dimension_numbers = #tpu.dot_dimension_numbers<[1], [0], [0], [1], [0, 0, 1, 1], [], []>} : vector<24x192xbf16>, vector<192x32xbf16>, vector<24x32xf32> -> vector<24x32xf32>
    %300 = arith.addf %248, %299 : vector<24x32xf32>
    %301 = tpu.concatenate %247, %300 in 0 : vector<24x32xf32>, vector<24x32xf32> -> vector<48x32xf32>
    %c1_75 = arith.constant 1 : index
    %c0_76 = arith.constant 0 : index
    %c0_77 = arith.constant 0 : index
    %302 = vector.load %arg6[%c1_75, %c0_76, %c0_77] : memref<2x1x32xf32, #tpu.memory_space<vmem>>, vector<1x1x32xf32>
    %303 = vector.shape_cast %302 : vector<1x1x32xf32> to vector<1x32xf32>
    %c1_78 = arith.constant 1 : index
    %c0_79 = arith.constant 0 : index
    %c0_80 = arith.constant 0 : index
    %304 = vector.load %arg7[%c1_78, %c0_79, %c0_80] : memref<2x1x32xf32, #tpu.memory_space<vmem>>, vector<1x1x32xf32>
    %305 = vector.shape_cast %304 : vector<1x1x32xf32> to vector<1x32xf32>
    %306 = vector.broadcast %0 : vector<48x1xf32> to vector<48x32xf32>
    %307 = arith.mulf %301, %306 : vector<48x32xf32>
    %cst_81 = arith.constant dense<0.000000e+00> : vector<32xf32>
    %308 = vector.multi_reduction <add>, %307, %cst_81 [0] : vector<48x32xf32> to vector<32xf32>
    %309 = vector.shape_cast %308 : vector<32xf32> to vector<1x32xf32>
    %cst_82 = arith.constant 2.500000e-02 : f32
    %310 = vector.broadcast %cst_82 : f32 to vector<1x32xf32>
    %311 = arith.mulf %309, %310 : vector<1x32xf32>
    %312 = vector.broadcast %311 : vector<1x32xf32> to vector<48x32xf32>
    %313 = arith.subf %301, %312 : vector<48x32xf32>
    %314 = vector.broadcast %0 : vector<48x1xf32> to vector<48x32xf32>
    %315 = arith.mulf %313, %314 : vector<48x32xf32>
    %316 = arith.mulf %315, %315 : vector<48x32xf32>
    %cst_83 = arith.constant dense<0.000000e+00> : vector<32xf32>
    %317 = vector.multi_reduction <add>, %316, %cst_83 [0] : vector<48x32xf32> to vector<32xf32>
    %318 = vector.shape_cast %317 : vector<32xf32> to vector<1x32xf32>
    %cst_84 = arith.constant 2.500000e-02 : f32
    %319 = vector.broadcast %cst_84 : f32 to vector<1x32xf32>
    %320 = arith.mulf %318, %319 : vector<1x32xf32>
    %321 = vector.broadcast %311 : vector<1x32xf32> to vector<48x32xf32>
    %322 = arith.subf %301, %321 : vector<48x32xf32>
    %cst_85 = arith.constant 9.99999974E-6 : f32
    %323 = vector.broadcast %cst_85 : f32 to vector<1x32xf32>
    %324 = arith.addf %320, %323 : vector<1x32xf32>
    %325 = math.rsqrt %324 : vector<1x32xf32>
    %326 = vector.broadcast %325 : vector<1x32xf32> to vector<48x32xf32>
    %327 = arith.mulf %322, %326 : vector<48x32xf32>
    %328 = vector.broadcast %303 : vector<1x32xf32> to vector<48x32xf32>
    %329 = arith.mulf %327, %328 : vector<48x32xf32>
    %330 = vector.broadcast %305 : vector<1x32xf32> to vector<48x32xf32>
    %331 = arith.addf %329, %330 : vector<48x32xf32>
    %c1_86 = arith.constant 1 : index
    %c0_87 = arith.constant 0 : index
    %c0_88 = arith.constant 0 : index
    %332 = vector.load %arg8[%c1_86, %c0_87, %c0_88] : memref<2x32x64xbf16, #tpu.memory_space<vmem>>, vector<1x32x64xbf16>
    %333 = vector.shape_cast %332 : vector<1x32x64xbf16> to vector<32x64xbf16>
    %334 = arith.truncf %331 : vector<48x32xf32> to vector<48x32xbf16>
    %cst_89 = arith.constant dense<0.000000e+00> : vector<48x64xf32>
    %335 = tpu.matmul %334, %333, %cst_89 {dimension_numbers = #tpu.dot_dimension_numbers<[1], [0], [0], [1], [0, 0, 1, 1], [], []>} : vector<48x32xbf16>, vector<32x64xbf16>, vector<48x64xf32> -> vector<48x64xf32>
    %c1_90 = arith.constant 1 : index
    %c0_91 = arith.constant 0 : index
    %c0_92 = arith.constant 0 : index
    %336 = vector.load %arg9[%c1_90, %c0_91, %c0_92] : memref<2x1x64xf32, #tpu.memory_space<vmem>>, vector<1x1x64xf32>
    %337 = vector.shape_cast %336 : vector<1x1x64xf32> to vector<1x64xf32>
    %338 = vector.broadcast %337 : vector<1x64xf32> to vector<48x64xf32>
    %339 = arith.addf %335, %338 : vector<48x64xf32>
    %cst_93 = arith.constant 0.000000e+00 : f32
    %340 = vector.broadcast %cst_93 : f32 to vector<48x64xf32>
    %341 = arith.maximumf %339, %340 : vector<48x64xf32>
    %c1_94 = arith.constant 1 : index
    %c0_95 = arith.constant 0 : index
    %c0_96 = arith.constant 0 : index
    %342 = vector.load %arg10[%c1_94, %c0_95, %c0_96] : memref<2x64x32xbf16, #tpu.memory_space<vmem>>, vector<1x64x32xbf16>
    %343 = vector.shape_cast %342 : vector<1x64x32xbf16> to vector<64x32xbf16>
    %344 = arith.truncf %341 : vector<48x64xf32> to vector<48x64xbf16>
    %cst_97 = arith.constant dense<0.000000e+00> : vector<48x32xf32>
    %345 = tpu.matmul %344, %343, %cst_97 {dimension_numbers = #tpu.dot_dimension_numbers<[1], [0], [0], [1], [0, 0, 1, 1], [], []>} : vector<48x64xbf16>, vector<64x32xbf16>, vector<48x32xf32> -> vector<48x32xf32>
    %346 = arith.addf %331, %345 : vector<48x32xf32>
    %c1_98 = arith.constant 1 : index
    %c0_99 = arith.constant 0 : index
    %c0_100 = arith.constant 0 : index
    %347 = vector.load %arg11[%c1_98, %c0_99, %c0_100] : memref<2x1x32xf32, #tpu.memory_space<vmem>>, vector<1x1x32xf32>
    %348 = vector.shape_cast %347 : vector<1x1x32xf32> to vector<1x32xf32>
    %349 = vector.broadcast %348 : vector<1x32xf32> to vector<48x32xf32>
    %350 = arith.addf %346, %349 : vector<48x32xf32>
    %c1_101 = arith.constant 1 : index
    %c0_102 = arith.constant 0 : index
    %c0_103 = arith.constant 0 : index
    %351 = vector.load %arg12[%c1_101, %c0_102, %c0_103] : memref<2x1x32xf32, #tpu.memory_space<vmem>>, vector<1x1x32xf32>
    %352 = vector.shape_cast %351 : vector<1x1x32xf32> to vector<1x32xf32>
    %c1_104 = arith.constant 1 : index
    %c0_105 = arith.constant 0 : index
    %c0_106 = arith.constant 0 : index
    %353 = vector.load %arg13[%c1_104, %c0_105, %c0_106] : memref<2x1x32xf32, #tpu.memory_space<vmem>>, vector<1x1x32xf32>
    %354 = vector.shape_cast %353 : vector<1x1x32xf32> to vector<1x32xf32>
    %355 = vector.broadcast %0 : vector<48x1xf32> to vector<48x32xf32>
    %356 = arith.mulf %350, %355 : vector<48x32xf32>
    %cst_107 = arith.constant dense<0.000000e+00> : vector<32xf32>
    %357 = vector.multi_reduction <add>, %356, %cst_107 [0] : vector<48x32xf32> to vector<32xf32>
    %358 = vector.shape_cast %357 : vector<32xf32> to vector<1x32xf32>
    %cst_108 = arith.constant 2.500000e-02 : f32
    %359 = vector.broadcast %cst_108 : f32 to vector<1x32xf32>
    %360 = arith.mulf %358, %359 : vector<1x32xf32>
    %361 = vector.broadcast %360 : vector<1x32xf32> to vector<48x32xf32>
    %362 = arith.subf %350, %361 : vector<48x32xf32>
    %363 = vector.broadcast %0 : vector<48x1xf32> to vector<48x32xf32>
    %364 = arith.mulf %362, %363 : vector<48x32xf32>
    %365 = arith.mulf %364, %364 : vector<48x32xf32>
    %cst_109 = arith.constant dense<0.000000e+00> : vector<32xf32>
    %366 = vector.multi_reduction <add>, %365, %cst_109 [0] : vector<48x32xf32> to vector<32xf32>
    %367 = vector.shape_cast %366 : vector<32xf32> to vector<1x32xf32>
    %cst_110 = arith.constant 2.500000e-02 : f32
    %368 = vector.broadcast %cst_110 : f32 to vector<1x32xf32>
    %369 = arith.mulf %367, %368 : vector<1x32xf32>
    %370 = vector.broadcast %360 : vector<1x32xf32> to vector<48x32xf32>
    %371 = arith.subf %350, %370 : vector<48x32xf32>
    %cst_111 = arith.constant 9.99999974E-6 : f32
    %372 = vector.broadcast %cst_111 : f32 to vector<1x32xf32>
    %373 = arith.addf %369, %372 : vector<1x32xf32>
    %374 = math.rsqrt %373 : vector<1x32xf32>
    %375 = vector.broadcast %374 : vector<1x32xf32> to vector<48x32xf32>
    %376 = arith.mulf %371, %375 : vector<48x32xf32>
    %377 = vector.broadcast %352 : vector<1x32xf32> to vector<48x32xf32>
    %378 = arith.mulf %376, %377 : vector<48x32xf32>
    %379 = vector.broadcast %354 : vector<1x32xf32> to vector<48x32xf32>
    %380 = arith.addf %378, %379 : vector<48x32xf32>
    %381 = vector.extract_strided_slice %380 {offsets = [0, 0], sizes = [1, 32], strides = [1, 1]} : vector<48x32xf32> to vector<1x32xf32>
    %382 = vector.extract_strided_slice %380 {offsets = [1, 0], sizes = [1, 32], strides = [1, 1]} : vector<48x32xf32> to vector<1x32xf32>
    %383 = vector.extract_strided_slice %380 {offsets = [2, 0], sizes = [1, 32], strides = [1, 1]} : vector<48x32xf32> to vector<1x32xf32>
    %384 = vector.extract_strided_slice %380 {offsets = [3, 0], sizes = [1, 32], strides = [1, 1]} : vector<48x32xf32> to vector<1x32xf32>
    %385 = vector.extract_strided_slice %380 {offsets = [4, 0], sizes = [1, 32], strides = [1, 1]} : vector<48x32xf32> to vector<1x32xf32>
    %386 = vector.extract_strided_slice %380 {offsets = [5, 0], sizes = [1, 32], strides = [1, 1]} : vector<48x32xf32> to vector<1x32xf32>
    %387 = vector.extract_strided_slice %380 {offsets = [6, 0], sizes = [1, 32], strides = [1, 1]} : vector<48x32xf32> to vector<1x32xf32>
    %388 = vector.extract_strided_slice %380 {offsets = [7, 0], sizes = [1, 32], strides = [1, 1]} : vector<48x32xf32> to vector<1x32xf32>
    %389 = vector.extract_strided_slice %380 {offsets = [8, 0], sizes = [1, 32], strides = [1, 1]} : vector<48x32xf32> to vector<1x32xf32>
    %390 = vector.extract_strided_slice %380 {offsets = [9, 0], sizes = [1, 32], strides = [1, 1]} : vector<48x32xf32> to vector<1x32xf32>
    %391 = vector.extract_strided_slice %380 {offsets = [10, 0], sizes = [1, 32], strides = [1, 1]} : vector<48x32xf32> to vector<1x32xf32>
    %392 = vector.extract_strided_slice %380 {offsets = [11, 0], sizes = [1, 32], strides = [1, 1]} : vector<48x32xf32> to vector<1x32xf32>
    %393 = vector.extract_strided_slice %380 {offsets = [12, 0], sizes = [1, 32], strides = [1, 1]} : vector<48x32xf32> to vector<1x32xf32>
    %394 = vector.extract_strided_slice %380 {offsets = [13, 0], sizes = [1, 32], strides = [1, 1]} : vector<48x32xf32> to vector<1x32xf32>
    %395 = vector.extract_strided_slice %380 {offsets = [14, 0], sizes = [1, 32], strides = [1, 1]} : vector<48x32xf32> to vector<1x32xf32>
    %396 = vector.extract_strided_slice %380 {offsets = [15, 0], sizes = [1, 32], strides = [1, 1]} : vector<48x32xf32> to vector<1x32xf32>
    %397 = vector.extract_strided_slice %380 {offsets = [16, 0], sizes = [1, 32], strides = [1, 1]} : vector<48x32xf32> to vector<1x32xf32>
    %398 = vector.extract_strided_slice %380 {offsets = [17, 0], sizes = [1, 32], strides = [1, 1]} : vector<48x32xf32> to vector<1x32xf32>
    %399 = vector.extract_strided_slice %380 {offsets = [18, 0], sizes = [1, 32], strides = [1, 1]} : vector<48x32xf32> to vector<1x32xf32>
    %400 = vector.extract_strided_slice %380 {offsets = [19, 0], sizes = [1, 32], strides = [1, 1]} : vector<48x32xf32> to vector<1x32xf32>
    %401 = tpu.concatenate %381, %382, %383, %384, %385, %386, %387, %388, %389, %390, %391, %392, %393, %394, %395, %396 in 1 : vector<1x32xf32>, vector<1x32xf32>, vector<1x32xf32>, vector<1x32xf32>, vector<1x32xf32>, vector<1x32xf32>, vector<1x32xf32>, vector<1x32xf32>, vector<1x32xf32>, vector<1x32xf32>, vector<1x32xf32>, vector<1x32xf32>, vector<1x32xf32>, vector<1x32xf32>, vector<1x32xf32>, vector<1x32xf32> -> vector<1x512xf32>
    %402 = tpu.concatenate %397, %398, %399, %400 in 1 : vector<1x32xf32>, vector<1x32xf32>, vector<1x32xf32>, vector<1x32xf32> -> vector<1x128xf32>
    %403 = tpu.concatenate %401, %402 in 1 : vector<1x512xf32>, vector<1x128xf32> -> vector<1x640xf32>
    %404 = vector.extract_strided_slice %380 {offsets = [24, 0], sizes = [1, 32], strides = [1, 1]} : vector<48x32xf32> to vector<1x32xf32>
    %405 = vector.extract_strided_slice %380 {offsets = [25, 0], sizes = [1, 32], strides = [1, 1]} : vector<48x32xf32> to vector<1x32xf32>
    %406 = vector.extract_strided_slice %380 {offsets = [26, 0], sizes = [1, 32], strides = [1, 1]} : vector<48x32xf32> to vector<1x32xf32>
    %407 = vector.extract_strided_slice %380 {offsets = [27, 0], sizes = [1, 32], strides = [1, 1]} : vector<48x32xf32> to vector<1x32xf32>
    %408 = vector.extract_strided_slice %380 {offsets = [28, 0], sizes = [1, 32], strides = [1, 1]} : vector<48x32xf32> to vector<1x32xf32>
    %409 = vector.extract_strided_slice %380 {offsets = [29, 0], sizes = [1, 32], strides = [1, 1]} : vector<48x32xf32> to vector<1x32xf32>
    %410 = vector.extract_strided_slice %380 {offsets = [30, 0], sizes = [1, 32], strides = [1, 1]} : vector<48x32xf32> to vector<1x32xf32>
    %411 = vector.extract_strided_slice %380 {offsets = [31, 0], sizes = [1, 32], strides = [1, 1]} : vector<48x32xf32> to vector<1x32xf32>
    %412 = vector.extract_strided_slice %380 {offsets = [32, 0], sizes = [1, 32], strides = [1, 1]} : vector<48x32xf32> to vector<1x32xf32>
    %413 = vector.extract_strided_slice %380 {offsets = [33, 0], sizes = [1, 32], strides = [1, 1]} : vector<48x32xf32> to vector<1x32xf32>
    %414 = vector.extract_strided_slice %380 {offsets = [34, 0], sizes = [1, 32], strides = [1, 1]} : vector<48x32xf32> to vector<1x32xf32>
    %415 = vector.extract_strided_slice %380 {offsets = [35, 0], sizes = [1, 32], strides = [1, 1]} : vector<48x32xf32> to vector<1x32xf32>
    %416 = vector.extract_strided_slice %380 {offsets = [36, 0], sizes = [1, 32], strides = [1, 1]} : vector<48x32xf32> to vector<1x32xf32>
    %417 = vector.extract_strided_slice %380 {offsets = [37, 0], sizes = [1, 32], strides = [1, 1]} : vector<48x32xf32> to vector<1x32xf32>
    %418 = vector.extract_strided_slice %380 {offsets = [38, 0], sizes = [1, 32], strides = [1, 1]} : vector<48x32xf32> to vector<1x32xf32>
    %419 = vector.extract_strided_slice %380 {offsets = [39, 0], sizes = [1, 32], strides = [1, 1]} : vector<48x32xf32> to vector<1x32xf32>
    %420 = vector.extract_strided_slice %380 {offsets = [40, 0], sizes = [1, 32], strides = [1, 1]} : vector<48x32xf32> to vector<1x32xf32>
    %421 = vector.extract_strided_slice %380 {offsets = [41, 0], sizes = [1, 32], strides = [1, 1]} : vector<48x32xf32> to vector<1x32xf32>
    %422 = vector.extract_strided_slice %380 {offsets = [42, 0], sizes = [1, 32], strides = [1, 1]} : vector<48x32xf32> to vector<1x32xf32>
    %423 = vector.extract_strided_slice %380 {offsets = [43, 0], sizes = [1, 32], strides = [1, 1]} : vector<48x32xf32> to vector<1x32xf32>
    %424 = tpu.concatenate %404, %405, %406, %407, %408, %409, %410, %411, %412, %413, %414, %415, %416, %417, %418, %419 in 1 : vector<1x32xf32>, vector<1x32xf32>, vector<1x32xf32>, vector<1x32xf32>, vector<1x32xf32>, vector<1x32xf32>, vector<1x32xf32>, vector<1x32xf32>, vector<1x32xf32>, vector<1x32xf32>, vector<1x32xf32>, vector<1x32xf32>, vector<1x32xf32>, vector<1x32xf32>, vector<1x32xf32>, vector<1x32xf32> -> vector<1x512xf32>
    %425 = tpu.concatenate %420, %421, %422, %423 in 1 : vector<1x32xf32>, vector<1x32xf32>, vector<1x32xf32>, vector<1x32xf32> -> vector<1x128xf32>
    %426 = tpu.concatenate %424, %425 in 1 : vector<1x512xf32>, vector<1x128xf32> -> vector<1x640xf32>
    %427 = tpu.concatenate %403, %426 in 0 : vector<1x640xf32>, vector<1x640xf32> -> vector<2x640xf32>
    %c0_112 = arith.constant 0 : index
    %c0_113 = arith.constant 0 : index
    %428 = vector.load %arg21[%c0_112, %c0_113] : memref<2x640xf32, #tpu.memory_space<vmem>>, vector<2x640xf32>
    tpu.vector_store %arg21[%c0_112, %c0_113], %427 {strides = array<i32>} : memref<2x640xf32, #tpu.memory_space<vmem>>, vector<2x640xf32>,
    %c0_114 = arith.constant 0 : index
    %c0_115 = arith.constant 0 : index
    %429 = vector.load %arg14[%c0_114, %c0_115] : memref<640x32xbf16, #tpu.memory_space<vmem>>, vector<640x32xbf16>
    %430 = arith.truncf %427 : vector<2x640xf32> to vector<2x640xbf16>
    %cst_116 = arith.constant dense<0.000000e+00> : vector<2x32xf32>
    %431 = tpu.matmul %430, %429, %cst_116 {dimension_numbers = #tpu.dot_dimension_numbers<[1], [0], [0], [1], [0, 0, 1, 1], [], []>} : vector<2x640xbf16>, vector<640x32xbf16>, vector<2x32xf32> -> vector<2x32xf32>
    %c0_117 = arith.constant 0 : index
    %c0_118 = arith.constant 0 : index
    %432 = vector.load %arg15[%c0_117, %c0_118] : memref<1x32xf32, #tpu.memory_space<vmem>>, vector<1x32xf32>
    %433 = vector.broadcast %432 : vector<1x32xf32> to vector<2x32xf32>
    %434 = arith.addf %431, %433 : vector<2x32xf32>
    %cst_119 = arith.constant dense<0.000000e+00> : vector<2xf32>
    %435 = vector.multi_reduction <add>, %434, %cst_119 [1] : vector<2x32xf32> to vector<2xf32>
    %436 = vector.shape_cast %435 : vector<2xf32> to vector<2x1xf32>
    %cst_120 = arith.constant 3.200000e+01 : f32
    %437 = vector.broadcast %cst_120 : f32 to vector<2x1xf32>
    %438 = arith.divf %436, %437 : vector<2x1xf32>
    %439 = vector.broadcast %438 : vector<2x1xf32> to vector<2x32xf32>
    %440 = arith.subf %434, %439 : vector<2x32xf32>
    %441 = arith.mulf %440, %440 : vector<2x32xf32>
    %cst_121 = arith.constant dense<0.000000e+00> : vector<2xf32>
    %442 = vector.multi_reduction <add>, %441, %cst_121 [1] : vector<2x32xf32> to vector<2xf32>
    %443 = vector.shape_cast %442 : vector<2xf32> to vector<2x1xf32>
    %cst_122 = arith.constant 3.200000e+01 : f32
    %444 = vector.broadcast %cst_122 : f32 to vector<2x1xf32>
    %445 = arith.divf %443, %444 : vector<2x1xf32>
    %446 = vector.broadcast %438 : vector<2x1xf32> to vector<2x32xf32>
    %447 = arith.subf %434, %446 : vector<2x32xf32>
    %cst_123 = arith.constant 9.99999974E-6 : f32
    %448 = vector.broadcast %cst_123 : f32 to vector<2x1xf32>
    %449 = arith.addf %445, %448 : vector<2x1xf32>
    %450 = math.rsqrt %449 : vector<2x1xf32>
    %451 = vector.broadcast %450 : vector<2x1xf32> to vector<2x32xf32>
    %452 = arith.mulf %447, %451 : vector<2x32xf32>
    %c0_124 = arith.constant 0 : index
    %c0_125 = arith.constant 0 : index
    %453 = vector.load %arg16[%c0_124, %c0_125] : memref<1x32xf32, #tpu.memory_space<vmem>>, vector<1x32xf32>
    %454 = vector.broadcast %453 : vector<1x32xf32> to vector<2x32xf32>
    %455 = arith.mulf %452, %454 : vector<2x32xf32>
    %c0_126 = arith.constant 0 : index
    %c0_127 = arith.constant 0 : index
    %456 = vector.load %arg17[%c0_126, %c0_127] : memref<1x32xf32, #tpu.memory_space<vmem>>, vector<1x32xf32>
    %457 = vector.broadcast %456 : vector<1x32xf32> to vector<2x32xf32>
    %458 = arith.addf %455, %457 : vector<2x32xf32>
    %c0_128 = arith.constant 0 : index
    %c0_129 = arith.constant 0 : index
    %459 = vector.load %arg18[%c0_128, %c0_129] : memref<32x8xbf16, #tpu.memory_space<vmem>>, vector<32x8xbf16>
    %460 = arith.truncf %458 : vector<2x32xf32> to vector<2x32xbf16>
    %cst_130 = arith.constant dense<0.000000e+00> : vector<2x8xf32>
    %461 = tpu.matmul %460, %459, %cst_130 {dimension_numbers = #tpu.dot_dimension_numbers<[1], [0], [0], [1], [0, 0, 1, 1], [], []>} : vector<2x32xbf16>, vector<32x8xbf16>, vector<2x8xf32> -> vector<2x8xf32>
    %c0_131 = arith.constant 0 : index
    %c0_132 = arith.constant 0 : index
    %462 = vector.load %arg19[%c0_131, %c0_132] : memref<1x8xf32, #tpu.memory_space<vmem>>, vector<1x8xf32>
    %463 = vector.broadcast %462 : vector<1x8xf32> to vector<2x8xf32>
    %464 = arith.addf %461, %463 : vector<2x8xf32>
    %c0_133 = arith.constant 0 : index
    %c0_134 = arith.constant 0 : index
    %465 = vector.load %arg20[%c0_133, %c0_134] : memref<2x8xf32, #tpu.memory_space<vmem>>, vector<2x8xf32>
    tpu.vector_store %arg20[%c0_133, %c0_134], %464 {strides = array<i32>} : memref<2x8xf32, #tpu.memory_space<vmem>>, vector<2x8xf32>,
    return
  }
}

</mosaic_0001>

<llo_original>
// kernel: tile.18
$region0: #{tile.18}
  #allocation0 [shape = 's32[1]{0}', space=sflag, size = 0x4, scoped, tag = 'scoped memory for tile.18']
  %s0 = inlined_call_operand.vmem [shape: f32[24], index: 0, kind: input, shape index: {}]
  %s1 = inlined_call_operand.vmem [shape: f32[2,24], index: 1, kind: output, shape index: {}]
  // Predicated region
  $region2: #{tile.18} parent=0 // pred_check
    _
  $region3: #{tile.18} parent=0 // pred_check_branch
    %3 = sbr.rel (0) target = $region5
  $region4: #{tile.18} parent=0 // pred_region
    _
  $region5: #{tile.18} parent=0 // pred_fallthru
    _
  %v4 = vld [vmem:[%s0] ss:$0 sm:$0xff]
  %5 = vst [vmem:[%s1] sm:$0x3] %v4

// kernel: tile.0
$region0: #{tile.0}
  %s0 = inlined_call_operand.vmem [shape: f32[2,24], index: 0, kind: input, shape index: {}]
  %s1 = inlined_call_operand.vmem [shape: f32[48,1], index: 1, kind: output, shape index: {}]
  $region1: #{tile.0} parent=0
    #allocation0 [shape = 'u8[4096]{0}', space=vmem, size = 0x1000, scoped, tag = 'scoped mem for input reshape']
    %s3 = sshllo.u32 0, 2
    %v4 = vld [vmem:[%s0] sm:%s3]
    %5 = vst [vmem:[#allocation0] sm:%s3] %v4
    %v6 = vld [vmem:[#allocation0] sm:$0x3]
    %vm7 = vcmask 7168
    %8 = vst.msk [vmem:[%s1] ss:$24 sm:$0x3] %vm7, %v6
    %v9 = vld [vmem:[#allocation0] sm:$0x3]
    %10 = vrot.lane.b32.xlu0 %v9, 127
    %v11 = vpop.permute.xlu0 %10
    %vm12 = vcmask 7168
    %s13 = scalar_lea.vmem %s1, 1
    %14 = vst.msk [vmem:[%s13] ss:$24 sm:$0x3] %vm12, %v11
    %v15 = vld [vmem:[#allocation0] sm:$0x3]
    %16 = vrot.lane.b32.xlu0 %v15, 126
    %v17 = vpop.permute.xlu0 %16
    %vm18 = vcmask 7168
    %s19 = scalar_lea.vmem %s1, 2
    %20 = vst.msk [vmem:[%s19] ss:$24 sm:$0x3] %vm18, %v17
    %v21 = vld [vmem:[#allocation0] sm:$0x3]
    %22 = vrot.lane.b32.xlu0 %v21, 125
    %v23 = vpop.permute.xlu0 %22
    %vm24 = vcmask 7168
    %s25 = scalar_lea.vmem %s1, 3
    %26 = vst.msk [vmem:[%s25] ss:$24 sm:$0x3] %vm24, %v23
    %v27 = vld [vmem:[#allocation0] sm:$0x3]
    %28 = vrot.lane.b32.xlu0 %v27, 124
    %v29 = vpop.permute.xlu0 %28
    %vm30 = vcmask 7168
    %s31 = scalar_lea.vmem %s1, 4
    %32 = vst.msk [vmem:[%s31] ss:$24 sm:$0x3] %vm30, %v29
    %v33 = vld [vmem:[#allocation0] sm:$0x3]
    %34 = vrot.lane.b32.xlu0 %v33, 123
    %v35 = vpop.permute.xlu0 %34
    %vm36 = vcmask 7168
    %s37 = scalar_lea.vmem %s1, 5
    %38 = vst.msk [vmem:[%s37] ss:$24 sm:$0x3] %vm36, %v35
    %v39 = vld [vmem:[#allocation0] sm:$0x3]
    %40 = vrot.lane.b32.xlu0 %v39, 122
    %v41 = vpop.permute.xlu0 %40
    %vm42 = vcmask 7168
    %s43 = scalar_lea.vmem %s1, 6
    %44 = vst.msk [vmem:[%s43] ss:$24 sm:$0x3] %vm42, %v41
    %v45 = vld [vmem:[#allocation0] sm:$0x3]
    %46 = vrot.lane.b32.xlu0 %v45, 121
    %v47 = vpop.permute.xlu0 %46
    %vm48 = vcmask 7168
    %s49 = scalar_lea.vmem %s1, 7
    %50 = vst.msk [vmem:[%s49] ss:$24 sm:$0x3] %vm48, %v47
    %s51 = scalar_lea.vmem [#allocation0], 1
    %s52 = smov 3
    %v53 = vld [vmem:[%s51] ss:$-1 sm:%s52]
    %54 = vrot.lane.b32.xlu0 %v53, 120
    %v55 = vpop.permute.xlu0 %54
    %vm56 = vcmask 7168
    %s57 = scalar_lea.vmem %s1, 32
    %58 = vst.msk [vmem:[%s57] ss:$-24 sm:$0x3] %vm56, %v55
    %s59 = scalar_lea.vmem [#allocation0], 1
    %s60 = smov 3
    %v61 = vld [vmem:[%s59] ss:$-1 sm:%s60]
    %62 = vrot.lane.b32.xlu0 %v61, 119
    %v63 = vpop.permute.xlu0 %62
    %vm64 = vcmask 7168
    %s65 = scalar_lea.vmem %s1, 33
    %66 = vst.msk [vmem:[%s65] ss:$-24 sm:$0x3] %vm64, %v63
    %s67 = scalar_lea.vmem [#allocation0], 1
    %s68 = smov 3
    %v69 = vld [vmem:[%s67] ss:$-1 sm:%s68]
    %70 = vrot.lane.b32.xlu0 %v69, 118
    %v71 = vpop.permute.xlu0 %70
    %vm72 = vcmask 7168
    %s73 = scalar_lea.vmem %s1, 34
    %74 = vst.msk [vmem:[%s73] ss:$-24 sm:$0x3] %vm72, %v71
    %s75 = scalar_lea.vmem [#allocation0], 1
    %s76 = smov 3
    %v77 = vld [vmem:[%s75] ss:$-1 sm:%s76]
    %78 = vrot.lane.b32.xlu0 %v77, 117
    %v79 = vpop.permute.xlu0 %78
    %vm80 = vcmask 7168
    %s81 = scalar_lea.vmem %s1, 35
    %82 = vst.msk [vmem:[%s81] ss:$-24 sm:$0x3] %vm80, %v79
    %s83 = scalar_lea.vmem [#allocation0], 1
    %s84 = smov 3
    %v85 = vld [vmem:[%s83] ss:$-1 sm:%s84]
    %86 = vrot.lane.b32.xlu0 %v85, 116
    %v87 = vpop.permute.xlu0 %86
    %vm88 = vcmask 7168
    %s89 = scalar_lea.vmem %s1, 36
    %90 = vst.msk [vmem:[%s89] ss:$-24 sm:$0x3] %vm88, %v87
    %s91 = scalar_lea.vmem [#allocation0], 1
    %s92 = smov 3
    %v93 = vld [vmem:[%s91] ss:$-1 sm:%s92]
    %94 = vrot.lane.b32.xlu0 %v93, 115
    %v95 = vpop.permute.xlu0 %94
    %vm96 = vcmask 7168
    %s97 = scalar_lea.vmem %s1, 37
    %98 = vst.msk [vmem:[%s97] ss:$-24 sm:$0x3] %vm96, %v95
    %s99 = scalar_lea.vmem [#allocation0], 1
    %s100 = smov 3
    %v101 = vld [vmem:[%s99] ss:$-1 sm:%s100]
    %102 = vrot.lane.b32.xlu0 %v101, 114
    %v103 = vpop.permute.xlu0 %102
    %vm104 = vcmask 7168
    %s105 = scalar_lea.vmem %s1, 38
    %106 = vst.msk [vmem:[%s105] ss:$-24 sm:$0x3] %vm104, %v103
    %s107 = scalar_lea.vmem [#allocation0], 1
    %s108 = smov 3
    %v109 = vld [vmem:[%s107] ss:$-1 sm:%s108]
    %110 = vrot.lane.b32.xlu0 %v109, 113
    %v111 = vpop.permute.xlu0 %110
    %vm112 = vcmask 7168
    %s113 = scalar_lea.vmem %s1, 39
    %114 = vst.msk [vmem:[%s113] ss:$-24 sm:$0x3] %vm112, %v111
    %s115 = scalar_lea.vmem [#allocation0], 1
    %s116 = smov 3
    %v117 = vld [vmem:[%s115] ss:$-1 sm:%s116]
    %118 = vrot.lane.b32.xlu0 %v117, 112
    %v119 = vpop.permute.xlu0 %118
    %vm120 = vcmask 7168
    %s121 = scalar_lea.vmem %s1, 40
    %122 = vst.msk [vmem:[%s121] ss:$-24 sm:$0x3] %vm120, %v119
    %s123 = scalar_lea.vmem [#allocation0], 1
    %s124 = smov 3
    %v125 = vld [vmem:[%s123] ss:$-1 sm:%s124]
    %126 = vrot.lane.b32.xlu0 %v125, 111
    %v127 = vpop.permute.xlu0 %126
    %vm128 = vcmask 7168
    %s129 = scalar_lea.vmem %s1, 41
    %130 = vst.msk [vmem:[%s129] ss:$-24 sm:$0x3] %vm128, %v127
    %s131 = scalar_lea.vmem [#allocation0], 1
    %s132 = smov 3
    %v133 = vld [vmem:[%s131] ss:$-1 sm:%s132]
    %134 = vrot.lane.b32.xlu0 %v133, 110
    %v135 = vpop.permute.xlu0 %134
    %vm136 = vcmask 7168
    %s137 = scalar_lea.vmem %s1, 42
    %138 = vst.msk [vmem:[%s137] ss:$-24 sm:$0x3] %vm136, %v135
    %s139 = scalar_lea.vmem [#allocation0], 1
    %s140 = smov 3
    %v141 = vld [vmem:[%s139] ss:$-1 sm:%s140]
    %142 = vrot.lane.b32.xlu0 %v141, 109
    %v143 = vpop.permute.xlu0 %142
    %vm144 = vcmask 7168
    %s145 = scalar_lea.vmem %s1, 43
    %146 = vst.msk [vmem:[%s145] ss:$-24 sm:$0x3] %vm144, %v143
    %s147 = scalar_lea.vmem [#allocation0], 1
    %s148 = smov 3
    %v149 = vld [vmem:[%s147] ss:$-1 sm:%s148]
    %150 = vrot.lane.b32.xlu0 %v149, 108
    %v151 = vpop.permute.xlu0 %150
    %vm152 = vcmask 7168
    %s153 = scalar_lea.vmem %s1, 44
    %154 = vst.msk [vmem:[%s153] ss:$-24 sm:$0x3] %vm152, %v151
    %s155 = scalar_lea.vmem [#allocation0], 1
    %s156 = smov 3
    %v157 = vld [vmem:[%s155] ss:$-1 sm:%s156]
    %158 = vrot.lane.b32.xlu0 %v157, 107
    %v159 = vpop.permute.xlu0 %158
    %vm160 = vcmask 7168
    %s161 = scalar_lea.vmem %s1, 45
    %162 = vst.msk [vmem:[%s161] ss:$-24 sm:$0x3] %vm160, %v159
    %s163 = scalar_lea.vmem [#allocation0], 1
    %s164 = smov 3
    %v165 = vld [vmem:[%s163] ss:$-1 sm:%s164]
    %166 = vrot.lane.b32.xlu0 %v165, 106
    %v167 = vpop.permute.xlu0 %166
    %vm168 = vcmask 7168
    %s169 = scalar_lea.vmem %s1, 46
    %170 = vst.msk [vmem:[%s169] ss:$-24 sm:$0x3] %vm168, %v167
    %s171 = scalar_lea.vmem [#allocation0], 1
    %s172 = smov 3
    %v173 = vld [vmem:[%s171] ss:$-1 sm:%s172]
    %174 = vrot.lane.b32.xlu0 %v173, 105
    %v175 = vpop.permute.xlu0 %174
    %vm176 = vcmask 7168
    %s177 = scalar_lea.vmem %s1, 47
    %178 = vst.msk [vmem:[%s177] ss:$-24 sm:$0x3] %vm176, %v175

// kernel: attention_model_forward.1
$region0: #{attention_model_forward.1}
  #allocation0 [shape = 'u32[]', space=smem, size = 0x4, offset = 0x4, fixed_abs, tag = 'smem constant byte address 0x4 - core index']
  #allocation1 [shape = 'u32[144,128]{1,0:T(1,128)}', space=vmem, size = 0x12000, scoped, tag = 'internal scratch']
  %s0 = inlined_call_operand.vmem [shape: f32[48,4], index: 0, kind: input, shape index: {}]
  %s1 = inlined_call_operand.vmem [shape: f32[48,32], index: 1, kind: input, shape index: {}]
  %s2 = inlined_call_operand.vmem [shape: f32[48,1], index: 2, kind: input, shape index: {}]
  %s3 = inlined_call_operand.vmem [shape: f32[1,24], index: 3, kind: input, shape index: {}]
  %s4 = inlined_call_operand.vmem [shape: f32[4,32], index: 4, kind: input, shape index: {}]
  %s5 = inlined_call_operand.vmem [shape: bf16[2,32,512], index: 5, kind: input, shape index: {}]
  %s6 = inlined_call_operand.vmem [shape: f32[2,1,32], index: 6, kind: input, shape index: {}]
  %s7 = inlined_call_operand.vmem [shape: f32[2,1,32], index: 7, kind: input, shape index: {}]
  %s8 = inlined_call_operand.vmem [shape: bf16[2,32,64], index: 8, kind: input, shape index: {}]
  %s9 = inlined_call_operand.vmem [shape: f32[2,1,64], index: 9, kind: input, shape index: {}]
  %s10 = inlined_call_operand.vmem [shape: bf16[2,64,32], index: 10, kind: input, shape index: {}]
  %s11 = inlined_call_operand.vmem [shape: f32[2,1,32], index: 11, kind: input, shape index: {}]
  %s12 = inlined_call_operand.vmem [shape: f32[2,1,32], index: 12, kind: input, shape index: {}]
  %s13 = inlined_call_operand.vmem [shape: f32[2,1,32], index: 13, kind: input, shape index: {}]
  %s14 = inlined_call_operand.vmem [shape: bf16[640,32], index: 14, kind: input, shape index: {}]
  %s15 = inlined_call_operand.vmem [shape: f32[1,32], index: 15, kind: input, shape index: {}]
  %s16 = inlined_call_operand.vmem [shape: f32[1,32], index: 16, kind: input, shape index: {}]
  %s17 = inlined_call_operand.vmem [shape: f32[1,32], index: 17, kind: input, shape index: {}]
  %s18 = inlined_call_operand.vmem [shape: bf16[32,8], index: 18, kind: input, shape index: {}]
  %s19 = inlined_call_operand.vmem [shape: f32[1,8], index: 19, kind: input, shape index: {}]
  %s20 = inlined_call_operand.hbm [shape: f32[2,8], index: 20, kind: output, shape index: {0}]
  %s21 = inlined_call_operand.hbm [shape: f32[2,640], index: 21, kind: output, shape index: {1}]
  %s22 = inlined_call_operand.vmem [shape: f32[2,192,24], index: 22, kind: output, shape index: {2}]
  %23 = xla_tuple %s20, %s21, %s22
  %s24 = sld [smem:[#allocation0]]
  $region106: #{attention_model_forward.1} parent=0
    _
  %s26 = ssub.s32 1, %s24
  %s27 = scalar_select 0, %s26, %s24
  $region1: #{attention_model_forward.1} parent=0
    #allocation2 [shape = 'u8[1024]{0}', space=vmem, size = 0x400, scoped, tag = 'output window, operand 0, single buffered']
    #allocation3 [shape = 's32[1]{0}', space=sflag, size = 0x4, scoped, tag = 'scoped memory for attention_model_forward.1']
    #allocation4 [shape = 'u8[5120]{0}', space=vmem, size = 0x1400, scoped, tag = 'output window, operand 1, single buffered']
    #allocation5 [shape = 's32[1]{0}', space=sflag, size = 0x4, scoped, tag = 'scoped memory for attention_model_forward.1']
    %28 = vsyncpa [#allocation3], 0
    %29 = vsyncpa [#allocation5], 0
    // Predicated region
    $region2: #{attention_model_forward.1} parent=1 // pred_check
      _
    $region3: #{attention_model_forward.1} parent=1 // pred_check_branch
      %31 = sbr.rel (0) target = $region5
    $region4: #{attention_model_forward.1} parent=1 // pred_region
      _
    $region5: #{attention_model_forward.1} parent=1 // pred_fallthru
      _
    // Predicated region
    $region6: #{attention_model_forward.1} parent=1 // pred_check
      _
    $region7: #{attention_model_forward.1} parent=1 // pred_check_branch
      %33 = sbr.rel (0) target = $region9
    $region8: #{attention_model_forward.1} parent=1 // pred_region
      _
    $region9: #{attention_model_forward.1} parent=1 // pred_fallthru
      _
    // Predicated region
    $region10: #{attention_model_forward.1} parent=1 // pred_check
      _
    $region11: #{attention_model_forward.1} parent=1 // pred_check_branch
      %35 = sbr.rel (0) target = $region13
    $region12: #{attention_model_forward.1} parent=1 // pred_region
      _
    $region13: #{attention_model_forward.1} parent=1 // pred_fallthru
      _
    // Predicated region
    $region14: #{attention_model_forward.1} parent=1 // pred_check
      _
    $region15: #{attention_model_forward.1} parent=1 // pred_check_branch
      %37 = sbr.rel (0) target = $region17
    $region16: #{attention_model_forward.1} parent=1 // pred_region
      _
    $region17: #{attention_model_forward.1} parent=1 // pred_fallthru
      _
    // Predicated region
    $region18: #{attention_model_forward.1} parent=1 // pred_check
      _
    $region19: #{attention_model_forward.1} parent=1 // pred_check_branch
      %39 = sbr.rel (0) target = $region21
    $region20: #{attention_model_forward.1} parent=1 // pred_region
      _
    $region21: #{attention_model_forward.1} parent=1 // pred_fallthru
      _
    // Predicated region
    $region22: #{attention_model_forward.1} parent=1 // pred_check
      _
    $region23: #{attention_model_forward.1} parent=1 // pred_check_branch
      %41 = sbr.rel (0) target = $region25
    $region24: #{attention_model_forward.1} parent=1 // pred_region
      _
    $region25: #{attention_model_forward.1} parent=1 // pred_fallthru
      _
    // Predicated region
    $region26: #{attention_model_forward.1} parent=1 // pred_check
      _
    $region27: #{attention_model_forward.1} parent=1 // pred_check_branch
      %43 = sbr.rel (0) target = $region29
    $region28: #{attention_model_forward.1} parent=1 // pred_region
      _
    $region29: #{attention_model_forward.1} parent=1 // pred_fallthru
      _
    // Predicated region
    $region30: #{attention_model_forward.1} parent=1 // pred_check
      _
    $region31: #{attention_model_forward.1} parent=1 // pred_check_branch
      %45 = sbr.rel (0) target = $region33
    $region32: #{attention_model_forward.1} parent=1 // pred_region
      _
    $region33: #{attention_model_forward.1} parent=1 // pred_fallthru
      _
    // Predicated region
    $region34: #{attention_model_forward.1} parent=1 // pred_check
      _
    $region35: #{attention_model_forward.1} parent=1 // pred_check_branch
      %47 = sbr.rel (0) target = $region37
    $region36: #{attention_model_forward.1} parent=1 // pred_region
      _
    $region37: #{attention_model_forward.1} parent=1 // pred_fallthru
      _
    // Predicated region
    $region38: #{attention_model_forward.1} parent=1 // pred_check
      _
    $region39: #{attention_model_forward.1} parent=1 // pred_check_branch
      %49 = sbr.rel (0) target = $region41
    $region40: #{attention_model_forward.1} parent=1 // pred_region
      _
    $region41: #{attention_model_forward.1} parent=1 // pred_fallthru
      _
    // Predicated region
    $region42: #{attention_model_forward.1} parent=1 // pred_check
      _
    $region43: #{attention_model_forward.1} parent=1 // pred_check_branch
      %51 = sbr.rel (0) target = $region45
    $region44: #{attention_model_forward.1} parent=1 // pred_region
      _
    $region45: #{attention_model_forward.1} parent=1 // pred_fallthru
      _
    // Predicated region
    $region46: #{attention_model_forward.1} parent=1 // pred_check
      _
    $region47: #{attention_model_forward.1} parent=1 // pred_check_branch
      %53 = sbr.rel (0) target = $region49
    $region48: #{attention_model_forward.1} parent=1 // pred_region
      _
    $region49: #{attention_model_forward.1} parent=1 // pred_fallthru
      _
    // Predicated region
    $region50: #{attention_model_forward.1} parent=1 // pred_check
      _
    $region51: #{attention_model_forward.1} parent=1 // pred_check_branch
      %55 = sbr.rel (0) target = $region53
    $region52: #{attention_model_forward.1} parent=1 // pred_region
      _
    $region53: #{attention_model_forward.1} parent=1 // pred_fallthru
      _
    // Predicated region
    $region54: #{attention_model_forward.1} parent=1 // pred_check
      _
    $region55: #{attention_model_forward.1} parent=1 // pred_check_branch
      %57 = sbr.rel (0) target = $region57
    $region56: #{attention_model_forward.1} parent=1 // pred_region
      _
    $region57: #{attention_model_forward.1} parent=1 // pred_fallthru
      _
    // Predicated region
    $region58: #{attention_model_forward.1} parent=1 // pred_check
      _
    $region59: #{attention_model_forward.1} parent=1 // pred_check_branch
      %59 = sbr.rel (0) target = $region61
    $region60: #{attention_model_forward.1} parent=1 // pred_region
      _
    $region61: #{attention_model_forward.1} parent=1 // pred_fallthru
      _
    // Predicated region
    $region62: #{attention_model_forward.1} parent=1 // pred_check
      _
    $region63: #{attention_model_forward.1} parent=1 // pred_check_branch
      %61 = sbr.rel (0) target = $region65
    $region64: #{attention_model_forward.1} parent=1 // pred_region
      _
    $region65: #{attention_model_forward.1} parent=1 // pred_fallthru
      _
    // Predicated region
    $region66: #{attention_model_forward.1} parent=1 // pred_check
      _
    $region67: #{attention_model_forward.1} parent=1 // pred_check_branch
      %63 = sbr.rel (0) target = $region69
    $region68: #{attention_model_forward.1} parent=1 // pred_region
      _
    $region69: #{attention_model_forward.1} parent=1 // pred_fallthru
      _
    // Predicated region
    $region70: #{attention_model_forward.1} parent=1 // pred_check
      _
    $region71: #{attention_model_forward.1} parent=1 // pred_check_branch
      %65 = sbr.rel (0) target = $region73
    $region72: #{attention_model_forward.1} parent=1 // pred_region
      _
    $region73: #{attention_model_forward.1} parent=1 // pred_fallthru
      _
    // Predicated region
    $region74: #{attention_model_forward.1} parent=1 // pred_check
      _
    $region75: #{attention_model_forward.1} parent=1 // pred_check_branch
      %67 = sbr.rel (0) target = $region77
    $region76: #{attention_model_forward.1} parent=1 // pred_region
      _
    $region77: #{attention_model_forward.1} parent=1 // pred_fallthru
      _
    // Predicated region
    $region78: #{attention_model_forward.1} parent=1 // pred_check
      _
    $region79: #{attention_model_forward.1} parent=1 // pred_check_branch
      %69 = sbr.rel (0) target = $region81
    $region80: #{attention_model_forward.1} parent=1 // pred_region
      _
    $region81: #{attention_model_forward.1} parent=1 // pred_fallthru
      _
    %v71 = vld [vmem:[%s2] sm:$0xff]
    %v72 = vld [vmem:[%s2 + $0x8] sm:$0xff]
    %v73 = vld [vmem:[%s2 + $0x10] sm:$0xff]
    %v74 = vld [vmem:[%s2 + $0x18] sm:$0xff]
    %v75 = vld [vmem:[%s2 + $0x20] sm:$0xff]
    %v76 = vld [vmem:[%s2 + $0x28] sm:$0xff]
    %v77 = vld [vmem:[%s3] sm:$0x1]
    %v78 = vld [vmem:[%s0] sm:$0xff]
    %v79 = vld [vmem:[%s0 + $0x8] sm:$0xff]
    %v80 = vld [vmem:[%s0 + $0x10] sm:$0xff]
    %v81 = vld [vmem:[%s0 + $0x18] sm:$0xff]
    %v82 = vld [vmem:[%s0 + $0x20] sm:$0xff]
    %v83 = vld [vmem:[%s0 + $0x28] sm:$0xff]
    %v84 = vld [vmem:[%s4] sm:$0xf]
    %v85 = vld [vmem:[%s1] sm:$0xff]
    %v86 = vld [vmem:[%s1 + $0x8] sm:$0xff]
    %v87 = vld [vmem:[%s1 + $0x10] sm:$0xff]
    %v88 = vld [vmem:[%s1 + $0x18] sm:$0xff]
    %v89 = vld [vmem:[%s1 + $0x20] sm:$0xff]
    %v90 = vld [vmem:[%s1 + $0x28] sm:$0xff]
    %vm91 = vcmask 31744
    %v93 = vsel %vm91, %v78, 0
    %v96 = vsel %vm91, %v79, 0
    %v99 = vsel %vm91, %v80, 0
    %v102 = vsel %vm91, %v81, 0
    %v105 = vsel %vm91, %v82, 0
    %v108 = vsel %vm91, %v83, 0
    %vm110 = vcmask 1043456
    %v112 = vsel %vm110, %v84, 0
    %114 = vmatprep.subr.mxu0 0.0
    %115 = vmatpush1.msra.mxu0 %v112
    %116 = vmatprep.subr.mxu0 0.0
    %117 = vmatpush1.msra.mxu0 0.0
    %118 = vmatprep.subr.mxu0 0.0
    %119 = vmatpush1.msra.mxu0 0.0
    %120 = vmatprep.subr.mxu0 0.0
    %121 = vmatpush1.msra.mxu0 0.0
    %122 = vmatprep.subr.mxu0 0.0
    %123 = vmatpush1.msra.mxu0 0.0
    %124 = vmatprep.subr.mxu0 0.0
    %125 = vmatpush1.msra.mxu0 0.0
    %126 = vmatprep.subr.mxu0 0.0
    %127 = vmatpush1.msra.mxu0 0.0
    %128 = vmatprep.subr.mxu0 0.0
    %129 = vmatpush1.msra.mxu0 0.0
    %130 = vmatprep.subr.mxu0 0.0
    %131 = vmatpush1.msra.mxu0 0.0
    %132 = vmatprep.subr.mxu0 0.0
    %133 = vmatpush1.msra.mxu0 0.0
    %134 = vmatprep.subr.mxu0 0.0
    %135 = vmatpush1.msra.mxu0 0.0
    %136 = vmatprep.subr.mxu0 0.0
    %137 = vmatpush1.msra.mxu0 0.0
    %138 = vmatprep.subr.mxu0 0.0
    %139 = vmatpush1.msra.mxu0 0.0
    %140 = vmatprep.subr.mxu0 0.0
    %141 = vmatpush1.msra.mxu0 0.0
    %142 = vmatprep.subr.mxu0 0.0
    %143 = vmatpush1.msra.mxu0 0.0
    %144 = vmatprep.subr.mxu0 0.0
    %145 = vmatpush1.msra.mxu0 0.0
    %146 = vmatprep.subr.mxu0 0.0
    %147 = vmatpush1.msra.mxu0 0.0
    %148 = vmatprep.subr.mxu0 0.0
    %149 = vmatpush1.msra.mxu0 0.0
    %150 = vmatprep.subr.mxu0 0.0
    %151 = vmatpush1.msra.mxu0 0.0
    %152 = vmatprep.subr.mxu0 0.0
    %153 = vmatpush1.msra.mxu0 0.0
    %154 = vmatprep.subr.mxu0 0.0
    %155 = vmatpush1.msra.mxu0 0.0
    %156 = vmatprep.subr.mxu0 0.0
    %157 = vmatpush1.msra.mxu0 0.0
    %158 = vmatprep.subr.mxu0 0.0
    %159 = vmatpush1.msra.mxu0 0.0
    %160 = vmatprep.subr.mxu0 0.0
    %161 = vmatpush1.msra.mxu0 0.0
    %162 = vmatprep.subr.mxu0 0.0
    %163 = vmatpush1.msra.mxu0 0.0
    %164 = vmatprep.subr.mxu0 0.0
    %165 = vmatpush1.msra.mxu0 0.0
    %166 = vmatprep.subr.mxu0 0.0
    %167 = vmatpush1.msra.mxu0 0.0
    %168 = vmatprep.subr.mxu0 0.0
    %169 = vmatpush1.msra.mxu0 0.0
    %170 = vmatprep.subr.mxu0 0.0
    %171 = vmatpush1.msra.mxu0 0.0
    %172 = vmatprep.subr.mxu0 0.0
    %173 = vmatpush1.msra.mxu0 0.0
    %174 = vmatprep.subr.mxu0 0.0
    %175 = vmatpush1.msra.mxu0 0.0
    %176 = vmatprep.subr.mxu0 0.0
    %177 = vmatpush1.msra.mxu0 0.0
    %178 = vmatprep.mubr.f32.mxu0 0.0
    %179 = vmatmul.mubr.f32.gmra.mrb[0].mxu0 %v93
    %v180 = vpop.f32.mrb[0].mxu0
    %v181 = vadd.f32 %v85, %v180
    %v182 = vpop.f32.mrb[0].mxu0
    %183 = vmatprep.mubr.f32.mxu0 0.0
    %184 = vmatmul.mubr.f32.gmra.mrb[0].mxu0 %v96
    %v185 = vpop.f32.mrb[0].mxu0
    %v186 = vadd.f32 %v86, %v185
    %v187 = vpop.f32.mrb[0].mxu0
    %188 = vmatprep.mubr.f32.mxu0 0.0
    %189 = vmatmul.mubr.f32.gmra.mrb[0].mxu0 %v99
    %v190 = vpop.f32.mrb[0].mxu0
    %v191 = vadd.f32 %v87, %v190
    %v192 = vpop.f32.mrb[0].mxu0
    %193 = vmatprep.mubr.f32.mxu0 0.0
    %194 = vmatmul.mubr.f32.gmra.mrb[0].mxu0 %v102
    %v195 = vpop.f32.mrb[0].mxu0
    %v196 = vadd.f32 %v88, %v195
    %v197 = vpop.f32.mrb[0].mxu0
    %198 = vmatprep.mubr.f32.mxu0 0.0
    %199 = vmatmul.mubr.f32.gmra.mrb[0].mxu0 %v105
    %v200 = vpop.f32.mrb[0].mxu0
    %v201 = vadd.f32 %v89, %v200
    %v202 = vpop.f32.mrb[0].mxu0
    %203 = vmatprep.mubr.f32.mxu0 0.0
    %204 = vmatmul.mubr.f32.gmra.mrb[0].mxu0 %v108
    %v205 = vpop.f32.mrb[0].mxu0
    %v206 = vadd.f32 %v90, %v205
    %v207 = vpop.f32.mrb[0].mxu0
    %208 = vdwg.mxu0
    %v209 = vld [vmem:[%s5] sm:$0xff]
    %v210 = vld [vmem:[%s5 + $0x8] sm:$0xff]
    %v211 = vld [vmem:[%s5 + $0x10] sm:$0xff]
    %v212 = vld [vmem:[%s5 + $0x18] sm:$0xff]
    %v213 = vld [vmem:[%s5 + $0x20] sm:$0xff]
    %v214 = vld [vmem:[%s5 + $0x28] sm:$0xff]
    %v215 = vld [vmem:[%s5 + $0x30] sm:$0xff]
    %v216 = vld [vmem:[%s5 + $0x38] sm:$0xff]
    %v217 = vpack.c.bf16 %v186, %v181
    %v218 = vpack.c.bf16 %v196, %v191
    %v219 = vpack.c.bf16 %v206, %v201
    %v228 = vunpack.c.l.b16 %v209
    %v229 = vunpack.c.h.b16 %v209
    %v230 = vunpack.c.l.b16 %v210
    %v231 = vunpack.c.h.b16 %v210
    %v232 = vunpack.c.l.b16 %v211
    %v233 = vunpack.c.h.b16 %v211
    %v234 = vunpack.c.l.b16 %v212
    %v235 = vunpack.c.h.b16 %v212
    %v236 = vunpack.c.l.b16 %v213
    %v237 = vunpack.c.h.b16 %v213
    %v238 = vunpack.c.l.b16 %v214
    %v239 = vunpack.c.h.b16 %v214
    %v240 = vunpack.c.l.b16 %v215
    %v241 = vunpack.c.h.b16 %v215
    %v242 = vunpack.c.l.b16 %v216
    %v243 = vunpack.c.h.b16 %v216
    %v244 = vpack.c.b16 %v232, %v228
    %v245 = vpack.c.b16 %v233, %v229
    %v246 = vpack.c.b16 %v234, %v230
    %v247 = vpack.c.b16 %v235, %v231
    %v248 = vpack.c.b16 %v240, %v236
    %v249 = vpack.c.b16 %v241, %v237
    %v250 = vpack.c.b16 %v242, %v238
    %v251 = vpack.c.b16 %v243, %v239
    %vm260 = vcmask 261120
    %v262 = vsel %vm260, %v217, 0
    %v265 = vsel %vm260, %v218, 0
    %v268 = vsel %vm260, %v219, 0
    %270 = vmatprep.subr.bf16.mxu0 %v245
    %271 = vmatpush1.bf16.msra.mxu0 %v244
    %272 = vmatprep.subr.bf16.mxu0 %v249
    %273 = vmatpush1.bf16.msra.mxu0 %v248
    %274 = vmatprep.subr.bf16.mxu0 0
    %275 = vmatpush1.bf16.msra.mxu0 0
    %276 = vmatprep.subr.bf16.mxu0 0
    %277 = vmatpush1.bf16.msra.mxu0 0
    %278 = vmatprep.subr.bf16.mxu0 0
    %279 = vmatpush1.bf16.msra.mxu0 0
    %280 = vmatprep.subr.bf16.mxu0 0
    %281 = vmatpush1.bf16.msra.mxu0 0
    %282 = vmatprep.subr.bf16.mxu0 0
    %283 = vmatpush1.bf16.msra.mxu0 0
    %284 = vmatprep.subr.bf16.mxu0 0
    %285 = vmatpush1.bf16.msra.mxu0 0
    %286 = vmatprep.subr.bf16.mxu0 0
    %287 = vmatpush1.bf16.msra.mxu0 0
    %288 = vmatprep.subr.bf16.mxu0 0
    %289 = vmatpush1.bf16.msra.mxu0 0
    %290 = vmatprep.subr.bf16.mxu0 0
    %291 = vmatpush1.bf16.msra.mxu0 0
    %292 = vmatprep.subr.bf16.mxu0 0
    %293 = vmatpush1.bf16.msra.mxu0 0
    %294 = vmatprep.subr.bf16.mxu0 0
    %295 = vmatpush1.bf16.msra.mxu0 0
    %296 = vmatprep.subr.bf16.mxu0 0
    %297 = vmatpush1.bf16.msra.mxu0 0
    %298 = vmatprep.subr.bf16.mxu0 0
    %299 = vmatpush1.bf16.msra.mxu0 0
    %300 = vmatprep.subr.bf16.mxu0 0
    %301 = vmatpush1.bf16.msra.mxu0 0
    %302 = vmatprep.mubr.bf16.mxu0 0
    %303 = vmatmul.mubr.bf16.gmra.mrb[0].mxu0 %v262
    %v304 = vpop.f32.mrb[0].mxu0
    %v305 = vadd.f32 0.0, %v304
    %v306 = vpop.f32.mrb[0].mxu0
    %v307 = vadd.f32 0.0, %v306
    %v308 = vpop.f32.mrb[0].mxu0
    %v309 = vadd.f32 0.0, %v308
    %v310 = vpop.f32.mrb[0].mxu0
    %v311 = vadd.f32 0.0, %v310
    %312 = vmatprep.mubr.bf16.mxu0 0
    %313 = vmatmul.mubr.bf16.gmra.mrb[0].mxu0 %v265
    %v314 = vpop.f32.mrb[0].mxu0
    %v315 = vadd.f32 0.0, %v314
    %v316 = vpop.f32.mrb[0].mxu0
    %v317 = vadd.f32 0.0, %v316
    %v318 = vpop.f32.mrb[0].mxu0
    %v319 = vadd.f32 0.0, %v318
    %v320 = vpop.f32.mrb[0].mxu0
    %v321 = vadd.f32 0.0, %v320
    %322 = vmatprep.mubr.bf16.mxu0 0
    %323 = vmatmul.mubr.bf16.gmra.mrb[0].mxu0 %v268
    %v324 = vpop.f32.mrb[0].mxu0
    %v325 = vadd.f32 0.0, %v324
    %v326 = vpop.f32.mrb[0].mxu0
    %v327 = vadd.f32 0.0, %v326
    %v328 = vpop.f32.mrb[0].mxu0
    %v329 = vadd.f32 0.0, %v328
    %v330 = vpop.f32.mrb[0].mxu0
    %v331 = vadd.f32 0.0, %v330
    %332 = vdwg.mxu0
    %333 = vmatprep.subr.bf16.mxu0 %v247
    %334 = vmatpush1.bf16.msra.mxu0 %v246
    %335 = vmatprep.subr.bf16.mxu0 %v251
    %336 = vmatpush1.bf16.msra.mxu0 %v250
    %337 = vmatprep.subr.bf16.mxu0 0
    %338 = vmatpush1.bf16.msra.mxu0 0
    %339 = vmatprep.subr.bf16.mxu0 0
    %340 = vmatpush1.bf16.msra.mxu0 0
    %341 = vmatprep.subr.bf16.mxu0 0
    %342 = vmatpush1.bf16.msra.mxu0 0
    %343 = vmatprep.subr.bf16.mxu0 0
    %344 = vmatpush1.bf16.msra.mxu0 0
    %345 = vmatprep.subr.bf16.mxu0 0
    %346 = vmatpush1.bf16.msra.mxu0 0
    %347 = vmatprep.subr.bf16.mxu0 0
    %348 = vmatpush1.bf16.msra.mxu0 0
    %349 = vmatprep.subr.bf16.mxu0 0
    %350 = vmatpush1.bf16.msra.mxu0 0
    %351 = vmatprep.subr.bf16.mxu0 0
    %352 = vmatpush1.bf16.msra.mxu0 0
    %353 = vmatprep.subr.bf16.mxu0 0
    %354 = vmatpush1.bf16.msra.mxu0 0
    %355 = vmatprep.subr.bf16.mxu0 0
    %356 = vmatpush1.bf16.msra.mxu0 0
    %357 = vmatprep.subr.bf16.mxu0 0
    %358 = vmatpush1.bf16.msra.mxu0 0
    %359 = vmatprep.subr.bf16.mxu0 0
    %360 = vmatpush1.bf16.msra.mxu0 0
    %361 = vmatprep.subr.bf16.mxu0 0
    %362 = vmatpush1.bf16.msra.mxu0 0
    %363 = vmatprep.subr.bf16.mxu0 0
    %364 = vmatpush1.bf16.msra.mxu0 0
    %365 = vmatprep.mubr.bf16.mxu0 0
    %366 = vmatmul.mubr.bf16.gmra.mrb[0].mxu0 %v262
    %v367 = vpop.f32.mrb[0].mxu0
    %v368 = vadd.f32 0.0, %v367
    %v369 = vpop.f32.mrb[0].mxu0
    %v370 = vadd.f32 0.0, %v369
    %v371 = vpop.f32.mrb[0].mxu0
    %v372 = vadd.f32 0.0, %v371
    %v373 = vpop.f32.mrb[0].mxu0
    %v374 = vadd.f32 0.0, %v373
    %375 = vmatprep.mubr.bf16.mxu0 0
    %376 = vmatmul.mubr.bf16.gmra.mrb[0].mxu0 %v265
    %v377 = vpop.f32.mrb[0].mxu0
    %v378 = vadd.f32 0.0, %v377
    %v379 = vpop.f32.mrb[0].mxu0
    %v380 = vadd.f32 0.0, %v379
    %v381 = vpop.f32.mrb[0].mxu0
    %v382 = vadd.f32 0.0, %v381
    %v383 = vpop.f32.mrb[0].mxu0
    %v384 = vadd.f32 0.0, %v383
    %385 = vmatprep.mubr.bf16.mxu0 0
    %386 = vmatmul.mubr.bf16.gmra.mrb[0].mxu0 %v268
    %v387 = vpop.f32.mrb[0].mxu0
    %v388 = vadd.f32 0.0, %v387
    %v389 = vpop.f32.mrb[0].mxu0
    %v390 = vadd.f32 0.0, %v389
    %v391 = vpop.f32.mrb[0].mxu0
    %v392 = vadd.f32 0.0, %v391
    %v393 = vpop.f32.mrb[0].mxu0
    %v394 = vadd.f32 0.0, %v393
    %395 = vdwg.mxu0
    %399 = vrot.lane.b32.xlu0 %v305, 96
    %v400 = vpop.permute.xlu0 %399
    %401 = vrot.lane.b32.xlu0 %v309, 96
    %v402 = vpop.permute.xlu0 %401
    %403 = vrot.lane.b32.xlu0 %v315, 96
    %v404 = vpop.permute.xlu0 %403
    %408 = vrot.lane.b32.xlu0 %v305, 64
    %v409 = vpop.permute.xlu0 %408
    %410 = vrot.lane.b32.xlu0 %v309, 64
    %v411 = vpop.permute.xlu0 %410
    %412 = vrot.lane.b32.xlu0 %v315, 64
    %v413 = vpop.permute.xlu0 %412
    %417 = vrot.lane.b32.xlu0 %v305, 32
    %v418 = vpop.permute.xlu0 %417
    %419 = vrot.lane.b32.xlu0 %v309, 32
    %v420 = vpop.permute.xlu0 %419
    %421 = vrot.lane.b32.xlu0 %v315, 32
    %v422 = vpop.permute.xlu0 %421
    %429 = vrot.lane.b32.xlu0 %v307, 96
    %v430 = vpop.permute.xlu0 %429
    %431 = vrot.lane.b32.xlu0 %v311, 96
    %v432 = vpop.permute.xlu0 %431
    %433 = vrot.lane.b32.xlu0 %v317, 96
    %v434 = vpop.permute.xlu0 %433
    %438 = vrot.lane.b32.xlu0 %v307, 64
    %v439 = vpop.permute.xlu0 %438
    %440 = vrot.lane.b32.xlu0 %v311, 64
    %v441 = vpop.permute.xlu0 %440
    %442 = vrot.lane.b32.xlu0 %v317, 64
    %v443 = vpop.permute.xlu0 %442
    %447 = vrot.lane.b32.xlu0 %v307, 32
    %v448 = vpop.permute.xlu0 %447
    %449 = vrot.lane.b32.xlu0 %v311, 32
    %v450 = vpop.permute.xlu0 %449
    %451 = vrot.lane.b32.xlu0 %v317, 32
    %v452 = vpop.permute.xlu0 %451
    %459 = vrot.lane.b32.xlu0 %v368, 96
    %v460 = vpop.permute.xlu0 %459
    %461 = vrot.lane.b32.xlu0 %v372, 96
    %v462 = vpop.permute.xlu0 %461
    %463 = vrot.lane.b32.xlu0 %v378, 96
    %v464 = vpop.permute.xlu0 %463
    %468 = vrot.lane.b32.xlu0 %v368, 64
    %v469 = vpop.permute.xlu0 %468
    %470 = vrot.lane.b32.xlu0 %v372, 64
    %v471 = vpop.permute.xlu0 %470
    %472 = vrot.lane.b32.xlu0 %v378, 64
    %v473 = vpop.permute.xlu0 %472
    %477 = vrot.lane.b32.xlu0 %v368, 32
    %v478 = vpop.permute.xlu0 %477
    %479 = vrot.lane.b32.xlu0 %v372, 32
    %v480 = vpop.permute.xlu0 %479
    %481 = vrot.lane.b32.xlu0 %v378, 32
    %v482 = vpop.permute.xlu0 %481
    %489 = vrot.lane.b32.xlu0 %v370, 96
    %v490 = vpop.permute.xlu0 %489
    %491 = vrot.lane.b32.xlu0 %v374, 96
    %v492 = vpop.permute.xlu0 %491
    %493 = vrot.lane.b32.xlu0 %v380, 96
    %v494 = vpop.permute.xlu0 %493
    %498 = vrot.lane.b32.xlu0 %v370, 64
    %v499 = vpop.permute.xlu0 %498
    %500 = vrot.lane.b32.xlu0 %v374, 64
    %v501 = vpop.permute.xlu0 %500
    %502 = vrot.lane.b32.xlu0 %v380, 64
    %v503 = vpop.permute.xlu0 %502
    %507 = vrot.lane.b32.xlu0 %v370, 32
    %v508 = vpop.permute.xlu0 %507
    %509 = vrot.lane.b32.xlu0 %v374, 32
    %v510 = vpop.permute.xlu0 %509
    %511 = vrot.lane.b32.xlu0 %v380, 32
    %v512 = vpop.permute.xlu0 %511
    %v516 = vpack.c.bf16 %v309, %v305
    %v517 = vpack.c.bf16 %v400, %v315
    %v518 = vpack.c.bf16 %v404, %v402
    %v519 = vpack.c.bf16 %v411, %v409
    %v520 = vpack.c.bf16 %v418, %v413
    %v521 = vpack.c.bf16 %v422, %v420
    %v522 = vpack.c.bf16 %v311, %v307
    %v523 = vpack.c.bf16 %v430, %v317
    %v524 = vpack.c.bf16 %v434, %v432
    %v525 = vpack.c.bf16 %v441, %v439
    %v526 = vpack.c.bf16 %v448, %v443
    %v527 = vpack.c.bf16 %v452, %v450
    %v528 = vpack.c.bf16 %v191, %v191
    %v530 = vlaneseq
    %v531 = vshrl.u32 %v530, 7
    %v532 = vsub.s32 0, %v531
    %v533 = vrot.slane %v77, %v532
    %v536 = vsel %vm260, %v516, 0
    %v539 = vsel %vm260, %v517, 0
    %v542 = vsel %vm260, %v518, 0
    %v545 = vsel %vm260, %v519, 0
    %v548 = vsel %vm260, %v520, 0
    %v551 = vsel %vm260, %v521, 0
    %v554 = vsel %vm260, %v522, 0
    %v557 = vsel %vm260, %v523, 0
    %v560 = vsel %vm260, %v524, 0
    %v563 = vsel %vm260, %v525, 0
    %v566 = vsel %vm260, %v526, 0
    %v569 = vsel %vm260, %v527, 0
    %v572 = vsel %vm260, %v528, 0
    %574 = vmatprep.subr.bf16.mxu0 0
    %575 = vmatpush1.bf16.xpose.msra.mxu0 %v262
    %576 = vmatprep.subr.bf16.mxu0 0
    %577 = vmatpush1.bf16.xpose.msra.mxu0 %v572
    %578 = vmatprep.subr.bf16.mxu0 0
    %579 = vmatpush1.bf16.xpose.msra.mxu0 0
    %580 = vmatprep.subr.bf16.mxu0 0
    %581 = vmatpush1.bf16.xpose.msra.mxu0 0
    %582 = vmatprep.subr.bf16.mxu0 0
    %583 = vmatpush1.bf16.xpose.msra.mxu0 0
    %584 = vmatprep.subr.bf16.mxu0 0
    %585 = vmatpush1.bf16.xpose.msra.mxu0 0
    %586 = vmatprep.subr.bf16.mxu0 0
    %587 = vmatpush1.bf16.xpose.msra.mxu0 0
    %588 = vmatprep.subr.bf16.mxu0 0
    %589 = vmatpush1.bf16.xpose.msra.mxu0 0
    %590 = vmatprep.subr.bf16.mxu0 0
    %591 = vmatpush1.bf16.xpose.msra.mxu0 0
    %592 = vmatprep.subr.bf16.mxu0 0
    %593 = vmatpush1.bf16.xpose.msra.mxu0 0
    %594 = vmatprep.subr.bf16.mxu0 0
    %595 = vmatpush1.bf16.xpose.msra.mxu0 0
    %596 = vmatprep.subr.bf16.mxu0 0
    %597 = vmatpush1.bf16.xpose.msra.mxu0 0
    %598 = vmatprep.subr.bf16.mxu0 0
    %599 = vmatpush1.bf16.xpose.msra.mxu0 0
    %600 = vmatprep.subr.bf16.mxu0 0
    %601 = vmatpush1.bf16.xpose.msra.mxu0 0
    %602 = vmatprep.subr.bf16.mxu0 0
    %603 = vmatpush1.bf16.xpose.msra.mxu0 0
    %604 = vmatprep.subr.bf16.mxu0 0
    %605 = vmatpush1.bf16.xpose.msra.mxu0 0
    %606 = vmatprep.mubr.bf16.mxu0 0
    %607 = vmatmul.mubr.bf16.gmra.mrb[0].mxu0 %v536
    %v608 = vpop.f32.mrb[0].mxu0
    %v609 = vadd.f32 %v533, %v608
    %v610 = vpop.f32.mrb[0].mxu0
    %v611 = vpop.f32.mrb[0].mxu0
    %v612 = vadd.f32 %v533, %v611
    %v613 = vpop.f32.mrb[0].mxu0
    %614 = vmatprep.mubr.bf16.mxu0 0
    %615 = vmatmul.mubr.bf16.gmra.mrb[0].mxu0 %v539
    %v616 = vpop.f32.mrb[0].mxu0
    %v617 = vadd.f32 %v533, %v616
    %v618 = vpop.f32.mrb[0].mxu0
    %v619 = vpop.f32.mrb[0].mxu0
    %v620 = vadd.f32 %v533, %v619
    %v621 = vpop.f32.mrb[0].mxu0
    %622 = vmatprep.mubr.bf16.mxu0 0
    %623 = vmatmul.mubr.bf16.gmra.mrb[0].mxu0 %v542
    %v624 = vpop.f32.mrb[0].mxu0
    %v625 = vadd.f32 %v533, %v624
    %v626 = vpop.f32.mrb[0].mxu0
    %v627 = vpop.f32.mrb[0].mxu0
    %v628 = vadd.f32 %v533, %v627
    %v629 = vpop.f32.mrb[0].mxu0
    %630 = vmatprep.mubr.bf16.mxu0 0
    %631 = vmatmul.mubr.bf16.gmra.mrb[0].mxu0 %v545
    %v632 = vpop.f32.mrb[0].mxu0
    %v633 = vadd.f32 %v533, %v632
    %v634 = vpop.f32.mrb[0].mxu0
    %v635 = vpop.f32.mrb[0].mxu0
    %v636 = vadd.f32 %v533, %v635
    %v637 = vpop.f32.mrb[0].mxu0
    %638 = vmatprep.mubr.bf16.mxu0 0
    %639 = vmatmul.mubr.bf16.gmra.mrb[0].mxu0 %v548
    %v640 = vpop.f32.mrb[0].mxu0
    %v641 = vadd.f32 %v533, %v640
    %v642 = vpop.f32.mrb[0].mxu0
    %v643 = vpop.f32.mrb[0].mxu0
    %v644 = vadd.f32 %v533, %v643
    %v645 = vpop.f32.mrb[0].mxu0
    %646 = vmatprep.mubr.bf16.mxu0 0
    %647 = vmatmul.mubr.bf16.gmra.mrb[0].mxu0 %v551
    %v648 = vpop.f32.mrb[0].mxu0
    %v649 = vadd.f32 %v533, %v648
    %v650 = vpop.f32.mrb[0].mxu0
    %v651 = vpop.f32.mrb[0].mxu0
    %v652 = vadd.f32 %v533, %v651
    %v653 = vpop.f32.mrb[0].mxu0
    %654 = vmatprep.mubr.bf16.mxu0 0
    %655 = vmatmul.mubr.bf16.gmra.mrb[0].mxu0 %v554
    %v656 = vpop.f32.mrb[0].mxu0
    %v657 = vadd.f32 %v533, %v656
    %v658 = vpop.f32.mrb[0].mxu0
    %v659 = vpop.f32.mrb[0].mxu0
    %v660 = vadd.f32 %v533, %v659
    %v661 = vpop.f32.mrb[0].mxu0
    %662 = vmatprep.mubr.bf16.mxu0 0
    %663 = vmatmul.mubr.bf16.gmra.mrb[0].mxu0 %v557
    %v664 = vpop.f32.mrb[0].mxu0
    %v665 = vadd.f32 %v533, %v664
    %v666 = vpop.f32.mrb[0].mxu0
    %v667 = vpop.f32.mrb[0].mxu0
    %v668 = vadd.f32 %v533, %v667
    %v669 = vpop.f32.mrb[0].mxu0
    %670 = vmatprep.mubr.bf16.mxu0 0
    %671 = vmatmul.mubr.bf16.gmra.mrb[0].mxu0 %v560
    %v672 = vpop.f32.mrb[0].mxu0
    %v673 = vadd.f32 %v533, %v672
    %v674 = vpop.f32.mrb[0].mxu0
    %v675 = vpop.f32.mrb[0].mxu0
    %v676 = vadd.f32 %v533, %v675
    %v677 = vpop.f32.mrb[0].mxu0
    %678 = vmatprep.mubr.bf16.mxu0 0
    %679 = vmatmul.mubr.bf16.gmra.mrb[0].mxu0 %v563
    %v680 = vpop.f32.mrb[0].mxu0
    %v681 = vadd.f32 %v533, %v680
    %v682 = vpop.f32.mrb[0].mxu0
    %v683 = vpop.f32.mrb[0].mxu0
    %v684 = vadd.f32 %v533, %v683
    %v685 = vpop.f32.mrb[0].mxu0
    %686 = vmatprep.mubr.bf16.mxu0 0
    %687 = vmatmul.mubr.bf16.gmra.mrb[0].mxu0 %v566
    %v688 = vpop.f32.mrb[0].mxu0
    %v689 = vadd.f32 %v533, %v688
    %v690 = vpop.f32.mrb[0].mxu0
    %v691 = vpop.f32.mrb[0].mxu0
    %v692 = vadd.f32 %v533, %v691
    %v693 = vpop.f32.mrb[0].mxu0
    %694 = vmatprep.mubr.bf16.mxu0 0
    %695 = vmatmul.mubr.bf16.gmra.mrb[0].mxu0 %v569
    %v696 = vpop.f32.mrb[0].mxu0
    %v697 = vadd.f32 %v533, %v696
    %v698 = vpop.f32.mrb[0].mxu0
    %v699 = vpop.f32.mrb[0].mxu0
    %v700 = vadd.f32 %v533, %v699
    %v701 = vpop.f32.mrb[0].mxu0
    %702 = vdwg.mxu0
    %vm703 = vcmask 195584
    %v704 = vsel %vm703, %v609, -inf
    %705 = vmax.xlane.f32.xlu0 %v704
    %v706 = vpop.xlane.xlu0 %705
    %v707 = vsel %vm703, %v612, -inf
    %708 = vmax.xlane.f32.xlu0 %v707
    %v709 = vpop.xlane.xlu0 %708
    %v710 = vsel %vm703, %v617, -inf
    %711 = vmax.xlane.f32.xlu0 %v710
    %v712 = vpop.xlane.xlu0 %711
    %v713 = vsel %vm703, %v620, -inf
    %714 = vmax.xlane.f32.xlu0 %v713
    %v715 = vpop.xlane.xlu0 %714
    %v716 = vsel %vm703, %v625, -inf
    %717 = vmax.xlane.f32.xlu0 %v716
    %v718 = vpop.xlane.xlu0 %717
    %v719 = vsel %vm703, %v628, -inf
    %720 = vmax.xlane.f32.xlu0 %v719
    %v721 = vpop.xlane.xlu0 %720
    %v722 = vsel %vm703, %v633, -inf
    %723 = vmax.xlane.f32.xlu0 %v722
    %v724 = vpop.xlane.xlu0 %723
    %v725 = vsel %vm703, %v636, -inf
    %726 = vmax.xlane.f32.xlu0 %v725
    %v727 = vpop.xlane.xlu0 %726
    %v728 = vsel %vm703, %v641, -inf
    %729 = vmax.xlane.f32.xlu0 %v728
    %v730 = vpop.xlane.xlu0 %729
    %v731 = vsel %vm703, %v644, -inf
    %732 = vmax.xlane.f32.xlu0 %v731
    %v733 = vpop.xlane.xlu0 %732
    %v734 = vsel %vm703, %v649, -inf
    %735 = vmax.xlane.f32.xlu0 %v734
    %v736 = vpop.xlane.xlu0 %735
    %v737 = vsel %vm703, %v652, -inf
    %738 = vmax.xlane.f32.xlu0 %v737
    %v739 = vpop.xlane.xlu0 %738
    %v740 = vsel %vm703, %v657, -inf
    %741 = vmax.xlane.f32.xlu0 %v740
    %v742 = vpop.xlane.xlu0 %741
    %v743 = vsel %vm703, %v660, -inf
    %744 = vmax.xlane.f32.xlu0 %v743
    %v745 = vpop.xlane.xlu0 %744
    %v746 = vsel %vm703, %v665, -inf
    %747 = vmax.xlane.f32.xlu0 %v746
    %v748 = vpop.xlane.xlu0 %747
    %v749 = vsel %vm703, %v668, -inf
    %750 = vmax.xlane.f32.xlu0 %v749
    %v751 = vpop.xlane.xlu0 %750
    %v752 = vsel %vm703, %v673, -inf
    %753 = vmax.xlane.f32.xlu0 %v752
    %v754 = vpop.xlane.xlu0 %753
    %v755 = vsel %vm703, %v676, -inf
    %756 = vmax.xlane.f32.xlu0 %v755
    %v757 = vpop.xlane.xlu0 %756
    %v758 = vsel %vm703, %v681, -inf
    %759 = vmax.xlane.f32.xlu0 %v758
    %v760 = vpop.xlane.xlu0 %759
    %v761 = vsel %vm703, %v684, -inf
    %762 = vmax.xlane.f32.xlu0 %v761
    %v763 = vpop.xlane.xlu0 %762
    %v764 = vsel %vm703, %v689, -inf
    %765 = vmax.xlane.f32.xlu0 %v764
    %v766 = vpop.xlane.xlu0 %765
    %v767 = vsel %vm703, %v692, -inf
    %768 = vmax.xlane.f32.xlu0 %v767
    %v769 = vpop.xlane.xlu0 %768
    %v770 = vsel %vm703, %v697, -inf
    %771 = vmax.xlane.f32.xlu0 %v770
    %v772 = vpop.xlane.xlu0 %771
    %v773 = vsel %vm703, %v700, -inf
    %774 = vmax.xlane.f32.xlu0 %v773
    %v775 = vpop.xlane.xlu0 %774
    %v776 = vsub.f32 %v609, %v706
    %v777 = vsub.f32 %v612, %v709
    %v778 = vsub.f32 %v617, %v712
    %v779 = vsub.f32 %v620, %v715
    %v780 = vsub.f32 %v625, %v718
    %v781 = vsub.f32 %v628, %v721
    %v782 = vsub.f32 %v633, %v724
    %v783 = vsub.f32 %v636, %v727
    %v784 = vsub.f32 %v641, %v730
    %v785 = vsub.f32 %v644, %v733
    %v786 = vsub.f32 %v649, %v736
    %v787 = vsub.f32 %v652, %v739
    %v788 = vsub.f32 %v657, %v742
    %v789 = vsub.f32 %v660, %v745
    %v790 = vsub.f32 %v665, %v748
    %v791 = vsub.f32 %v668, %v751
    %v792 = vsub.f32 %v673, %v754
    %v793 = vsub.f32 %v676, %v757
    %v794 = vsub.f32 %v681, %v760
    %v795 = vsub.f32 %v684, %v763
    %v796 = vsub.f32 %v689, %v766
    %v797 = vsub.f32 %v692, %v769
    %v798 = vsub.f32 %v697, %v772
    %v799 = vsub.f32 %v700, %v775
    %v800 = vmul.f32 %v776, 1.442695
    %v801 = vpow.pop %v800
    %v802 = vmul.f32 %v777, 1.442695
    %v803 = vpow.pop %v802
    %v804 = vmul.f32 %v778, 1.442695
    %v805 = vpow.pop %v804
    %v806 = vmul.f32 %v779, 1.442695
    %v807 = vpow.pop %v806
    %v808 = vmul.f32 %v780, 1.442695
    %v809 = vpow.pop %v808
    %v810 = vmul.f32 %v781, 1.442695
    %v811 = vpow.pop %v810
    %v812 = vmul.f32 %v782, 1.442695
    %v813 = vpow.pop %v812
    %v814 = vmul.f32 %v783, 1.442695
    %v815 = vpow.pop %v814
    %v816 = vmul.f32 %v784, 1.442695
    %v817 = vpow.pop %v816
    %v818 = vmul.f32 %v785, 1.442695
    %v819 = vpow.pop %v818
    %v820 = vmul.f32 %v786, 1.442695
    %v821 = vpow.pop %v820
    %v822 = vmul.f32 %v787, 1.442695
    %v823 = vpow.pop %v822
    %v824 = vmul.f32 %v788, 1.442695
    %v825 = vpow.pop %v824
    %v826 = vmul.f32 %v789, 1.442695
    %v827 = vpow.pop %v826
    %v828 = vmul.f32 %v790, 1.442695
    %v829 = vpow.pop %v828
    %v830 = vmul.f32 %v791, 1.442695
    %v831 = vpow.pop %v830
    %v832 = vmul.f32 %v792, 1.442695
    %v833 = vpow.pop %v832
    %v834 = vmul.f32 %v793, 1.442695
    %v835 = vpow.pop %v834
    %v836 = vmul.f32 %v794, 1.442695
    %v837 = vpow.pop %v836
    %v838 = vmul.f32 %v795, 1.442695
    %v839 = vpow.pop %v838
    %v840 = vmul.f32 %v796, 1.442695
    %v841 = vpow.pop %v840
    %v842 = vmul.f32 %v797, 1.442695
    %v843 = vpow.pop %v842
    %v844 = vmul.f32 %v798, 1.442695
    %v845 = vpow.pop %v844
    %v846 = vmul.f32 %v799, 1.442695
    %v847 = vpow.pop %v846
    %v848 = vsel %vm703, %v801, 0.0
    %849 = vadd.xlane.f32.xlu0 %v848
    %v850 = vpop.xlane.xlu0 %849
    %v851 = vsel %vm703, %v803, 0.0
    %852 = vadd.xlane.f32.xlu0 %v851
    %v853 = vpop.xlane.xlu0 %852
    %v854 = vsel %vm703, %v805, 0.0
    %855 = vadd.xlane.f32.xlu0 %v854
    %v856 = vpop.xlane.xlu0 %855
    %v857 = vsel %vm703, %v807, 0.0
    %858 = vadd.xlane.f32.xlu0 %v857
    %v859 = vpop.xlane.xlu0 %858
    %v860 = vsel %vm703, %v809, 0.0
    %861 = vadd.xlane.f32.xlu0 %v860
    %v862 = vpop.xlane.xlu0 %861
    %v863 = vsel %vm703, %v811, 0.0
    %864 = vadd.xlane.f32.xlu0 %v863
    %v865 = vpop.xlane.xlu0 %864
    %v866 = vsel %vm703, %v813, 0.0
    %867 = vadd.xlane.f32.xlu0 %v866
    %v868 = vpop.xlane.xlu0 %867
    %v869 = vsel %vm703, %v815, 0.0
    %870 = vadd.xlane.f32.xlu0 %v869
    %v871 = vpop.xlane.xlu0 %870
    %v872 = vsel %vm703, %v817, 0.0
    %873 = vadd.xlane.f32.xlu0 %v872
    %v874 = vpop.xlane.xlu0 %873
    %v875 = vsel %vm703, %v819, 0.0
    %876 = vadd.xlane.f32.xlu0 %v875
    %v877 = vpop.xlane.xlu0 %876
    %v878 = vsel %vm703, %v821, 0.0
    %879 = vadd.xlane.f32.xlu0 %v878
    %v880 = vpop.xlane.xlu0 %879
    %v881 = vsel %vm703, %v823, 0.0
    %882 = vadd.xlane.f32.xlu0 %v881
    %v883 = vpop.xlane.xlu0 %882
    %v884 = vsel %vm703, %v825, 0.0
    %885 = vadd.xlane.f32.xlu0 %v884
    %v886 = vpop.xlane.xlu0 %885
    %v887 = vsel %vm703, %v827, 0.0
    %888 = vadd.xlane.f32.xlu0 %v887
    %v889 = vpop.xlane.xlu0 %888
    %v890 = vsel %vm703, %v829, 0.0
    %891 = vadd.xlane.f32.xlu0 %v890
    %v892 = vpop.xlane.xlu0 %891
    %v893 = vsel %vm703, %v831, 0.0
    %894 = vadd.xlane.f32.xlu0 %v893
    %v895 = vpop.xlane.xlu0 %894
    %v896 = vsel %vm703, %v833, 0.0
    %897 = vadd.xlane.f32.xlu0 %v896
    %v898 = vpop.xlane.xlu0 %897
    %v899 = vsel %vm703, %v835, 0.0
    %900 = vadd.xlane.f32.xlu0 %v899
    %v901 = vpop.xlane.xlu0 %900
    %v902 = vsel %vm703, %v837, 0.0
    %903 = vadd.xlane.f32.xlu0 %v902
    %v904 = vpop.xlane.xlu0 %903
    %v905 = vsel %vm703, %v839, 0.0
    %906 = vadd.xlane.f32.xlu0 %v905
    %v907 = vpop.xlane.xlu0 %906
    %v908 = vsel %vm703, %v841, 0.0
    %909 = vadd.xlane.f32.xlu0 %v908
    %v910 = vpop.xlane.xlu0 %909
    %v911 = vsel %vm703, %v843, 0.0
    %912 = vadd.xlane.f32.xlu0 %v911
    %v913 = vpop.xlane.xlu0 %912
    %v914 = vsel %vm703, %v845, 0.0
    %915 = vadd.xlane.f32.xlu0 %v914
    %v916 = vpop.xlane.xlu0 %915
    %v917 = vsel %vm703, %v847, 0.0
    %918 = vadd.xlane.f32.xlu0 %v917
    %v919 = vpop.xlane.xlu0 %918
    %v920 = vrcp.pop %v850
    %v921 = vrcp.pop %v853
    %v922 = vrcp.pop %v856
    %v923 = vrcp.pop %v859
    %v924 = vrcp.pop %v862
    %v925 = vrcp.pop %v865
    %v926 = vrcp.pop %v868
    %v927 = vrcp.pop %v871
    %v928 = vrcp.pop %v874
    %v929 = vrcp.pop %v877
    %v930 = vrcp.pop %v880
    %v931 = vrcp.pop %v883
    %v932 = vrcp.pop %v886
    %v933 = vrcp.pop %v889
    %v934 = vrcp.pop %v892
    %v935 = vrcp.pop %v895
    %v936 = vrcp.pop %v898
    %v937 = vrcp.pop %v901
    %v938 = vrcp.pop %v904
    %v939 = vrcp.pop %v907
    %v940 = vrcp.pop %v910
    %v941 = vrcp.pop %v913
    %v942 = vrcp.pop %v916
    %v943 = vrcp.pop %v919
    %v944 = vmul.f32 %v801, %v920
    %v945 = vmul.f32 %v803, %v921
    %v946 = vmul.f32 %v805, %v922
    %v947 = vmul.f32 %v807, %v923
    %v948 = vmul.f32 %v809, %v924
    %v949 = vmul.f32 %v811, %v925
    %v950 = vmul.f32 %v813, %v926
    %v951 = vmul.f32 %v815, %v927
    %v952 = vmul.f32 %v817, %v928
    %v953 = vmul.f32 %v819, %v929
    %v954 = vmul.f32 %v821, %v930
    %v955 = vmul.f32 %v823, %v931
    %v956 = vmul.f32 %v825, %v932
    %v957 = vmul.f32 %v827, %v933
    %v958 = vmul.f32 %v829, %v934
    %v959 = vmul.f32 %v831, %v935
    %v960 = vmul.f32 %v833, %v936
    %v961 = vmul.f32 %v835, %v937
    %v962 = vmul.f32 %v837, %v938
    %v963 = vmul.f32 %v839, %v939
    %v964 = vmul.f32 %v841, %v940
    %v965 = vmul.f32 %v843, %v941
    %v966 = vmul.f32 %v845, %v942
    %v967 = vmul.f32 %v847, %v943
    %971 = vrot.lane.b32.xlu0 %v947, 24
    %v972 = vpop.permute.xlu0 %971
    %973 = vrot.lane.b32.xlu0 %v948, 24
    %v974 = vpop.permute.xlu0 %973
    %975 = vrot.lane.b32.xlu0 %v949, 24
    %v976 = vpop.permute.xlu0 %975
    %983 = vrot.lane.b32.xlu0 %v950, 48
    %v984 = vpop.permute.xlu0 %983
    %985 = vrot.lane.b32.xlu0 %v951, 48
    %v986 = vpop.permute.xlu0 %985
    %987 = vrot.lane.b32.xlu0 %v952, 48
    %v988 = vpop.permute.xlu0 %987
    %995 = vrot.lane.b32.xlu0 %v953, 72
    %v996 = vpop.permute.xlu0 %995
    %997 = vrot.lane.b32.xlu0 %v954, 72
    %v998 = vpop.permute.xlu0 %997
    %999 = vrot.lane.b32.xlu0 %v955, 72
    %v1000 = vpop.permute.xlu0 %999
    %1007 = vrot.lane.b32.xlu0 %v956, 96
    %v1008 = vpop.permute.xlu0 %1007
    %1009 = vrot.lane.b32.xlu0 %v957, 96
    %v1010 = vpop.permute.xlu0 %1009
    %1011 = vrot.lane.b32.xlu0 %v958, 96
    %v1012 = vpop.permute.xlu0 %1011
    %1019 = vrot.lane.b32.xlu0 %v959, 120
    %v1020 = vpop.permute.xlu0 %1019
    %1021 = vrot.lane.b32.xlu0 %v960, 120
    %v1022 = vpop.permute.xlu0 %1021
    %1023 = vrot.lane.b32.xlu0 %v961, 120
    %v1024 = vpop.permute.xlu0 %1023
    %1031 = vrot.lane.b32.xlu0 %v962, 16
    %v1032 = vpop.permute.xlu0 %1031
    %1033 = vrot.lane.b32.xlu0 %v963, 16
    %v1034 = vpop.permute.xlu0 %1033
    %1035 = vrot.lane.b32.xlu0 %v964, 16
    %v1036 = vpop.permute.xlu0 %1035
    %1043 = vrot.lane.b32.xlu0 %v965, 40
    %v1044 = vpop.permute.xlu0 %1043
    %1045 = vrot.lane.b32.xlu0 %v966, 40
    %v1046 = vpop.permute.xlu0 %1045
    %1047 = vrot.lane.b32.xlu0 %v967, 40
    %v1048 = vpop.permute.xlu0 %1047
    %v1052 = vsel %vm703, %v944, %v972
    %v1053 = vsel %vm703, %v945, %v974
    %v1054 = vsel %vm703, %v946, %v976
    %vm1055 = vcmask 392192
    %v1056 = vsel %vm1055, %v1052, %v984
    %v1057 = vsel %vm1055, %v1053, %v986
    %v1058 = vsel %vm1055, %v1054, %v988
    %vm1059 = vcmask 588800
    %v1060 = vsel %vm1059, %v1056, %v996
    %v1061 = vsel %vm1059, %v1057, %v998
    %v1062 = vsel %vm1059, %v1058, %v1000
    %vm1063 = vcmask 785408
    %v1064 = vsel %vm1063, %v1060, %v1008
    %v1065 = vsel %vm1063, %v1061, %v1010
    %v1066 = vsel %vm1063, %v1062, %v1012
    %vm1067 = vcmask 982016
    %v1068 = vsel %vm1067, %v1064, %v1020
    %v1069 = vsel %vm1067, %v1065, %v1022
    %v1070 = vsel %vm1067, %v1066, %v1024
    %vm1071 = vcmask 130048
    %v1072 = vsel %vm1071, %v1020, %v1032
    %v1073 = vsel %vm1071, %v1022, %v1034
    %v1074 = vsel %vm1071, %v1024, %v1036
    %vm1075 = vcmask 326656
    %v1076 = vsel %vm1075, %v1072, %v1044
    %v1077 = vsel %vm1075, %v1073, %v1046
    %v1078 = vsel %vm1075, %v1074, %v1048
    %v1079 = vpack.c.bf16 %v1069, %v1068
    %v1080 = vpack.c.bf16 %v1077, %v1076
    %v1081 = vpack.c.bf16 %v1070, %v1070
    %v1082 = vpack.c.bf16 %v1078, %v1078
    %v1083 = vpack.c.bf16 %v372, %v368
    %v1084 = vpack.c.bf16 %v460, %v378
    %v1085 = vpack.c.bf16 %v464, %v462
    %v1086 = vpack.c.bf16 %v471, %v469
    %v1087 = vpack.c.bf16 %v478, %v473
    %v1088 = vpack.c.bf16 %v482, %v480
    %v1089 = vpack.c.bf16 %v374, %v370
    %v1090 = vpack.c.bf16 %v490, %v380
    %v1091 = vpack.c.bf16 %v494, %v492
    %v1092 = vpack.c.bf16 %v501, %v499
    %v1093 = vpack.c.bf16 %v508, %v503
    %v1094 = vpack.c.bf16 %v512, %v510
    %vm1095 = vcmask 523264
    %v1097 = vsel %vm1095, %v1080, 0
    %v1100 = vsel %vm1095, %v1082, 0
    %1102 = vmatprep.subr.bf16.mxu0 0
    %1103 = vmatpush1.bf16.msra.mxu0 %v1083
    %1104 = vmatprep.subr.bf16.mxu0 0
    %1105 = vmatpush1.bf16.msra.mxu0 %v1084
    %1106 = vmatprep.subr.bf16.mxu0 0
    %1107 = vmatpush1.bf16.msra.mxu0 %v1085
    %1108 = vmatprep.subr.bf16.mxu0 0
    %1109 = vmatpush1.bf16.msra.mxu0 %v1086
    %1110 = vmatprep.subr.bf16.mxu0 0
    %1111 = vmatpush1.bf16.msra.mxu0 %v1087
    %1112 = vmatprep.subr.bf16.mxu0 0
    %1113 = vmatpush1.bf16.msra.mxu0 %v1088
    %1114 = vmatprep.subr.bf16.mxu0 0
    %1115 = vmatpush1.bf16.msra.mxu0 %v1089
    %1116 = vmatprep.subr.bf16.mxu0 0
    %1117 = vmatpush1.bf16.msra.mxu0 %v1090
    %1118 = vmatprep.subr.bf16.mxu0 0
    %1119 = vmatpush1.bf16.msra.mxu0 %v1091
    %1120 = vmatprep.subr.bf16.mxu0 0
    %1121 = vmatpush1.bf16.msra.mxu0 %v1092
    %1122 = vmatprep.subr.bf16.mxu0 0
    %1123 = vmatpush1.bf16.msra.mxu0 %v1093
    %1124 = vmatprep.subr.bf16.mxu0 0
    %1125 = vmatpush1.bf16.msra.mxu0 %v1094
    %1126 = vmatprep.subr.bf16.mxu0 0
    %1127 = vmatpush1.bf16.msra.mxu0 0
    %1128 = vmatprep.subr.bf16.mxu0 0
    %1129 = vmatpush1.bf16.msra.mxu0 0
    %1130 = vmatprep.subr.bf16.mxu0 0
    %1131 = vmatpush1.bf16.msra.mxu0 0
    %1132 = vmatprep.subr.bf16.mxu0 0
    %1133 = vmatpush1.bf16.msra.mxu0 0
    %1134 = vmatprep.mubr.bf16.mxu0 %v1097
    %1135 = vmatmul.mubr.bf16.gmra.mrb[0].mxu0 %v1079
    %v1136 = vpop.f32.mrb[0].mxu0
    %v1137 = vadd.f32 0.0, %v1136
    %v1138 = vpop.f32.mrb[0].mxu0
    %v1139 = vpop.f32.mrb[0].mxu0
    %v1140 = vadd.f32 0.0, %v1139
    %v1141 = vpop.f32.mrb[0].mxu0
    %1142 = vmatprep.mubr.bf16.mxu0 %v1100
    %1143 = vmatmul.mubr.bf16.gmra.mrb[0].mxu0 %v1081
    %v1144 = vpop.f32.mrb[0].mxu0
    %v1145 = vadd.f32 0.0, %v1144
    %v1146 = vpop.f32.mrb[0].mxu0
    %v1147 = vpop.f32.mrb[0].mxu0
    %v1148 = vpop.f32.mrb[0].mxu0
    %1149 = vdwg.mxu0
    %v1150 = vadd.f32 %v181, %v1137
    %v1151 = vadd.f32 %v186, %v1140
    %v1152 = vadd.f32 %v191, %v1145
    %1156 = vrot.lane.b32.xlu0 %v319, 96
    %v1157 = vpop.permute.xlu0 %1156
    %1158 = vrot.lane.b32.xlu0 %v325, 96
    %v1159 = vpop.permute.xlu0 %1158
    %1160 = vrot.lane.b32.xlu0 %v329, 96
    %v1161 = vpop.permute.xlu0 %1160
    %1165 = vrot.lane.b32.xlu0 %v319, 64
    %v1166 = vpop.permute.xlu0 %1165
    %1167 = vrot.lane.b32.xlu0 %v325, 64
    %v1168 = vpop.permute.xlu0 %1167
    %1169 = vrot.lane.b32.xlu0 %v329, 64
    %v1170 = vpop.permute.xlu0 %1169
    %1174 = vrot.lane.b32.xlu0 %v319, 32
    %v1175 = vpop.permute.xlu0 %1174
    %1176 = vrot.lane.b32.xlu0 %v325, 32
    %v1177 = vpop.permute.xlu0 %1176
    %1178 = vrot.lane.b32.xlu0 %v329, 32
    %v1179 = vpop.permute.xlu0 %1178
    %1186 = vrot.lane.b32.xlu0 %v321, 96
    %v1187 = vpop.permute.xlu0 %1186
    %1188 = vrot.lane.b32.xlu0 %v327, 96
    %v1189 = vpop.permute.xlu0 %1188
    %1190 = vrot.lane.b32.xlu0 %v331, 96
    %v1191 = vpop.permute.xlu0 %1190
    %1195 = vrot.lane.b32.xlu0 %v321, 64
    %v1196 = vpop.permute.xlu0 %1195
    %1197 = vrot.lane.b32.xlu0 %v327, 64
    %v1198 = vpop.permute.xlu0 %1197
    %1199 = vrot.lane.b32.xlu0 %v331, 64
    %v1200 = vpop.permute.xlu0 %1199
    %1204 = vrot.lane.b32.xlu0 %v321, 32
    %v1205 = vpop.permute.xlu0 %1204
    %1206 = vrot.lane.b32.xlu0 %v327, 32
    %v1207 = vpop.permute.xlu0 %1206
    %1208 = vrot.lane.b32.xlu0 %v331, 32
    %v1209 = vpop.permute.xlu0 %1208
    %1216 = vrot.lane.b32.xlu0 %v382, 96
    %v1217 = vpop.permute.xlu0 %1216
    %1218 = vrot.lane.b32.xlu0 %v388, 96
    %v1219 = vpop.permute.xlu0 %1218
    %1220 = vrot.lane.b32.xlu0 %v392, 96
    %v1221 = vpop.permute.xlu0 %1220
    %1225 = vrot.lane.b32.xlu0 %v382, 64
    %v1226 = vpop.permute.xlu0 %1225
    %1227 = vrot.lane.b32.xlu0 %v388, 64
    %v1228 = vpop.permute.xlu0 %1227
    %1229 = vrot.lane.b32.xlu0 %v392, 64
    %v1230 = vpop.permute.xlu0 %1229
    %1234 = vrot.lane.b32.xlu0 %v382, 32
    %v1235 = vpop.permute.xlu0 %1234
    %1236 = vrot.lane.b32.xlu0 %v388, 32
    %v1237 = vpop.permute.xlu0 %1236
    %1238 = vrot.lane.b32.xlu0 %v392, 32
    %v1239 = vpop.permute.xlu0 %1238
    %1246 = vrot.lane.b32.xlu0 %v384, 96
    %v1247 = vpop.permute.xlu0 %1246
    %1248 = vrot.lane.b32.xlu0 %v390, 96
    %v1249 = vpop.permute.xlu0 %1248
    %1250 = vrot.lane.b32.xlu0 %v394, 96
    %v1251 = vpop.permute.xlu0 %1250
    %1255 = vrot.lane.b32.xlu0 %v384, 64
    %v1256 = vpop.permute.xlu0 %1255
    %1257 = vrot.lane.b32.xlu0 %v390, 64
    %v1258 = vpop.permute.xlu0 %1257
    %1259 = vrot.lane.b32.xlu0 %v394, 64
    %v1260 = vpop.permute.xlu0 %1259
    %1264 = vrot.lane.b32.xlu0 %v384, 32
    %v1265 = vpop.permute.xlu0 %1264
    %1266 = vrot.lane.b32.xlu0 %v390, 32
    %v1267 = vpop.permute.xlu0 %1266
    %1268 = vrot.lane.b32.xlu0 %v394, 32
    %v1269 = vpop.permute.xlu0 %1268
    %v1273 = vpack.c.bf16 %v325, %v319
    %v1274 = vpack.c.bf16 %v1157, %v329
    %v1275 = vpack.c.bf16 %v1161, %v1159
    %v1276 = vpack.c.bf16 %v1168, %v1166
    %v1277 = vpack.c.bf16 %v1175, %v1170
    %v1278 = vpack.c.bf16 %v1179, %v1177
    %v1279 = vpack.c.bf16 %v327, %v321
    %v1280 = vpack.c.bf16 %v1187, %v331
    %v1281 = vpack.c.bf16 %v1191, %v1189
    %v1282 = vpack.c.bf16 %v1198, %v1196
    %v1283 = vpack.c.bf16 %v1205, %v1200
    %v1284 = vpack.c.bf16 %v1209, %v1207
    %v1285 = vpack.c.bf16 %v201, %v196
    %v1286 = vpack.c.bf16 %v206, %v206
    %v1288 = vsel %vm260, %v1273, 0
    %v1291 = vsel %vm260, %v1274, 0
    %v1294 = vsel %vm260, %v1275, 0
    %v1297 = vsel %vm260, %v1276, 0
    %v1300 = vsel %vm260, %v1277, 0
    %v1303 = vsel %vm260, %v1278, 0
    %v1306 = vsel %vm260, %v1279, 0
    %v1309 = vsel %vm260, %v1280, 0
    %v1312 = vsel %vm260, %v1281, 0
    %v1315 = vsel %vm260, %v1282, 0
    %v1318 = vsel %vm260, %v1283, 0
    %v1321 = vsel %vm260, %v1284, 0
    %v1324 = vsel %vm260, %v1285, 0
    %v1327 = vsel %vm260, %v1286, 0
    %1329 = vmatprep.subr.bf16.mxu0 0
    %1330 = vmatpush1.bf16.xpose.msra.mxu0 %v1324
    %1331 = vmatprep.subr.bf16.mxu0 0
    %1332 = vmatpush1.bf16.xpose.msra.mxu0 %v1327
    %1333 = vmatprep.subr.bf16.mxu0 0
    %1334 = vmatpush1.bf16.xpose.msra.mxu0 0
    %1335 = vmatprep.subr.bf16.mxu0 0
    %1336 = vmatpush1.bf16.xpose.msra.mxu0 0
    %1337 = vmatprep.subr.bf16.mxu0 0
    %1338 = vmatpush1.bf16.xpose.msra.mxu0 0
    %1339 = vmatprep.subr.bf16.mxu0 0
    %1340 = vmatpush1.bf16.xpose.msra.mxu0 0
    %1341 = vmatprep.subr.bf16.mxu0 0
    %1342 = vmatpush1.bf16.xpose.msra.mxu0 0
    %1343 = vmatprep.subr.bf16.mxu0 0
    %1344 = vmatpush1.bf16.xpose.msra.mxu0 0
    %1345 = vmatprep.subr.bf16.mxu0 0
    %1346 = vmatpush1.bf16.xpose.msra.mxu0 0
    %1347 = vmatprep.subr.bf16.mxu0 0
    %1348 = vmatpush1.bf16.xpose.msra.mxu0 0
    %1349 = vmatprep.subr.bf16.mxu0 0
    %1350 = vmatpush1.bf16.xpose.msra.mxu0 0
    %1351 = vmatprep.subr.bf16.mxu0 0
    %1352 = vmatpush1.bf16.xpose.msra.mxu0 0
    %1353 = vmatprep.subr.bf16.mxu0 0
    %1354 = vmatpush1.bf16.xpose.msra.mxu0 0
    %1355 = vmatprep.subr.bf16.mxu0 0
    %1356 = vmatpush1.bf16.xpose.msra.mxu0 0
    %1357 = vmatprep.subr.bf16.mxu0 0
    %1358 = vmatpush1.bf16.xpose.msra.mxu0 0
    %1359 = vmatprep.subr.bf16.mxu0 0
    %1360 = vmatpush1.bf16.xpose.msra.mxu0 0
    %1361 = vmatprep.mubr.bf16.mxu0 0
    %1362 = vmatmul.mubr.bf16.gmra.mrb[0].mxu0 %v1288
    %v1363 = vpop.f32.mrb[0].mxu0
    %v1364 = vadd.f32 %v533, %v1363
    %v1365 = vpop.f32.mrb[0].mxu0
    %v1366 = vpop.f32.mrb[0].mxu0
    %v1367 = vadd.f32 %v533, %v1366
    %v1368 = vpop.f32.mrb[0].mxu0
    %1369 = vmatprep.mubr.bf16.mxu0 0
    %1370 = vmatmul.mubr.bf16.gmra.mrb[0].mxu0 %v1291
    %v1371 = vpop.f32.mrb[0].mxu0
    %v1372 = vadd.f32 %v533, %v1371
    %v1373 = vpop.f32.mrb[0].mxu0
    %v1374 = vpop.f32.mrb[0].mxu0
    %v1375 = vadd.f32 %v533, %v1374
    %v1376 = vpop.f32.mrb[0].mxu0
    %1377 = vmatprep.mubr.bf16.mxu0 0
    %1378 = vmatmul.mubr.bf16.gmra.mrb[0].mxu0 %v1294
    %v1379 = vpop.f32.mrb[0].mxu0
    %v1380 = vadd.f32 %v533, %v1379
    %v1381 = vpop.f32.mrb[0].mxu0
    %v1382 = vpop.f32.mrb[0].mxu0
    %v1383 = vadd.f32 %v533, %v1382
    %v1384 = vpop.f32.mrb[0].mxu0
    %1385 = vmatprep.mubr.bf16.mxu0 0
    %1386 = vmatmul.mubr.bf16.gmra.mrb[0].mxu0 %v1297
    %v1387 = vpop.f32.mrb[0].mxu0
    %v1388 = vadd.f32 %v533, %v1387
    %v1389 = vpop.f32.mrb[0].mxu0
    %v1390 = vpop.f32.mrb[0].mxu0
    %v1391 = vadd.f32 %v533, %v1390
    %v1392 = vpop.f32.mrb[0].mxu0
    %1393 = vmatprep.mubr.bf16.mxu0 0
    %1394 = vmatmul.mubr.bf16.gmra.mrb[0].mxu0 %v1300
    %v1395 = vpop.f32.mrb[0].mxu0
    %v1396 = vadd.f32 %v533, %v1395
    %v1397 = vpop.f32.mrb[0].mxu0
    %v1398 = vpop.f32.mrb[0].mxu0
    %v1399 = vadd.f32 %v533, %v1398
    %v1400 = vpop.f32.mrb[0].mxu0
    %1401 = vmatprep.mubr.bf16.mxu0 0
    %1402 = vmatmul.mubr.bf16.gmra.mrb[0].mxu0 %v1303
    %v1403 = vpop.f32.mrb[0].mxu0
    %v1404 = vadd.f32 %v533, %v1403
    %v1405 = vpop.f32.mrb[0].mxu0
    %v1406 = vpop.f32.mrb[0].mxu0
    %v1407 = vadd.f32 %v533, %v1406
    %v1408 = vpop.f32.mrb[0].mxu0
    %1409 = vmatprep.mubr.bf16.mxu0 0
    %1410 = vmatmul.mubr.bf16.gmra.mrb[0].mxu0 %v1306
    %v1411 = vpop.f32.mrb[0].mxu0
    %v1412 = vadd.f32 %v533, %v1411
    %v1413 = vpop.f32.mrb[0].mxu0
    %v1414 = vpop.f32.mrb[0].mxu0
    %v1415 = vadd.f32 %v533, %v1414
    %v1416 = vpop.f32.mrb[0].mxu0
    %1417 = vmatprep.mubr.bf16.mxu0 0
    %1418 = vmatmul.mubr.bf16.gmra.mrb[0].mxu0 %v1309
    %v1419 = vpop.f32.mrb[0].mxu0
    %v1420 = vadd.f32 %v533, %v1419
    %v1421 = vpop.f32.mrb[0].mxu0
    %v1422 = vpop.f32.mrb[0].mxu0
    %v1423 = vadd.f32 %v533, %v1422
    %v1424 = vpop.f32.mrb[0].mxu0
    %1425 = vmatprep.mubr.bf16.mxu0 0
    %1426 = vmatmul.mubr.bf16.gmra.mrb[0].mxu0 %v1312
    %v1427 = vpop.f32.mrb[0].mxu0
    %v1428 = vadd.f32 %v533, %v1427
    %v1429 = vpop.f32.mrb[0].mxu0
    %v1430 = vpop.f32.mrb[0].mxu0
    %v1431 = vadd.f32 %v533, %v1430
    %v1432 = vpop.f32.mrb[0].mxu0
    %1433 = vmatprep.mubr.bf16.mxu0 0
    %1434 = vmatmul.mubr.bf16.gmra.mrb[0].mxu0 %v1315
    %v1435 = vpop.f32.mrb[0].mxu0
    %v1436 = vadd.f32 %v533, %v1435
    %v1437 = vpop.f32.mrb[0].mxu0
    %v1438 = vpop.f32.mrb[0].mxu0
    %v1439 = vadd.f32 %v533, %v1438
    %v1440 = vpop.f32.mrb[0].mxu0
    %1441 = vmatprep.mubr.bf16.mxu0 0
    %1442 = vmatmul.mubr.bf16.gmra.mrb[0].mxu0 %v1318
    %v1443 = vpop.f32.mrb[0].mxu0
    %v1444 = vadd.f32 %v533, %v1443
    %v1445 = vpop.f32.mrb[0].mxu0
    %v1446 = vpop.f32.mrb[0].mxu0
    %v1447 = vadd.f32 %v533, %v1446
    %v1448 = vpop.f32.mrb[0].mxu0
    %1449 = vmatprep.mubr.bf16.mxu0 0
    %1450 = vmatmul.mubr.bf16.gmra.mrb[0].mxu0 %v1321
    %v1451 = vpop.f32.mrb[0].mxu0
    %v1452 = vadd.f32 %v533, %v1451
    %v1453 = vpop.f32.mrb[0].mxu0
    %v1454 = vpop.f32.mrb[0].mxu0
    %v1455 = vadd.f32 %v533, %v1454
    %v1456 = vpop.f32.mrb[0].mxu0
    %1457 = vdwg.mxu0
    %v1458 = vsel %vm703, %v1364, -inf
    %1459 = vmax.xlane.f32.xlu0 %v1458
    %v1460 = vpop.xlane.xlu0 %1459
    %v1461 = vsel %vm703, %v1367, -inf
    %1462 = vmax.xlane.f32.xlu0 %v1461
    %v1463 = vpop.xlane.xlu0 %1462
    %v1464 = vsel %vm703, %v1372, -inf
    %1465 = vmax.xlane.f32.xlu0 %v1464
    %v1466 = vpop.xlane.xlu0 %1465
    %v1467 = vsel %vm703, %v1375, -inf
    %1468 = vmax.xlane.f32.xlu0 %v1467
    %v1469 = vpop.xlane.xlu0 %1468
    %v1470 = vsel %vm703, %v1380, -inf
    %1471 = vmax.xlane.f32.xlu0 %v1470
    %v1472 = vpop.xlane.xlu0 %1471
    %v1473 = vsel %vm703, %v1383, -inf
    %1474 = vmax.xlane.f32.xlu0 %v1473
    %v1475 = vpop.xlane.xlu0 %1474
    %v1476 = vsel %vm703, %v1388, -inf
    %1477 = vmax.xlane.f32.xlu0 %v1476
    %v1478 = vpop.xlane.xlu0 %1477
    %v1479 = vsel %vm703, %v1391, -inf
    %1480 = vmax.xlane.f32.xlu0 %v1479
    %v1481 = vpop.xlane.xlu0 %1480
    %v1482 = vsel %vm703, %v1396, -inf
    %1483 = vmax.xlane.f32.xlu0 %v1482
    %v1484 = vpop.xlane.xlu0 %1483
    %v1485 = vsel %vm703, %v1399, -inf
    %1486 = vmax.xlane.f32.xlu0 %v1485
    %v1487 = vpop.xlane.xlu0 %1486
    %v1488 = vsel %vm703, %v1404, -inf
    %1489 = vmax.xlane.f32.xlu0 %v1488
    %v1490 = vpop.xlane.xlu0 %1489
    %v1491 = vsel %vm703, %v1407, -inf
    %1492 = vmax.xlane.f32.xlu0 %v1491
    %v1493 = vpop.xlane.xlu0 %1492
    %v1494 = vsel %vm703, %v1412, -inf
    %1495 = vmax.xlane.f32.xlu0 %v1494
    %v1496 = vpop.xlane.xlu0 %1495
    %v1497 = vsel %vm703, %v1415, -inf
    %1498 = vmax.xlane.f32.xlu0 %v1497
    %v1499 = vpop.xlane.xlu0 %1498
    %v1500 = vsel %vm703, %v1420, -inf
    %1501 = vmax.xlane.f32.xlu0 %v1500
    %v1502 = vpop.xlane.xlu0 %1501
    %v1503 = vsel %vm703, %v1423, -inf
    %1504 = vmax.xlane.f32.xlu0 %v1503
    %v1505 = vpop.xlane.xlu0 %1504
    %v1506 = vsel %vm703, %v1428, -inf
    %1507 = vmax.xlane.f32.xlu0 %v1506
    %v1508 = vpop.xlane.xlu0 %1507
    %v1509 = vsel %vm703, %v1431, -inf
    %1510 = vmax.xlane.f32.xlu0 %v1509
    %v1511 = vpop.xlane.xlu0 %1510
    %v1512 = vsel %vm703, %v1436, -inf
    %1513 = vmax.xlane.f32.xlu0 %v1512
    %v1514 = vpop.xlane.xlu0 %1513
    %v1515 = vsel %vm703, %v1439, -inf
    %1516 = vmax.xlane.f32.xlu0 %v1515
    %v1517 = vpop.xlane.xlu0 %1516
    %v1518 = vsel %vm703, %v1444, -inf
    %1519 = vmax.xlane.f32.xlu0 %v1518
    %v1520 = vpop.xlane.xlu0 %1519
    %v1521 = vsel %vm703, %v1447, -inf
    %1522 = vmax.xlane.f32.xlu0 %v1521
    %v1523 = vpop.xlane.xlu0 %1522
    %v1524 = vsel %vm703, %v1452, -inf
    %1525 = vmax.xlane.f32.xlu0 %v1524
    %v1526 = vpop.xlane.xlu0 %1525
    %v1527 = vsel %vm703, %v1455, -inf
    %1528 = vmax.xlane.f32.xlu0 %v1527
    %v1529 = vpop.xlane.xlu0 %1528
    %v1530 = vsub.f32 %v1364, %v1460
    %v1531 = vsub.f32 %v1367, %v1463
    %v1532 = vsub.f32 %v1372, %v1466
    %v1533 = vsub.f32 %v1375, %v1469
    %v1534 = vsub.f32 %v1380, %v1472
    %v1535 = vsub.f32 %v1383, %v1475
    %v1536 = vsub.f32 %v1388, %v1478
    %v1537 = vsub.f32 %v1391, %v1481
    %v1538 = vsub.f32 %v1396, %v1484
    %v1539 = vsub.f32 %v1399, %v1487
    %v1540 = vsub.f32 %v1404, %v1490
    %v1541 = vsub.f32 %v1407, %v1493
    %v1542 = vsub.f32 %v1412, %v1496
    %v1543 = vsub.f32 %v1415, %v1499
    %v1544 = vsub.f32 %v1420, %v1502
    %v1545 = vsub.f32 %v1423, %v1505
    %v1546 = vsub.f32 %v1428, %v1508
    %v1547 = vsub.f32 %v1431, %v1511
    %v1548 = vsub.f32 %v1436, %v1514
    %v1549 = vsub.f32 %v1439, %v1517
    %v1550 = vsub.f32 %v1444, %v1520
    %v1551 = vsub.f32 %v1447, %v1523
    %v1552 = vsub.f32 %v1452, %v1526
    %v1553 = vsub.f32 %v1455, %v1529
    %v1554 = vmul.f32 %v1530, 1.442695
    %v1555 = vpow.pop %v1554
    %v1556 = vmul.f32 %v1531, 1.442695
    %v1557 = vpow.pop %v1556
    %v1558 = vmul.f32 %v1532, 1.442695
    %v1559 = vpow.pop %v1558
    %v1560 = vmul.f32 %v1533, 1.442695
    %v1561 = vpow.pop %v1560
    %v1562 = vmul.f32 %v1534, 1.442695
    %v1563 = vpow.pop %v1562
    %v1564 = vmul.f32 %v1535, 1.442695
    %v1565 = vpow.pop %v1564
    %v1566 = vmul.f32 %v1536, 1.442695
    %v1567 = vpow.pop %v1566
    %v1568 = vmul.f32 %v1537, 1.442695
    %v1569 = vpow.pop %v1568
    %v1570 = vmul.f32 %v1538, 1.442695
    %v1571 = vpow.pop %v1570
    %v1572 = vmul.f32 %v1539, 1.442695
    %v1573 = vpow.pop %v1572
    %v1574 = vmul.f32 %v1540, 1.442695
    %v1575 = vpow.pop %v1574
    %v1576 = vmul.f32 %v1541, 1.442695
    %v1577 = vpow.pop %v1576
    %v1578 = vmul.f32 %v1542, 1.442695
    %v1579 = vpow.pop %v1578
    %v1580 = vmul.f32 %v1543, 1.442695
    %v1581 = vpow.pop %v1580
    %v1582 = vmul.f32 %v1544, 1.442695
    %v1583 = vpow.pop %v1582
    %v1584 = vmul.f32 %v1545, 1.442695
    %v1585 = vpow.pop %v1584
    %v1586 = vmul.f32 %v1546, 1.442695
    %v1587 = vpow.pop %v1586
    %v1588 = vmul.f32 %v1547, 1.442695
    %v1589 = vpow.pop %v1588
    %v1590 = vmul.f32 %v1548, 1.442695
    %v1591 = vpow.pop %v1590
    %v1592 = vmul.f32 %v1549, 1.442695
    %v1593 = vpow.pop %v1592
    %v1594 = vmul.f32 %v1550, 1.442695
    %v1595 = vpow.pop %v1594
    %v1596 = vmul.f32 %v1551, 1.442695
    %v1597 = vpow.pop %v1596
    %v1598 = vmul.f32 %v1552, 1.442695
    %v1599 = vpow.pop %v1598
    %v1600 = vmul.f32 %v1553, 1.442695
    %v1601 = vpow.pop %v1600
    %v1602 = vsel %vm703, %v1555, 0.0
    %1603 = vadd.xlane.f32.xlu0 %v1602
    %v1604 = vpop.xlane.xlu0 %1603
    %v1605 = vsel %vm703, %v1557, 0.0
    %1606 = vadd.xlane.f32.xlu0 %v1605
    %v1607 = vpop.xlane.xlu0 %1606
    %v1608 = vsel %vm703, %v1559, 0.0
    %1609 = vadd.xlane.f32.xlu0 %v1608
    %v1610 = vpop.xlane.xlu0 %1609
    %v1611 = vsel %vm703, %v1561, 0.0
    %1612 = vadd.xlane.f32.xlu0 %v1611
    %v1613 = vpop.xlane.xlu0 %1612
    %v1614 = vsel %vm703, %v1563, 0.0
    %1615 = vadd.xlane.f32.xlu0 %v1614
    %v1616 = vpop.xlane.xlu0 %1615
    %v1617 = vsel %vm703, %v1565, 0.0
    %1618 = vadd.xlane.f32.xlu0 %v1617
    %v1619 = vpop.xlane.xlu0 %1618
    %v1620 = vsel %vm703, %v1567, 0.0
    %1621 = vadd.xlane.f32.xlu0 %v1620
    %v1622 = vpop.xlane.xlu0 %1621
    %v1623 = vsel %vm703, %v1569, 0.0
    %1624 = vadd.xlane.f32.xlu0 %v1623
    %v1625 = vpop.xlane.xlu0 %1624
    %v1626 = vsel %vm703, %v1571, 0.0
    %1627 = vadd.xlane.f32.xlu0 %v1626
    %v1628 = vpop.xlane.xlu0 %1627
    %v1629 = vsel %vm703, %v1573, 0.0
    %1630 = vadd.xlane.f32.xlu0 %v1629
    %v1631 = vpop.xlane.xlu0 %1630
    %v1632 = vsel %vm703, %v1575, 0.0
    %1633 = vadd.xlane.f32.xlu0 %v1632
    %v1634 = vpop.xlane.xlu0 %1633
    %v1635 = vsel %vm703, %v1577, 0.0
    %1636 = vadd.xlane.f32.xlu0 %v1635
    %v1637 = vpop.xlane.xlu0 %1636
    %v1638 = vsel %vm703, %v1579, 0.0
    %1639 = vadd.xlane.f32.xlu0 %v1638
    %v1640 = vpop.xlane.xlu0 %1639
    %v1641 = vsel %vm703, %v1581, 0.0
    %1642 = vadd.xlane.f32.xlu0 %v1641
    %v1643 = vpop.xlane.xlu0 %1642
    %v1644 = vsel %vm703, %v1583, 0.0
    %1645 = vadd.xlane.f32.xlu0 %v1644
    %v1646 = vpop.xlane.xlu0 %1645
    %v1647 = vsel %vm703, %v1585, 0.0
    %1648 = vadd.xlane.f32.xlu0 %v1647
    %v1649 = vpop.xlane.xlu0 %1648
    %v1650 = vsel %vm703, %v1587, 0.0
    %1651 = vadd.xlane.f32.xlu0 %v1650
    %v1652 = vpop.xlane.xlu0 %1651
    %v1653 = vsel %vm703, %v1589, 0.0
    %1654 = vadd.xlane.f32.xlu0 %v1653
    %v1655 = vpop.xlane.xlu0 %1654
    %v1656 = vsel %vm703, %v1591, 0.0
    %1657 = vadd.xlane.f32.xlu0 %v1656
    %v1658 = vpop.xlane.xlu0 %1657
    %v1659 = vsel %vm703, %v1593, 0.0
    %1660 = vadd.xlane.f32.xlu0 %v1659
    %v1661 = vpop.xlane.xlu0 %1660
    %v1662 = vsel %vm703, %v1595, 0.0
    %1663 = vadd.xlane.f32.xlu0 %v1662
    %v1664 = vpop.xlane.xlu0 %1663
    %v1665 = vsel %vm703, %v1597, 0.0
    %1666 = vadd.xlane.f32.xlu0 %v1665
    %v1667 = vpop.xlane.xlu0 %1666
    %v1668 = vsel %vm703, %v1599, 0.0
    %1669 = vadd.xlane.f32.xlu0 %v1668
    %v1670 = vpop.xlane.xlu0 %1669
    %v1671 = vsel %vm703, %v1601, 0.0
    %1672 = vadd.xlane.f32.xlu0 %v1671
    %v1673 = vpop.xlane.xlu0 %1672
    %v1674 = vrcp.pop %v1604
    %v1675 = vrcp.pop %v1607
    %v1676 = vrcp.pop %v1610
    %v1677 = vrcp.pop %v1613
    %v1678 = vrcp.pop %v1616
    %v1679 = vrcp.pop %v1619
    %v1680 = vrcp.pop %v1622
    %v1681 = vrcp.pop %v1625
    %v1682 = vrcp.pop %v1628
    %v1683 = vrcp.pop %v1631
    %v1684 = vrcp.pop %v1634
    %v1685 = vrcp.pop %v1637
    %v1686 = vrcp.pop %v1640
    %v1687 = vrcp.pop %v1643
    %v1688 = vrcp.pop %v1646
    %v1689 = vrcp.pop %v1649
    %v1690 = vrcp.pop %v1652
    %v1691 = vrcp.pop %v1655
    %v1692 = vrcp.pop %v1658
    %v1693 = vrcp.pop %v1661
    %v1694 = vrcp.pop %v1664
    %v1695 = vrcp.pop %v1667
    %v1696 = vrcp.pop %v1670
    %v1697 = vrcp.pop %v1673
    %v1698 = vmul.f32 %v1555, %v1674
    %v1699 = vmul.f32 %v1557, %v1675
    %v1700 = vmul.f32 %v1559, %v1676
    %v1701 = vmul.f32 %v1561, %v1677
    %v1702 = vmul.f32 %v1563, %v1678
    %v1703 = vmul.f32 %v1565, %v1679
    %v1704 = vmul.f32 %v1567, %v1680
    %v1705 = vmul.f32 %v1569, %v1681
    %v1706 = vmul.f32 %v1571, %v1682
    %v1707 = vmul.f32 %v1573, %v1683
    %v1708 = vmul.f32 %v1575, %v1684
    %v1709 = vmul.f32 %v1577, %v1685
    %v1710 = vmul.f32 %v1579, %v1686
    %v1711 = vmul.f32 %v1581, %v1687
    %v1712 = vmul.f32 %v1583, %v1688
    %v1713 = vmul.f32 %v1585, %v1689
    %v1714 = vmul.f32 %v1587, %v1690
    %v1715 = vmul.f32 %v1589, %v1691
    %v1716 = vmul.f32 %v1591, %v1692
    %v1717 = vmul.f32 %v1593, %v1693
    %v1718 = vmul.f32 %v1595, %v1694
    %v1719 = vmul.f32 %v1597, %v1695
    %v1720 = vmul.f32 %v1599, %v1696
    %v1721 = vmul.f32 %v1601, %v1697
    %1725 = vrot.lane.b32.xlu0 %v1701, 24
    %v1726 = vpop.permute.xlu0 %1725
    %1727 = vrot.lane.b32.xlu0 %v1702, 24
    %v1728 = vpop.permute.xlu0 %1727
    %1729 = vrot.lane.b32.xlu0 %v1703, 24
    %v1730 = vpop.permute.xlu0 %1729
    %1737 = vrot.lane.b32.xlu0 %v1704, 48
    %v1738 = vpop.permute.xlu0 %1737
    %1739 = vrot.lane.b32.xlu0 %v1705, 48
    %v1740 = vpop.permute.xlu0 %1739
    %1741 = vrot.lane.b32.xlu0 %v1706, 48
    %v1742 = vpop.permute.xlu0 %1741
    %1749 = vrot.lane.b32.xlu0 %v1707, 72
    %v1750 = vpop.permute.xlu0 %1749
    %1751 = vrot.lane.b32.xlu0 %v1708, 72
    %v1752 = vpop.permute.xlu0 %1751
    %1753 = vrot.lane.b32.xlu0 %v1709, 72
    %v1754 = vpop.permute.xlu0 %1753
    %1761 = vrot.lane.b32.xlu0 %v1710, 96
    %v1762 = vpop.permute.xlu0 %1761
    %1763 = vrot.lane.b32.xlu0 %v1711, 96
    %v1764 = vpop.permute.xlu0 %1763
    %1765 = vrot.lane.b32.xlu0 %v1712, 96
    %v1766 = vpop.permute.xlu0 %1765
    %1773 = vrot.lane.b32.xlu0 %v1713, 120
    %v1774 = vpop.permute.xlu0 %1773
    %1775 = vrot.lane.b32.xlu0 %v1714, 120
    %v1776 = vpop.permute.xlu0 %1775
    %1777 = vrot.lane.b32.xlu0 %v1715, 120
    %v1778 = vpop.permute.xlu0 %1777
    %1785 = vrot.lane.b32.xlu0 %v1716, 16
    %v1786 = vpop.permute.xlu0 %1785
    %1787 = vrot.lane.b32.xlu0 %v1717, 16
    %v1788 = vpop.permute.xlu0 %1787
    %1789 = vrot.lane.b32.xlu0 %v1718, 16
    %v1790 = vpop.permute.xlu0 %1789
    %1797 = vrot.lane.b32.xlu0 %v1719, 40
    %v1798 = vpop.permute.xlu0 %1797
    %1799 = vrot.lane.b32.xlu0 %v1720, 40
    %v1800 = vpop.permute.xlu0 %1799
    %1801 = vrot.lane.b32.xlu0 %v1721, 40
    %v1802 = vpop.permute.xlu0 %1801
    %v1806 = vsel %vm703, %v1698, %v1726
    %v1807 = vsel %vm703, %v1699, %v1728
    %v1808 = vsel %vm703, %v1700, %v1730
    %v1809 = vsel %vm1055, %v1806, %v1738
    %v1810 = vsel %vm1055, %v1807, %v1740
    %v1811 = vsel %vm1055, %v1808, %v1742
    %v1812 = vsel %vm1059, %v1809, %v1750
    %v1813 = vsel %vm1059, %v1810, %v1752
    %v1814 = vsel %vm1059, %v1811, %v1754
    %v1815 = vsel %vm1063, %v1812, %v1762
    %v1816 = vsel %vm1063, %v1813, %v1764
    %v1817 = vsel %vm1063, %v1814, %v1766
    %v1818 = vsel %vm1067, %v1815, %v1774
    %v1819 = vsel %vm1067, %v1816, %v1776
    %v1820 = vsel %vm1067, %v1817, %v1778
    %v1821 = vsel %vm1071, %v1774, %v1786
    %v1822 = vsel %vm1071, %v1776, %v1788
    %v1823 = vsel %vm1071, %v1778, %v1790
    %v1824 = vsel %vm1075, %v1821, %v1798
    %v1825 = vsel %vm1075, %v1822, %v1800
    %v1826 = vsel %vm1075, %v1823, %v1802
    %v1827 = vpack.c.bf16 %v1819, %v1818
    %v1828 = vpack.c.bf16 %v1825, %v1824
    %v1829 = vpack.c.bf16 %v1820, %v1820
    %v1830 = vpack.c.bf16 %v1826, %v1826
    %v1831 = vpack.c.bf16 %v388, %v382
    %v1832 = vpack.c.bf16 %v1217, %v392
    %v1833 = vpack.c.bf16 %v1221, %v1219
    %v1834 = vpack.c.bf16 %v1228, %v1226
    %v1835 = vpack.c.bf16 %v1235, %v1230
    %v1836 = vpack.c.bf16 %v1239, %v1237
    %v1837 = vpack.c.bf16 %v390, %v384
    %v1838 = vpack.c.bf16 %v1247, %v394
    %v1839 = vpack.c.bf16 %v1251, %v1249
    %v1840 = vpack.c.bf16 %v1258, %v1256
    %v1841 = vpack.c.bf16 %v1265, %v1260
    %v1842 = vpack.c.bf16 %v1269, %v1267
    %v1844 = vsel %vm1095, %v1828, 0
    %v1847 = vsel %vm1095, %v1830, 0
    %1849 = vmatprep.subr.bf16.mxu0 0
    %1850 = vmatpush1.bf16.msra.mxu0 %v1831
    %1851 = vmatprep.subr.bf16.mxu0 0
    %1852 = vmatpush1.bf16.msra.mxu0 %v1832
    %1853 = vmatprep.subr.bf16.mxu0 0
    %1854 = vmatpush1.bf16.msra.mxu0 %v1833
    %1855 = vmatprep.subr.bf16.mxu0 0
    %1856 = vmatpush1.bf16.msra.mxu0 %v1834
    %1857 = vmatprep.subr.bf16.mxu0 0
    %1858 = vmatpush1.bf16.msra.mxu0 %v1835
    %1859 = vmatprep.subr.bf16.mxu0 0
    %1860 = vmatpush1.bf16.msra.mxu0 %v1836
    %1861 = vmatprep.subr.bf16.mxu0 0
    %1862 = vmatpush1.bf16.msra.mxu0 %v1837
    %1863 = vmatprep.subr.bf16.mxu0 0
    %1864 = vmatpush1.bf16.msra.mxu0 %v1838
    %1865 = vmatprep.subr.bf16.mxu0 0
    %1866 = vmatpush1.bf16.msra.mxu0 %v1839
    %1867 = vmatprep.subr.bf16.mxu0 0
    %1868 = vmatpush1.bf16.msra.mxu0 %v1840
    %1869 = vmatprep.subr.bf16.mxu0 0
    %1870 = vmatpush1.bf16.msra.mxu0 %v1841
    %1871 = vmatprep.subr.bf16.mxu0 0
    %1872 = vmatpush1.bf16.msra.mxu0 %v1842
    %1873 = vmatprep.subr.bf16.mxu0 0
    %1874 = vmatpush1.bf16.msra.mxu0 0
    %1875 = vmatprep.subr.bf16.mxu0 0
    %1876 = vmatpush1.bf16.msra.mxu0 0
    %1877 = vmatprep.subr.bf16.mxu0 0
    %1878 = vmatpush1.bf16.msra.mxu0 0
    %1879 = vmatprep.subr.bf16.mxu0 0
    %1880 = vmatpush1.bf16.msra.mxu0 0
    %1881 = vmatprep.mubr.bf16.mxu0 %v1844
    %1882 = vmatmul.mubr.bf16.gmra.mrb[0].mxu0 %v1827
    %v1883 = vpop.f32.mrb[0].mxu0
    %v1884 = vadd.f32 0.0, %v1883
    %v1885 = vpop.f32.mrb[0].mxu0
    %v1886 = vpop.f32.mrb[0].mxu0
    %v1887 = vadd.f32 0.0, %v1886
    %v1888 = vpop.f32.mrb[0].mxu0
    %1889 = vmatprep.mubr.bf16.mxu0 %v1847
    %1890 = vmatmul.mubr.bf16.gmra.mrb[0].mxu0 %v1829
    %v1891 = vpop.f32.mrb[0].mxu0
    %v1892 = vadd.f32 0.0, %v1891
    %v1893 = vpop.f32.mrb[0].mxu0
    %v1894 = vpop.f32.mrb[0].mxu0
    %v1895 = vpop.f32.mrb[0].mxu0
    %1896 = vdwg.mxu0
    %v1897 = vadd.f32 %v196, %v1884
    %v1898 = vadd.f32 %v201, %v1887
    %v1899 = vadd.f32 %v206, %v1892
    %v1900 = vld [vmem:[%s6] sm:$0x1]
    %v1901 = vld [vmem:[%s7] sm:$0x1]
    %1903 = vset.pattern.permute.xlu0 0
    %1904 = vperm.xlu0 %1903, %v71
    %v1905 = vpop.permute.xlu0 %1904
    %1908 = vset.pattern.permute.xlu0 0
    %1909 = vperm.xlu0 %1908, %v72
    %v1910 = vpop.permute.xlu0 %1909
    %1913 = vset.pattern.permute.xlu0 0
    %1914 = vperm.xlu0 %1913, %v73
    %v1915 = vpop.permute.xlu0 %1914
    %1918 = vset.pattern.permute.xlu0 0
    %1919 = vperm.xlu0 %1918, %v74
    %v1920 = vpop.permute.xlu0 %1919
    %1923 = vset.pattern.permute.xlu0 0
    %1924 = vperm.xlu0 %1923, %v75
    %v1925 = vpop.permute.xlu0 %1924
    %1928 = vset.pattern.permute.xlu0 0
    %1929 = vperm.xlu0 %1928, %v76
    %v1930 = vpop.permute.xlu0 %1929
    %v1932 = vmul.f32 %v1150, %v1905
    %v1933 = vmul.f32 %v1151, %v1910
    %v1934 = vmul.f32 %v1152, %v1915
    %v1935 = vmul.f32 %v1897, %v1920
    %v1936 = vmul.f32 %v1898, %v1925
    %v1937 = vmul.f32 %v1899, %v1930
    %v1938 = vsel %vm260, %v1932, 0.0
    %v1939 = vsel %vm260, %v1933, 0.0
    %v1940 = vadd.f32 %v1938, %v1939
    %v1941 = vsel %vm260, %v1934, 0.0
    %v1942 = vadd.f32 %v1940, %v1941
    %v1943 = vsel %vm260, %v1935, 0.0
    %v1944 = vadd.f32 %v1942, %v1943
    %v1945 = vsel %vm260, %v1936, 0.0
    %v1946 = vadd.f32 %v1944, %v1945
    %v1947 = vsel %vm260, %v1937, 0.0
    %v1948 = vadd.f32 %v1946, %v1947
    %v1949 = vrot.slane %v1948, 4
    %v1950 = vadd.f32 %v1948, %v1949
    %v1951 = vrot.slane %v1950, 2
    %v1952 = vadd.f32 %v1950, %v1951
    %v1953 = vrot.slane %v1952, 1
    %v1954 = vadd.f32 %v1952, %v1953
    %v1955 = vmul.f32 %v1954, 0.025
    %v1956 = vsub.f32 %v1150, %v1955
    %v1957 = vsub.f32 %v1151, %v1955
    %v1958 = vsub.f32 %v1152, %v1955
    %v1959 = vsub.f32 %v1897, %v1955
    %v1960 = vsub.f32 %v1898, %v1955
    %v1961 = vsub.f32 %v1899, %v1955
    %v1962 = vmul.f32 %v1956, %v1905
    %v1963 = vmul.f32 %v1957, %v1910
    %v1964 = vmul.f32 %v1958, %v1915
    %v1965 = vmul.f32 %v1959, %v1920
    %v1966 = vmul.f32 %v1960, %v1925
    %v1967 = vmul.f32 %v1961, %v1930
    %v1968 = vmul.f32 %v1962, %v1962
    %v1969 = vmul.f32 %v1963, %v1963
    %v1970 = vmul.f32 %v1964, %v1964
    %v1971 = vmul.f32 %v1965, %v1965
    %v1972 = vmul.f32 %v1966, %v1966
    %v1973 = vmul.f32 %v1967, %v1967
    %v1974 = vsel %vm260, %v1968, 0.0
    %v1975 = vsel %vm260, %v1969, 0.0
    %v1976 = vadd.f32 %v1974, %v1975
    %v1977 = vsel %vm260, %v1970, 0.0
    %v1978 = vadd.f32 %v1976, %v1977
    %v1979 = vsel %vm260, %v1971, 0.0
    %v1980 = vadd.f32 %v1978, %v1979
    %v1981 = vsel %vm260, %v1972, 0.0
    %v1982 = vadd.f32 %v1980, %v1981
    %v1983 = vsel %vm260, %v1973, 0.0
    %v1984 = vadd.f32 %v1982, %v1983
    %v1985 = vrot.slane %v1984, 4
    %v1986 = vadd.f32 %v1984, %v1985
    %v1987 = vrot.slane %v1986, 2
    %v1988 = vadd.f32 %v1986, %v1987
    %v1989 = vrot.slane %v1988, 1
    %v1990 = vadd.f32 %v1988, %v1989
    %v1991 = vmul.f32 %v1990, 0.025
    %v1992 = vadd.f32 %v1991, 1e-05
    %v1993 = vrsqrt.pop %v1992
    %v1994 = vmul.f32 %v1956, %v1993
    %v1995 = vmul.f32 %v1957, %v1993
    %v1996 = vmul.f32 %v1958, %v1993
    %v1997 = vmul.f32 %v1959, %v1993
    %v1998 = vmul.f32 %v1960, %v1993
    %v1999 = vmul.f32 %v1961, %v1993
    %v2001 = vlaneseq
    %v2002 = vshrl.u32 %v2001, 7
    %v2003 = vsub.s32 0, %v2002
    %v2004 = vrot.slane %v1900, %v2003
    %v2006 = vmul.f32 %v1994, %v2004
    %v2007 = vmul.f32 %v1995, %v2004
    %v2008 = vmul.f32 %v1996, %v2004
    %v2009 = vmul.f32 %v1997, %v2004
    %v2010 = vmul.f32 %v1998, %v2004
    %v2011 = vmul.f32 %v1999, %v2004
    %v2013 = vlaneseq
    %v2014 = vshrl.u32 %v2013, 7
    %v2015 = vsub.s32 0, %v2014
    %v2016 = vrot.slane %v1901, %v2015
    %v2018 = vadd.f32 %v2006, %v2016
    %v2019 = vadd.f32 %v2007, %v2016
    %v2020 = vadd.f32 %v2008, %v2016
    %v2021 = vadd.f32 %v2009, %v2016
    %v2022 = vadd.f32 %v2010, %v2016
    %v2023 = vadd.f32 %v2011, %v2016
    %v2024 = vld [vmem:[%s8] sm:$0xf]
    %v2025 = vld [vmem:[%s8 + $0x4] sm:$0xf]
    %v2026 = vld [vmem:[%s8 + $0x8] sm:$0xf]
    %v2027 = vld [vmem:[%s8 + $0xc] sm:$0xf]
    %v2028 = vpack.c.bf16 %v2019, %v2018
    %v2029 = vpack.c.bf16 %v2021, %v2020
    %v2030 = vpack.c.bf16 %v2023, %v2022
    %v2031 = vld [vmem:[%s9] sm:$0x1]
    %v2033 = vlaneseq
    %v2034 = vshrl.u32 %v2033, 7
    %v2035 = vsub.s32 0, %v2034
    %v2036 = vrot.slane %v2031, %v2035
    %v2042 = vunpack.c.l.b16 %v2024
    %v2043 = vunpack.c.l.b16 %v2025
    %v2044 = vunpack.c.l.b16 %v2026
    %v2045 = vunpack.c.l.b16 %v2027
    %v2046 = vpack.c.b16 %v2043, %v2042
    %v2047 = vpack.c.b16 %v2045, %v2044
    %v2051 = vsel %vm260, %v2028, 0
    %v2054 = vsel %vm260, %v2029, 0
    %v2057 = vsel %vm260, %v2030, 0
    %2059 = vmatprep.subr.bf16.mxu0 0
    %2060 = vmatpush1.bf16.msra.mxu0 %v2046
    %2061 = vmatprep.subr.bf16.mxu0 0
    %2062 = vmatpush1.bf16.msra.mxu0 %v2047
    %2063 = vmatprep.subr.bf16.mxu0 0
    %2064 = vmatpush1.bf16.msra.mxu0 0
    %2065 = vmatprep.subr.bf16.mxu0 0
    %2066 = vmatpush1.bf16.msra.mxu0 0
    %2067 = vmatprep.subr.bf16.mxu0 0
    %2068 = vmatpush1.bf16.msra.mxu0 0
    %2069 = vmatprep.subr.bf16.mxu0 0
    %2070 = vmatpush1.bf16.msra.mxu0 0
    %2071 = vmatprep.subr.bf16.mxu0 0
    %2072 = vmatpush1.bf16.msra.mxu0 0
    %2073 = vmatprep.subr.bf16.mxu0 0
    %2074 = vmatpush1.bf16.msra.mxu0 0
    %2075 = vmatprep.subr.bf16.mxu0 0
    %2076 = vmatpush1.bf16.msra.mxu0 0
    %2077 = vmatprep.subr.bf16.mxu0 0
    %2078 = vmatpush1.bf16.msra.mxu0 0
    %2079 = vmatprep.subr.bf16.mxu0 0
    %2080 = vmatpush1.bf16.msra.mxu0 0
    %2081 = vmatprep.subr.bf16.mxu0 0
    %2082 = vmatpush1.bf16.msra.mxu0 0
    %2083 = vmatprep.subr.bf16.mxu0 0
    %2084 = vmatpush1.bf16.msra.mxu0 0
    %2085 = vmatprep.subr.bf16.mxu0 0
    %2086 = vmatpush1.bf16.msra.mxu0 0
    %2087 = vmatprep.subr.bf16.mxu0 0
    %2088 = vmatpush1.bf16.msra.mxu0 0
    %2089 = vmatprep.subr.bf16.mxu0 0
    %2090 = vmatpush1.bf16.msra.mxu0 0
    %2091 = vmatprep.mubr.bf16.mxu0 0
    %2092 = vmatmul.mubr.bf16.gmra.mrb[0].mxu0 %v2051
    %v2093 = vpop.f32.mrb[0].mxu0
    %v2094 = vadd.f32 %v2036, %v2093
    %v2095 = vpop.f32.mrb[0].mxu0
    %v2096 = vpop.f32.mrb[0].mxu0
    %v2097 = vadd.f32 %v2036, %v2096
    %v2098 = vpop.f32.mrb[0].mxu0
    %2099 = vmatprep.mubr.bf16.mxu0 0
    %2100 = vmatmul.mubr.bf16.gmra.mrb[0].mxu0 %v2054
    %v2101 = vpop.f32.mrb[0].mxu0
    %v2102 = vadd.f32 %v2036, %v2101
    %v2103 = vpop.f32.mrb[0].mxu0
    %v2104 = vpop.f32.mrb[0].mxu0
    %v2105 = vadd.f32 %v2036, %v2104
    %v2106 = vpop.f32.mrb[0].mxu0
    %2107 = vmatprep.mubr.bf16.mxu0 0
    %2108 = vmatmul.mubr.bf16.gmra.mrb[0].mxu0 %v2057
    %v2109 = vpop.f32.mrb[0].mxu0
    %v2110 = vadd.f32 %v2036, %v2109
    %v2111 = vpop.f32.mrb[0].mxu0
    %v2112 = vpop.f32.mrb[0].mxu0
    %v2113 = vadd.f32 %v2036, %v2112
    %v2114 = vpop.f32.mrb[0].mxu0
    %2115 = vdwg.mxu0
    %v2116 = vmax.f32 %v2094, 0.0
    %v2117 = vmax.f32 %v2097, 0.0
    %v2118 = vmax.f32 %v2102, 0.0
    %v2119 = vmax.f32 %v2105, 0.0
    %v2120 = vmax.f32 %v2110, 0.0
    %v2121 = vmax.f32 %v2113, 0.0
    %v2122 = vld [vmem:[%s10] sm:$0xf]
    %v2123 = vld [vmem:[%s10 + $0x4] sm:$0xf]
    %v2124 = vld [vmem:[%s10 + $0x8] sm:$0xf]
    %v2125 = vld [vmem:[%s10 + $0xc] sm:$0xf]
    %v2126 = vld [vmem:[%s10 + $0x10] sm:$0xf]
    %v2127 = vld [vmem:[%s10 + $0x14] sm:$0xf]
    %v2128 = vld [vmem:[%s10 + $0x18] sm:$0xf]
    %v2129 = vld [vmem:[%s10 + $0x1c] sm:$0xf]
    %v2130 = vpack.c.bf16 %v2117, %v2116
    %v2131 = vpack.c.bf16 %v2119, %v2118
    %v2132 = vpack.c.bf16 %v2121, %v2120
    %v2141 = vunpack.c.l.b16 %v2122
    %v2142 = vunpack.c.l.b16 %v2123
    %v2143 = vunpack.c.l.b16 %v2124
    %v2144 = vunpack.c.l.b16 %v2125
    %v2145 = vunpack.c.l.b16 %v2126
    %v2146 = vunpack.c.l.b16 %v2127
    %v2147 = vunpack.c.l.b16 %v2128
    %v2148 = vunpack.c.l.b16 %v2129
    %v2149 = vpack.c.b16 %v2142, %v2141
    %v2150 = vpack.c.b16 %v2144, %v2143
    %v2151 = vpack.c.b16 %v2146, %v2145
    %v2152 = vpack.c.b16 %v2148, %v2147
    %v2158 = vsel %vm1095, %v2130, 0
    %v2161 = vsel %vm1095, %v2131, 0
    %v2164 = vsel %vm1095, %v2132, 0
    %2166 = vmatprep.subr.bf16.mxu0 0
    %2167 = vmatpush1.bf16.msra.mxu0 %v2149
    %2168 = vmatprep.subr.bf16.mxu0 0
    %2169 = vmatpush1.bf16.msra.mxu0 %v2150
    %2170 = vmatprep.subr.bf16.mxu0 0
    %2171 = vmatpush1.bf16.msra.mxu0 %v2151
    %2172 = vmatprep.subr.bf16.mxu0 0
    %2173 = vmatpush1.bf16.msra.mxu0 %v2152
    %2174 = vmatprep.subr.bf16.mxu0 0
    %2175 = vmatpush1.bf16.msra.mxu0 0
    %2176 = vmatprep.subr.bf16.mxu0 0
    %2177 = vmatpush1.bf16.msra.mxu0 0
    %2178 = vmatprep.subr.bf16.mxu0 0
    %2179 = vmatpush1.bf16.msra.mxu0 0
    %2180 = vmatprep.subr.bf16.mxu0 0
    %2181 = vmatpush1.bf16.msra.mxu0 0
    %2182 = vmatprep.subr.bf16.mxu0 0
    %2183 = vmatpush1.bf16.msra.mxu0 0
    %2184 = vmatprep.subr.bf16.mxu0 0
    %2185 = vmatpush1.bf16.msra.mxu0 0
    %2186 = vmatprep.subr.bf16.mxu0 0
    %2187 = vmatpush1.bf16.msra.mxu0 0
    %2188 = vmatprep.subr.bf16.mxu0 0
    %2189 = vmatpush1.bf16.msra.mxu0 0
    %2190 = vmatprep.subr.bf16.mxu0 0
    %2191 = vmatpush1.bf16.msra.mxu0 0
    %2192 = vmatprep.subr.bf16.mxu0 0
    %2193 = vmatpush1.bf16.msra.mxu0 0
    %2194 = vmatprep.subr.bf16.mxu0 0
    %2195 = vmatpush1.bf16.msra.mxu0 0
    %2196 = vmatprep.subr.bf16.mxu0 0
    %2197 = vmatpush1.bf16.msra.mxu0 0
    %2198 = vmatprep.mubr.bf16.mxu0 0
    %2199 = vmatmul.mubr.bf16.gmra.mrb[0].mxu0 %v2158
    %v2200 = vpop.f32.mrb[0].mxu0
    %v2201 = vadd.f32 0.0, %v2200
    %v2202 = vpop.f32.mrb[0].mxu0
    %v2203 = vpop.f32.mrb[0].mxu0
    %v2204 = vadd.f32 0.0, %v2203
    %v2205 = vpop.f32.mrb[0].mxu0
    %2206 = vmatprep.mubr.bf16.mxu0 0
    %2207 = vmatmul.mubr.bf16.gmra.mrb[0].mxu0 %v2161
    %v2208 = vpop.f32.mrb[0].mxu0
    %v2209 = vadd.f32 0.0, %v2208
    %v2210 = vpop.f32.mrb[0].mxu0
    %v2211 = vpop.f32.mrb[0].mxu0
    %v2212 = vadd.f32 0.0, %v2211
    %v2213 = vpop.f32.mrb[0].mxu0
    %2214 = vmatprep.mubr.bf16.mxu0 0
    %2215 = vmatmul.mubr.bf16.gmra.mrb[0].mxu0 %v2164
    %v2216 = vpop.f32.mrb[0].mxu0
    %v2217 = vadd.f32 0.0, %v2216
    %v2218 = vpop.f32.mrb[0].mxu0
    %v2219 = vpop.f32.mrb[0].mxu0
    %v2220 = vadd.f32 0.0, %v2219
    %v2221 = vpop.f32.mrb[0].mxu0
    %2222 = vdwg.mxu0
    %v2223 = vadd.f32 %v2018, %v2201
    %v2224 = vadd.f32 %v2019, %v2204
    %v2225 = vadd.f32 %v2020, %v2209
    %v2226 = vadd.f32 %v2021, %v2212
    %v2227 = vadd.f32 %v2022, %v2217
    %v2228 = vadd.f32 %v2023, %v2220
    %v2229 = vld [vmem:[%s11] sm:$0x1]
    %v2231 = vlaneseq
    %v2232 = vshrl.u32 %v2231, 7
    %v2233 = vsub.s32 0, %v2232
    %v2234 = vrot.slane %v2229, %v2233
    %v2236 = vadd.f32 %v2223, %v2234
    %v2237 = vadd.f32 %v2224, %v2234
    %v2238 = vadd.f32 %v2225, %v2234
    %v2239 = vadd.f32 %v2226, %v2234
    %v2240 = vadd.f32 %v2227, %v2234
    %v2241 = vadd.f32 %v2228, %v2234
    %v2242 = vld [vmem:[%s12] sm:$0x1]
    %v2243 = vld [vmem:[%s13] sm:$0x1]
    %v2244 = vmul.f32 %v2236, %v1905
    %v2245 = vmul.f32 %v2237, %v1910
    %v2246 = vmul.f32 %v2238, %v1915
    %v2247 = vmul.f32 %v2239, %v1920
    %v2248 = vmul.f32 %v2240, %v1925
    %v2249 = vmul.f32 %v2241, %v1930
    %v2250 = vsel %vm260, %v2244, 0.0
    %v2251 = vsel %vm260, %v2245, 0.0
    %v2252 = vadd.f32 %v2250, %v2251
    %v2253 = vsel %vm260, %v2246, 0.0
    %v2254 = vadd.f32 %v2252, %v2253
    %v2255 = vsel %vm260, %v2247, 0.0
    %v2256 = vadd.f32 %v2254, %v2255
    %v2257 = vsel %vm260, %v2248, 0.0
    %v2258 = vadd.f32 %v2256, %v2257
    %v2259 = vsel %vm260, %v2249, 0.0
    %v2260 = vadd.f32 %v2258, %v2259
    %v2261 = vrot.slane %v2260, 4
    %v2262 = vadd.f32 %v2260, %v2261
    %v2263 = vrot.slane %v2262, 2
    %v2264 = vadd.f32 %v2262, %v2263
    %v2265 = vrot.slane %v2264, 1
    %v2266 = vadd.f32 %v2264, %v2265
    %v2267 = vmul.f32 %v2266, 0.025
    %v2268 = vsub.f32 %v2236, %v2267
    %v2269 = vsub.f32 %v2237, %v2267
    %v2270 = vsub.f32 %v2238, %v2267
    %v2271 = vsub.f32 %v2239, %v2267
    %v2272 = vsub.f32 %v2240, %v2267
    %v2273 = vsub.f32 %v2241, %v2267
    %v2274 = vmul.f32 %v2268, %v1905
    %v2275 = vmul.f32 %v2269, %v1910
    %v2276 = vmul.f32 %v2270, %v1915
    %v2277 = vmul.f32 %v2271, %v1920
    %v2278 = vmul.f32 %v2272, %v1925
    %v2279 = vmul.f32 %v2273, %v1930
    %v2280 = vmul.f32 %v2274, %v2274
    %v2281 = vmul.f32 %v2275, %v2275
    %v2282 = vmul.f32 %v2276, %v2276
    %v2283 = vmul.f32 %v2277, %v2277
    %v2284 = vmul.f32 %v2278, %v2278
    %v2285 = vmul.f32 %v2279, %v2279
    %v2286 = vsel %vm260, %v2280, 0.0
    %v2287 = vsel %vm260, %v2281, 0.0
    %v2288 = vadd.f32 %v2286, %v2287
    %v2289 = vsel %vm260, %v2282, 0.0
    %v2290 = vadd.f32 %v2288, %v2289
    %v2291 = vsel %vm260, %v2283, 0.0
    %v2292 = vadd.f32 %v2290, %v2291
    %v2293 = vsel %vm260, %v2284, 0.0
    %v2294 = vadd.f32 %v2292, %v2293
    %v2295 = vsel %vm260, %v2285, 0.0
    %v2296 = vadd.f32 %v2294, %v2295
    %v2297 = vrot.slane %v2296, 4
    %v2298 = vadd.f32 %v2296, %v2297
    %v2299 = vrot.slane %v2298, 2
    %v2300 = vadd.f32 %v2298, %v2299
    %v2301 = vrot.slane %v2300, 1
    %v2302 = vadd.f32 %v2300, %v2301
    %v2303 = vmul.f32 %v2302, 0.025
    %v2304 = vadd.f32 %v2303, 1e-05
    %v2305 = vrsqrt.pop %v2304
    %v2306 = vmul.f32 %v2268, %v2305
    %v2307 = vmul.f32 %v2269, %v2305
    %v2308 = vmul.f32 %v2270, %v2305
    %v2309 = vmul.f32 %v2271, %v2305
    %v2310 = vmul.f32 %v2272, %v2305
    %v2311 = vmul.f32 %v2273, %v2305
    %v2313 = vlaneseq
    %v2314 = vshrl.u32 %v2313, 7
    %v2315 = vsub.s32 0, %v2314
    %v2316 = vrot.slane %v2242, %v2315
    %v2318 = vmul.f32 %v2306, %v2316
    %v2319 = vmul.f32 %v2307, %v2316
    %v2320 = vmul.f32 %v2308, %v2316
    %v2321 = vmul.f32 %v2309, %v2316
    %v2322 = vmul.f32 %v2310, %v2316
    %v2323 = vmul.f32 %v2311, %v2316
    %v2325 = vlaneseq
    %v2326 = vshrl.u32 %v2325, 7
    %v2327 = vsub.s32 0, %v2326
    %v2328 = vrot.slane %v2243, %v2327
    %v2330 = vadd.f32 %v2318, %v2328
    %v2331 = vadd.f32 %v2319, %v2328
    %v2332 = vadd.f32 %v2320, %v2328
    %v2333 = vadd.f32 %v2321, %v2328
    %v2334 = vadd.f32 %v2322, %v2328
    %v2335 = vadd.f32 %v2323, %v2328
    %s2336 = scalar_lea.vmem %s5, 64
    %v2337 = vld [vmem:[%s2336] sm:$0xff]
    %v2338 = vld [vmem:[%s2336 + $0x8] sm:$0xff]
    %v2339 = vld [vmem:[%s2336 + $0x10] sm:$0xff]
    %v2340 = vld [vmem:[%s2336 + $0x18] sm:$0xff]
    %v2341 = vld [vmem:[%s2336 + $0x20] sm:$0xff]
    %v2342 = vld [vmem:[%s2336 + $0x28] sm:$0xff]
    %v2343 = vld [vmem:[%s2336 + $0x30] sm:$0xff]
    %v2344 = vld [vmem:[%s2336 + $0x38] sm:$0xff]
    %v2345 = vpack.c.bf16 %v2331, %v2330
    %v2346 = vpack.c.bf16 %v2333, %v2332
    %v2347 = vpack.c.bf16 %v2335, %v2334
    %v2356 = vunpack.c.l.b16 %v2337
    %v2357 = vunpack.c.h.b16 %v2337
    %v2358 = vunpack.c.l.b16 %v2338
    %v2359 = vunpack.c.h.b16 %v2338
    %v2360 = vunpack.c.l.b16 %v2339
    %v2361 = vunpack.c.h.b16 %v2339
    %v2362 = vunpack.c.l.b16 %v2340
    %v2363 = vunpack.c.h.b16 %v2340
    %v2364 = vunpack.c.l.b16 %v2341
    %v2365 = vunpack.c.h.b16 %v2341
    %v2366 = vunpack.c.l.b16 %v2342
    %v2367 = vunpack.c.h.b16 %v2342
    %v2368 = vunpack.c.l.b16 %v2343
    %v2369 = vunpack.c.h.b16 %v2343
    %v2370 = vunpack.c.l.b16 %v2344
    %v2371 = vunpack.c.h.b16 %v2344
    %v2372 = vpack.c.b16 %v2360, %v2356
    %v2373 = vpack.c.b16 %v2361, %v2357
    %v2374 = vpack.c.b16 %v2362, %v2358
    %v2375 = vpack.c.b16 %v2363, %v2359
    %v2376 = vpack.c.b16 %v2368, %v2364
    %v2377 = vpack.c.b16 %v2369, %v2365
    %v2378 = vpack.c.b16 %v2370, %v2366
    %v2379 = vpack.c.b16 %v2371, %v2367
    %v2389 = vsel %vm260, %v2345, 0
    %v2392 = vsel %vm260, %v2346, 0
    %v2395 = vsel %vm260, %v2347, 0
    %2397 = vmatprep.subr.bf16.mxu0 %v2373
    %2398 = vmatpush1.bf16.msra.mxu0 %v2372
    %2399 = vmatprep.subr.bf16.mxu0 %v2377
    %2400 = vmatpush1.bf16.msra.mxu0 %v2376
    %2401 = vmatprep.subr.bf16.mxu0 0
    %2402 = vmatpush1.bf16.msra.mxu0 0
    %2403 = vmatprep.subr.bf16.mxu0 0
    %2404 = vmatpush1.bf16.msra.mxu0 0
    %2405 = vmatprep.subr.bf16.mxu0 0
    %2406 = vmatpush1.bf16.msra.mxu0 0
    %2407 = vmatprep.subr.bf16.mxu0 0
    %2408 = vmatpush1.bf16.msra.mxu0 0
    %2409 = vmatprep.subr.bf16.mxu0 0
    %2410 = vmatpush1.bf16.msra.mxu0 0
    %2411 = vmatprep.subr.bf16.mxu0 0
    %2412 = vmatpush1.bf16.msra.mxu0 0
    %2413 = vmatprep.subr.bf16.mxu0 0
    %2414 = vmatpush1.bf16.msra.mxu0 0
    %2415 = vmatprep.subr.bf16.mxu0 0
    %2416 = vmatpush1.bf16.msra.mxu0 0
    %2417 = vmatprep.subr.bf16.mxu0 0
    %2418 = vmatpush1.bf16.msra.mxu0 0
    %2419 = vmatprep.subr.bf16.mxu0 0
    %2420 = vmatpush1.bf16.msra.mxu0 0
    %2421 = vmatprep.subr.bf16.mxu0 0
    %2422 = vmatpush1.bf16.msra.mxu0 0
    %2423 = vmatprep.subr.bf16.mxu0 0
    %2424 = vmatpush1.bf16.msra.mxu0 0
    %2425 = vmatprep.subr.bf16.mxu0 0
    %2426 = vmatpush1.bf16.msra.mxu0 0
    %2427 = vmatprep.subr.bf16.mxu0 0
    %2428 = vmatpush1.bf16.msra.mxu0 0
    %2429 = vmatprep.mubr.bf16.mxu0 0
    %2430 = vmatmul.mubr.bf16.gmra.mrb[0].mxu0 %v2389
    %v2431 = vpop.f32.mrb[0].mxu0
    %v2432 = vadd.f32 0.0, %v2431
    %v2433 = vpop.f32.mrb[0].mxu0
    %v2434 = vadd.f32 0.0, %v2433
    %v2435 = vpop.f32.mrb[0].mxu0
    %v2436 = vadd.f32 0.0, %v2435
    %v2437 = vpop.f32.mrb[0].mxu0
    %v2438 = vadd.f32 0.0, %v2437
    %2439 = vmatprep.mubr.bf16.mxu0 0
    %2440 = vmatmul.mubr.bf16.gmra.mrb[0].mxu0 %v2392
    %v2441 = vpop.f32.mrb[0].mxu0
    %v2442 = vadd.f32 0.0, %v2441
    %v2443 = vpop.f32.mrb[0].mxu0
    %v2444 = vadd.f32 0.0, %v2443
    %v2445 = vpop.f32.mrb[0].mxu0
    %v2446 = vadd.f32 0.0, %v2445
    %v2447 = vpop.f32.mrb[0].mxu0
    %v2448 = vadd.f32 0.0, %v2447
    %2449 = vmatprep.mubr.bf16.mxu0 0
    %2450 = vmatmul.mubr.bf16.gmra.mrb[0].mxu0 %v2395
    %v2451 = vpop.f32.mrb[0].mxu0
    %v2452 = vadd.f32 0.0, %v2451
    %v2453 = vpop.f32.mrb[0].mxu0
    %v2454 = vadd.f32 0.0, %v2453
    %v2455 = vpop.f32.mrb[0].mxu0
    %v2456 = vadd.f32 0.0, %v2455
    %v2457 = vpop.f32.mrb[0].mxu0
    %v2458 = vadd.f32 0.0, %v2457
    %2459 = vdwg.mxu0
    %2460 = vmatprep.subr.bf16.mxu0 %v2375
    %2461 = vmatpush1.bf16.msra.mxu0 %v2374
    %2462 = vmatprep.subr.bf16.mxu0 %v2379
    %2463 = vmatpush1.bf16.msra.mxu0 %v2378
    %2464 = vmatprep.subr.bf16.mxu0 0
    %2465 = vmatpush1.bf16.msra.mxu0 0
    %2466 = vmatprep.subr.bf16.mxu0 0
    %2467 = vmatpush1.bf16.msra.mxu0 0
    %2468 = vmatprep.subr.bf16.mxu0 0
    %2469 = vmatpush1.bf16.msra.mxu0 0
    %2470 = vmatprep.subr.bf16.mxu0 0
    %2471 = vmatpush1.bf16.msra.mxu0 0
    %2472 = vmatprep.subr.bf16.mxu0 0
    %2473 = vmatpush1.bf16.msra.mxu0 0
    %2474 = vmatprep.subr.bf16.mxu0 0
    %2475 = vmatpush1.bf16.msra.mxu0 0
    %2476 = vmatprep.subr.bf16.mxu0 0
    %2477 = vmatpush1.bf16.msra.mxu0 0
    %2478 = vmatprep.subr.bf16.mxu0 0
    %2479 = vmatpush1.bf16.msra.mxu0 0
    %2480 = vmatprep.subr.bf16.mxu0 0
    %2481 = vmatpush1.bf16.msra.mxu0 0
    %2482 = vmatprep.subr.bf16.mxu0 0
    %2483 = vmatpush1.bf16.msra.mxu0 0
    %2484 = vmatprep.subr.bf16.mxu0 0
    %2485 = vmatpush1.bf16.msra.mxu0 0
    %2486 = vmatprep.subr.bf16.mxu0 0
    %2487 = vmatpush1.bf16.msra.mxu0 0
    %2488 = vmatprep.subr.bf16.mxu0 0
    %2489 = vmatpush1.bf16.msra.mxu0 0
    %2490 = vmatprep.subr.bf16.mxu0 0
    %2491 = vmatpush1.bf16.msra.mxu0 0
    %2492 = vmatprep.mubr.bf16.mxu0 0
    %2493 = vmatmul.mubr.bf16.gmra.mrb[0].mxu0 %v2389
    %v2494 = vpop.f32.mrb[0].mxu0
    %v2495 = vadd.f32 0.0, %v2494
    %v2496 = vpop.f32.mrb[0].mxu0
    %v2497 = vadd.f32 0.0, %v2496
    %v2498 = vpop.f32.mrb[0].mxu0
    %v2499 = vadd.f32 0.0, %v2498
    %v2500 = vpop.f32.mrb[0].mxu0
    %v2501 = vadd.f32 0.0, %v2500
    %2502 = vmatprep.mubr.bf16.mxu0 0
    %2503 = vmatmul.mubr.bf16.gmra.mrb[0].mxu0 %v2392
    %v2504 = vpop.f32.mrb[0].mxu0
    %v2505 = vadd.f32 0.0, %v2504
    %v2506 = vpop.f32.mrb[0].mxu0
    %v2507 = vadd.f32 0.0, %v2506
    %v2508 = vpop.f32.mrb[0].mxu0
    %v2509 = vadd.f32 0.0, %v2508
    %v2510 = vpop.f32.mrb[0].mxu0
    %v2511 = vadd.f32 0.0, %v2510
    %2512 = vmatprep.mubr.bf16.mxu0 0
    %2513 = vmatmul.mubr.bf16.gmra.mrb[0].mxu0 %v2395
    %v2514 = vpop.f32.mrb[0].mxu0
    %v2515 = vadd.f32 0.0, %v2514
    %v2516 = vpop.f32.mrb[0].mxu0
    %v2517 = vadd.f32 0.0, %v2516
    %v2518 = vpop.f32.mrb[0].mxu0
    %v2519 = vadd.f32 0.0, %v2518
    %v2520 = vpop.f32.mrb[0].mxu0
    %v2521 = vadd.f32 0.0, %v2520
    %2522 = vdwg.mxu0
    %2526 = vrot.lane.b32.xlu0 %v2432, 96
    %v2527 = vpop.permute.xlu0 %2526
    %2528 = vrot.lane.b32.xlu0 %v2436, 96
    %v2529 = vpop.permute.xlu0 %2528
    %2530 = vrot.lane.b32.xlu0 %v2442, 96
    %v2531 = vpop.permute.xlu0 %2530
    %2535 = vrot.lane.b32.xlu0 %v2432, 64
    %v2536 = vpop.permute.xlu0 %2535
    %2537 = vrot.lane.b32.xlu0 %v2436, 64
    %v2538 = vpop.permute.xlu0 %2537
    %2539 = vrot.lane.b32.xlu0 %v2442, 64
    %v2540 = vpop.permute.xlu0 %2539
    %2544 = vrot.lane.b32.xlu0 %v2432, 32
    %v2545 = vpop.permute.xlu0 %2544
    %2546 = vrot.lane.b32.xlu0 %v2436, 32
    %v2547 = vpop.permute.xlu0 %2546
    %2548 = vrot.lane.b32.xlu0 %v2442, 32
    %v2549 = vpop.permute.xlu0 %2548
    %2556 = vrot.lane.b32.xlu0 %v2434, 96
    %v2557 = vpop.permute.xlu0 %2556
    %2558 = vrot.lane.b32.xlu0 %v2438, 96
    %v2559 = vpop.permute.xlu0 %2558
    %2560 = vrot.lane.b32.xlu0 %v2444, 96
    %v2561 = vpop.permute.xlu0 %2560
    %2565 = vrot.lane.b32.xlu0 %v2434, 64
    %v2566 = vpop.permute.xlu0 %2565
    %2567 = vrot.lane.b32.xlu0 %v2438, 64
    %v2568 = vpop.permute.xlu0 %2567
    %2569 = vrot.lane.b32.xlu0 %v2444, 64
    %v2570 = vpop.permute.xlu0 %2569
    %2574 = vrot.lane.b32.xlu0 %v2434, 32
    %v2575 = vpop.permute.xlu0 %2574
    %2576 = vrot.lane.b32.xlu0 %v2438, 32
    %v2577 = vpop.permute.xlu0 %2576
    %2578 = vrot.lane.b32.xlu0 %v2444, 32
    %v2579 = vpop.permute.xlu0 %2578
    %2586 = vrot.lane.b32.xlu0 %v2495, 96
    %v2587 = vpop.permute.xlu0 %2586
    %2588 = vrot.lane.b32.xlu0 %v2499, 96
    %v2589 = vpop.permute.xlu0 %2588
    %2590 = vrot.lane.b32.xlu0 %v2505, 96
    %v2591 = vpop.permute.xlu0 %2590
    %2595 = vrot.lane.b32.xlu0 %v2495, 64
    %v2596 = vpop.permute.xlu0 %2595
    %2597 = vrot.lane.b32.xlu0 %v2499, 64
    %v2598 = vpop.permute.xlu0 %2597
    %2599 = vrot.lane.b32.xlu0 %v2505, 64
    %v2600 = vpop.permute.xlu0 %2599
    %2604 = vrot.lane.b32.xlu0 %v2495, 32
    %v2605 = vpop.permute.xlu0 %2604
    %2606 = vrot.lane.b32.xlu0 %v2499, 32
    %v2607 = vpop.permute.xlu0 %2606
    %2608 = vrot.lane.b32.xlu0 %v2505, 32
    %v2609 = vpop.permute.xlu0 %2608
    %2616 = vrot.lane.b32.xlu0 %v2497, 96
    %v2617 = vpop.permute.xlu0 %2616
    %2618 = vrot.lane.b32.xlu0 %v2501, 96
    %v2619 = vpop.permute.xlu0 %2618
    %2620 = vrot.lane.b32.xlu0 %v2507, 96
    %v2621 = vpop.permute.xlu0 %2620
    %2625 = vrot.lane.b32.xlu0 %v2497, 64
    %v2626 = vpop.permute.xlu0 %2625
    %2627 = vrot.lane.b32.xlu0 %v2501, 64
    %v2628 = vpop.permute.xlu0 %2627
    %2629 = vrot.lane.b32.xlu0 %v2507, 64
    %v2630 = vpop.permute.xlu0 %2629
    %2634 = vrot.lane.b32.xlu0 %v2497, 32
    %v2635 = vpop.permute.xlu0 %2634
    %2636 = vrot.lane.b32.xlu0 %v2501, 32
    %v2637 = vpop.permute.xlu0 %2636
    %2638 = vrot.lane.b32.xlu0 %v2507, 32
    %v2639 = vpop.permute.xlu0 %2638
    %v2643 = vpack.c.bf16 %v2436, %v2432
    %v2644 = vpack.c.bf16 %v2527, %v2442
    %v2645 = vpack.c.bf16 %v2531, %v2529
    %v2646 = vpack.c.bf16 %v2538, %v2536
    %v2647 = vpack.c.bf16 %v2545, %v2540
    %v2648 = vpack.c.bf16 %v2549, %v2547
    %v2649 = vpack.c.bf16 %v2438, %v2434
    %v2650 = vpack.c.bf16 %v2557, %v2444
    %v2651 = vpack.c.bf16 %v2561, %v2559
    %v2652 = vpack.c.bf16 %v2568, %v2566
    %v2653 = vpack.c.bf16 %v2575, %v2570
    %v2654 = vpack.c.bf16 %v2579, %v2577
    %v2655 = vpack.c.bf16 %v2332, %v2332
    %v2657 = vsel %vm260, %v2643, 0
    %v2660 = vsel %vm260, %v2644, 0
    %v2663 = vsel %vm260, %v2645, 0
    %v2666 = vsel %vm260, %v2646, 0
    %v2669 = vsel %vm260, %v2647, 0
    %v2672 = vsel %vm260, %v2648, 0
    %v2675 = vsel %vm260, %v2649, 0
    %v2678 = vsel %vm260, %v2650, 0
    %v2681 = vsel %vm260, %v2651, 0
    %v2684 = vsel %vm260, %v2652, 0
    %v2687 = vsel %vm260, %v2653, 0
    %v2690 = vsel %vm260, %v2654, 0
    %v2693 = vsel %vm260, %v2655, 0
    %2695 = vmatprep.subr.bf16.mxu0 0
    %2696 = vmatpush1.bf16.xpose.msra.mxu0 %v2389
    %2697 = vmatprep.subr.bf16.mxu0 0
    %2698 = vmatpush1.bf16.xpose.msra.mxu0 %v2693
    %2699 = vmatprep.subr.bf16.mxu0 0
    %2700 = vmatpush1.bf16.xpose.msra.mxu0 0
    %2701 = vmatprep.subr.bf16.mxu0 0
    %2702 = vmatpush1.bf16.xpose.msra.mxu0 0
    %2703 = vmatprep.subr.bf16.mxu0 0
    %2704 = vmatpush1.bf16.xpose.msra.mxu0 0
    %2705 = vmatprep.subr.bf16.mxu0 0
    %2706 = vmatpush1.bf16.xpose.msra.mxu0 0
    %2707 = vmatprep.subr.bf16.mxu0 0
    %2708 = vmatpush1.bf16.xpose.msra.mxu0 0
    %2709 = vmatprep.subr.bf16.mxu0 0
    %2710 = vmatpush1.bf16.xpose.msra.mxu0 0
    %2711 = vmatprep.subr.bf16.mxu0 0
    %2712 = vmatpush1.bf16.xpose.msra.mxu0 0
    %2713 = vmatprep.subr.bf16.mxu0 0
    %2714 = vmatpush1.bf16.xpose.msra.mxu0 0
    %2715 = vmatprep.subr.bf16.mxu0 0
    %2716 = vmatpush1.bf16.xpose.msra.mxu0 0
    %2717 = vmatprep.subr.bf16.mxu0 0
    %2718 = vmatpush1.bf16.xpose.msra.mxu0 0
    %2719 = vmatprep.subr.bf16.mxu0 0
    %2720 = vmatpush1.bf16.xpose.msra.mxu0 0
    %2721 = vmatprep.subr.bf16.mxu0 0
    %2722 = vmatpush1.bf16.xpose.msra.mxu0 0
    %2723 = vmatprep.subr.bf16.mxu0 0
    %2724 = vmatpush1.bf16.xpose.msra.mxu0 0
    %2725 = vmatprep.subr.bf16.mxu0 0
    %2726 = vmatpush1.bf16.xpose.msra.mxu0 0
    %2727 = vmatprep.mubr.bf16.mxu0 0
    %2728 = vmatmul.mubr.bf16.gmra.mrb[0].mxu0 %v2657
    %v2729 = vpop.f32.mrb[0].mxu0
    %v2730 = vadd.f32 %v533, %v2729
    %v2731 = vpop.f32.mrb[0].mxu0
    %v2732 = vpop.f32.mrb[0].mxu0
    %v2733 = vadd.f32 %v533, %v2732
    %v2734 = vpop.f32.mrb[0].mxu0
    %2735 = vmatprep.mubr.bf16.mxu0 0
    %2736 = vmatmul.mubr.bf16.gmra.mrb[0].mxu0 %v2660
    %v2737 = vpop.f32.mrb[0].mxu0
    %v2738 = vadd.f32 %v533, %v2737
    %v2739 = vpop.f32.mrb[0].mxu0
    %v2740 = vpop.f32.mrb[0].mxu0
    %v2741 = vadd.f32 %v533, %v2740
    %v2742 = vpop.f32.mrb[0].mxu0
    %2743 = vmatprep.mubr.bf16.mxu0 0
    %2744 = vmatmul.mubr.bf16.gmra.mrb[0].mxu0 %v2663
    %v2745 = vpop.f32.mrb[0].mxu0
    %v2746 = vadd.f32 %v533, %v2745
    %v2747 = vpop.f32.mrb[0].mxu0
    %v2748 = vpop.f32.mrb[0].mxu0
    %v2749 = vadd.f32 %v533, %v2748
    %v2750 = vpop.f32.mrb[0].mxu0
    %2751 = vmatprep.mubr.bf16.mxu0 0
    %2752 = vmatmul.mubr.bf16.gmra.mrb[0].mxu0 %v2666
    %v2753 = vpop.f32.mrb[0].mxu0
    %v2754 = vadd.f32 %v533, %v2753
    %v2755 = vpop.f32.mrb[0].mxu0
    %v2756 = vpop.f32.mrb[0].mxu0
    %v2757 = vadd.f32 %v533, %v2756
    %v2758 = vpop.f32.mrb[0].mxu0
    %2759 = vmatprep.mubr.bf16.mxu0 0
    %2760 = vmatmul.mubr.bf16.gmra.mrb[0].mxu0 %v2669
    %v2761 = vpop.f32.mrb[0].mxu0
    %v2762 = vadd.f32 %v533, %v2761
    %v2763 = vpop.f32.mrb[0].mxu0
    %v2764 = vpop.f32.mrb[0].mxu0
    %v2765 = vadd.f32 %v533, %v2764
    %v2766 = vpop.f32.mrb[0].mxu0
    %2767 = vmatprep.mubr.bf16.mxu0 0
    %2768 = vmatmul.mubr.bf16.gmra.mrb[0].mxu0 %v2672
    %v2769 = vpop.f32.mrb[0].mxu0
    %v2770 = vadd.f32 %v533, %v2769
    %v2771 = vpop.f32.mrb[0].mxu0
    %v2772 = vpop.f32.mrb[0].mxu0
    %v2773 = vadd.f32 %v533, %v2772
    %v2774 = vpop.f32.mrb[0].mxu0
    %2775 = vmatprep.mubr.bf16.mxu0 0
    %2776 = vmatmul.mubr.bf16.gmra.mrb[0].mxu0 %v2675
    %v2777 = vpop.f32.mrb[0].mxu0
    %v2778 = vadd.f32 %v533, %v2777
    %v2779 = vpop.f32.mrb[0].mxu0
    %v2780 = vpop.f32.mrb[0].mxu0
    %v2781 = vadd.f32 %v533, %v2780
    %v2782 = vpop.f32.mrb[0].mxu0
    %2783 = vmatprep.mubr.bf16.mxu0 0
    %2784 = vmatmul.mubr.bf16.gmra.mrb[0].mxu0 %v2678
    %v2785 = vpop.f32.mrb[0].mxu0
    %v2786 = vadd.f32 %v533, %v2785
    %v2787 = vpop.f32.mrb[0].mxu0
    %v2788 = vpop.f32.mrb[0].mxu0
    %v2789 = vadd.f32 %v533, %v2788
    %v2790 = vpop.f32.mrb[0].mxu0
    %2791 = vmatprep.mubr.bf16.mxu0 0
    %2792 = vmatmul.mubr.bf16.gmra.mrb[0].mxu0 %v2681
    %v2793 = vpop.f32.mrb[0].mxu0
    %v2794 = vadd.f32 %v533, %v2793
    %v2795 = vpop.f32.mrb[0].mxu0
    %v2796 = vpop.f32.mrb[0].mxu0
    %v2797 = vadd.f32 %v533, %v2796
    %v2798 = vpop.f32.mrb[0].mxu0
    %2799 = vmatprep.mubr.bf16.mxu0 0
    %2800 = vmatmul.mubr.bf16.gmra.mrb[0].mxu0 %v2684
    %v2801 = vpop.f32.mrb[0].mxu0
    %v2802 = vadd.f32 %v533, %v2801
    %v2803 = vpop.f32.mrb[0].mxu0
    %v2804 = vpop.f32.mrb[0].mxu0
    %v2805 = vadd.f32 %v533, %v2804
    %v2806 = vpop.f32.mrb[0].mxu0
    %2807 = vmatprep.mubr.bf16.mxu0 0
    %2808 = vmatmul.mubr.bf16.gmra.mrb[0].mxu0 %v2687
    %v2809 = vpop.f32.mrb[0].mxu0
    %v2810 = vadd.f32 %v533, %v2809
    %v2811 = vpop.f32.mrb[0].mxu0
    %v2812 = vpop.f32.mrb[0].mxu0
    %v2813 = vadd.f32 %v533, %v2812
    %v2814 = vpop.f32.mrb[0].mxu0
    %2815 = vmatprep.mubr.bf16.mxu0 0
    %2816 = vmatmul.mubr.bf16.gmra.mrb[0].mxu0 %v2690
    %v2817 = vpop.f32.mrb[0].mxu0
    %v2818 = vadd.f32 %v533, %v2817
    %v2819 = vpop.f32.mrb[0].mxu0
    %v2820 = vpop.f32.mrb[0].mxu0
    %v2821 = vadd.f32 %v533, %v2820
    %v2822 = vpop.f32.mrb[0].mxu0
    %2823 = vdwg.mxu0
    %v2824 = vsel %vm703, %v2730, -inf
    %2825 = vmax.xlane.f32.xlu0 %v2824
    %v2826 = vpop.xlane.xlu0 %2825
    %v2827 = vsel %vm703, %v2733, -inf
    %2828 = vmax.xlane.f32.xlu0 %v2827
    %v2829 = vpop.xlane.xlu0 %2828
    %v2830 = vsel %vm703, %v2738, -inf
    %2831 = vmax.xlane.f32.xlu0 %v2830
    %v2832 = vpop.xlane.xlu0 %2831
    %v2833 = vsel %vm703, %v2741, -inf
    %2834 = vmax.xlane.f32.xlu0 %v2833
    %v2835 = vpop.xlane.xlu0 %2834
    %v2836 = vsel %vm703, %v2746, -inf
    %2837 = vmax.xlane.f32.xlu0 %v2836
    %v2838 = vpop.xlane.xlu0 %2837
    %v2839 = vsel %vm703, %v2749, -inf
    %2840 = vmax.xlane.f32.xlu0 %v2839
    %v2841 = vpop.xlane.xlu0 %2840
    %v2842 = vsel %vm703, %v2754, -inf
    %2843 = vmax.xlane.f32.xlu0 %v2842
    %v2844 = vpop.xlane.xlu0 %2843
    %v2845 = vsel %vm703, %v2757, -inf
    %2846 = vmax.xlane.f32.xlu0 %v2845
    %v2847 = vpop.xlane.xlu0 %2846
    %v2848 = vsel %vm703, %v2762, -inf
    %2849 = vmax.xlane.f32.xlu0 %v2848
    %v2850 = vpop.xlane.xlu0 %2849
    %v2851 = vsel %vm703, %v2765, -inf
    %2852 = vmax.xlane.f32.xlu0 %v2851
    %v2853 = vpop.xlane.xlu0 %2852
    %v2854 = vsel %vm703, %v2770, -inf
    %2855 = vmax.xlane.f32.xlu0 %v2854
    %v2856 = vpop.xlane.xlu0 %2855
    %v2857 = vsel %vm703, %v2773, -inf
    %2858 = vmax.xlane.f32.xlu0 %v2857
    %v2859 = vpop.xlane.xlu0 %2858
    %v2860 = vsel %vm703, %v2778, -inf
    %2861 = vmax.xlane.f32.xlu0 %v2860
    %v2862 = vpop.xlane.xlu0 %2861
    %v2863 = vsel %vm703, %v2781, -inf
    %2864 = vmax.xlane.f32.xlu0 %v2863
    %v2865 = vpop.xlane.xlu0 %2864
    %v2866 = vsel %vm703, %v2786, -inf
    %2867 = vmax.xlane.f32.xlu0 %v2866
    %v2868 = vpop.xlane.xlu0 %2867
    %v2869 = vsel %vm703, %v2789, -inf
    %2870 = vmax.xlane.f32.xlu0 %v2869
    %v2871 = vpop.xlane.xlu0 %2870
    %v2872 = vsel %vm703, %v2794, -inf
    %2873 = vmax.xlane.f32.xlu0 %v2872
    %v2874 = vpop.xlane.xlu0 %2873
    %v2875 = vsel %vm703, %v2797, -inf
    %2876 = vmax.xlane.f32.xlu0 %v2875
    %v2877 = vpop.xlane.xlu0 %2876
    %v2878 = vsel %vm703, %v2802, -inf
    %2879 = vmax.xlane.f32.xlu0 %v2878
    %v2880 = vpop.xlane.xlu0 %2879
    %v2881 = vsel %vm703, %v2805, -inf
    %2882 = vmax.xlane.f32.xlu0 %v2881
    %v2883 = vpop.xlane.xlu0 %2882
    %v2884 = vsel %vm703, %v2810, -inf
    %2885 = vmax.xlane.f32.xlu0 %v2884
    %v2886 = vpop.xlane.xlu0 %2885
    %v2887 = vsel %vm703, %v2813, -inf
    %2888 = vmax.xlane.f32.xlu0 %v2887
    %v2889 = vpop.xlane.xlu0 %2888
    %v2890 = vsel %vm703, %v2818, -inf
    %2891 = vmax.xlane.f32.xlu0 %v2890
    %v2892 = vpop.xlane.xlu0 %2891
    %v2893 = vsel %vm703, %v2821, -inf
    %2894 = vmax.xlane.f32.xlu0 %v2893
    %v2895 = vpop.xlane.xlu0 %2894
    %v2896 = vsub.f32 %v2730, %v2826
    %v2897 = vsub.f32 %v2733, %v2829
    %v2898 = vsub.f32 %v2738, %v2832
    %v2899 = vsub.f32 %v2741, %v2835
    %v2900 = vsub.f32 %v2746, %v2838
    %v2901 = vsub.f32 %v2749, %v2841
    %v2902 = vsub.f32 %v2754, %v2844
    %v2903 = vsub.f32 %v2757, %v2847
    %v2904 = vsub.f32 %v2762, %v2850
    %v2905 = vsub.f32 %v2765, %v2853
    %v2906 = vsub.f32 %v2770, %v2856
    %v2907 = vsub.f32 %v2773, %v2859
    %v2908 = vsub.f32 %v2778, %v2862
    %v2909 = vsub.f32 %v2781, %v2865
    %v2910 = vsub.f32 %v2786, %v2868
    %v2911 = vsub.f32 %v2789, %v2871
    %v2912 = vsub.f32 %v2794, %v2874
    %v2913 = vsub.f32 %v2797, %v2877
    %v2914 = vsub.f32 %v2802, %v2880
    %v2915 = vsub.f32 %v2805, %v2883
    %v2916 = vsub.f32 %v2810, %v2886
    %v2917 = vsub.f32 %v2813, %v2889
    %v2918 = vsub.f32 %v2818, %v2892
    %v2919 = vsub.f32 %v2821, %v2895
    %v2920 = vmul.f32 %v2896, 1.442695
    %v2921 = vpow.pop %v2920
    %v2922 = vmul.f32 %v2897, 1.442695
    %v2923 = vpow.pop %v2922
    %v2924 = vmul.f32 %v2898, 1.442695
    %v2925 = vpow.pop %v2924
    %v2926 = vmul.f32 %v2899, 1.442695
    %v2927 = vpow.pop %v2926
    %v2928 = vmul.f32 %v2900, 1.442695
    %v2929 = vpow.pop %v2928
    %v2930 = vmul.f32 %v2901, 1.442695
    %v2931 = vpow.pop %v2930
    %v2932 = vmul.f32 %v2902, 1.442695
    %v2933 = vpow.pop %v2932
    %v2934 = vmul.f32 %v2903, 1.442695
    %v2935 = vpow.pop %v2934
    %v2936 = vmul.f32 %v2904, 1.442695
    %v2937 = vpow.pop %v2936
    %v2938 = vmul.f32 %v2905, 1.442695
    %v2939 = vpow.pop %v2938
    %v2940 = vmul.f32 %v2906, 1.442695
    %v2941 = vpow.pop %v2940
    %v2942 = vmul.f32 %v2907, 1.442695
    %v2943 = vpow.pop %v2942
    %v2944 = vmul.f32 %v2908, 1.442695
    %v2945 = vpow.pop %v2944
    %v2946 = vmul.f32 %v2909, 1.442695
    %v2947 = vpow.pop %v2946
    %v2948 = vmul.f32 %v2910, 1.442695
    %v2949 = vpow.pop %v2948
    %v2950 = vmul.f32 %v2911, 1.442695
    %v2951 = vpow.pop %v2950
    %v2952 = vmul.f32 %v2912, 1.442695
    %v2953 = vpow.pop %v2952
    %v2954 = vmul.f32 %v2913, 1.442695
    %v2955 = vpow.pop %v2954
    %v2956 = vmul.f32 %v2914, 1.442695
    %v2957 = vpow.pop %v2956
    %v2958 = vmul.f32 %v2915, 1.442695
    %v2959 = vpow.pop %v2958
    %v2960 = vmul.f32 %v2916, 1.442695
    %v2961 = vpow.pop %v2960
    %v2962 = vmul.f32 %v2917, 1.442695
    %v2963 = vpow.pop %v2962
    %v2964 = vmul.f32 %v2918, 1.442695
    %v2965 = vpow.pop %v2964
    %v2966 = vmul.f32 %v2919, 1.442695
    %v2967 = vpow.pop %v2966
    %v2968 = vsel %vm703, %v2921, 0.0
    %2969 = vadd.xlane.f32.xlu0 %v2968
    %v2970 = vpop.xlane.xlu0 %2969
    %v2971 = vsel %vm703, %v2923, 0.0
    %2972 = vadd.xlane.f32.xlu0 %v2971
    %v2973 = vpop.xlane.xlu0 %2972
    %v2974 = vsel %vm703, %v2925, 0.0
    %2975 = vadd.xlane.f32.xlu0 %v2974
    %v2976 = vpop.xlane.xlu0 %2975
    %v2977 = vsel %vm703, %v2927, 0.0
    %2978 = vadd.xlane.f32.xlu0 %v2977
    %v2979 = vpop.xlane.xlu0 %2978
    %v2980 = vsel %vm703, %v2929, 0.0
    %2981 = vadd.xlane.f32.xlu0 %v2980
    %v2982 = vpop.xlane.xlu0 %2981
    %v2983 = vsel %vm703, %v2931, 0.0
    %2984 = vadd.xlane.f32.xlu0 %v2983
    %v2985 = vpop.xlane.xlu0 %2984
    %v2986 = vsel %vm703, %v2933, 0.0
    %2987 = vadd.xlane.f32.xlu0 %v2986
    %v2988 = vpop.xlane.xlu0 %2987
    %v2989 = vsel %vm703, %v2935, 0.0
    %2990 = vadd.xlane.f32.xlu0 %v2989
    %v2991 = vpop.xlane.xlu0 %2990
    %v2992 = vsel %vm703, %v2937, 0.0
    %2993 = vadd.xlane.f32.xlu0 %v2992
    %v2994 = vpop.xlane.xlu0 %2993
    %v2995 = vsel %vm703, %v2939, 0.0
    %2996 = vadd.xlane.f32.xlu0 %v2995
    %v2997 = vpop.xlane.xlu0 %2996
    %v2998 = vsel %vm703, %v2941, 0.0
    %2999 = vadd.xlane.f32.xlu0 %v2998
    %v3000 = vpop.xlane.xlu0 %2999
    %v3001 = vsel %vm703, %v2943, 0.0
    %3002 = vadd.xlane.f32.xlu0 %v3001
    %v3003 = vpop.xlane.xlu0 %3002
    %v3004 = vsel %vm703, %v2945, 0.0
    %3005 = vadd.xlane.f32.xlu0 %v3004
    %v3006 = vpop.xlane.xlu0 %3005
    %v3007 = vsel %vm703, %v2947, 0.0
    %3008 = vadd.xlane.f32.xlu0 %v3007
    %v3009 = vpop.xlane.xlu0 %3008
    %v3010 = vsel %vm703, %v2949, 0.0
    %3011 = vadd.xlane.f32.xlu0 %v3010
    %v3012 = vpop.xlane.xlu0 %3011
    %v3013 = vsel %vm703, %v2951, 0.0
    %3014 = vadd.xlane.f32.xlu0 %v3013
    %v3015 = vpop.xlane.xlu0 %3014
    %v3016 = vsel %vm703, %v2953, 0.0
    %3017 = vadd.xlane.f32.xlu0 %v3016
    %v3018 = vpop.xlane.xlu0 %3017
    %v3019 = vsel %vm703, %v2955, 0.0
    %3020 = vadd.xlane.f32.xlu0 %v3019
    %v3021 = vpop.xlane.xlu0 %3020
    %v3022 = vsel %vm703, %v2957, 0.0
    %3023 = vadd.xlane.f32.xlu0 %v3022
    %v3024 = vpop.xlane.xlu0 %3023
    %v3025 = vsel %vm703, %v2959, 0.0
    %3026 = vadd.xlane.f32.xlu0 %v3025
    %v3027 = vpop.xlane.xlu0 %3026
    %v3028 = vsel %vm703, %v2961, 0.0
    %3029 = vadd.xlane.f32.xlu0 %v3028
    %v3030 = vpop.xlane.xlu0 %3029
    %v3031 = vsel %vm703, %v2963, 0.0
    %3032 = vadd.xlane.f32.xlu0 %v3031
    %v3033 = vpop.xlane.xlu0 %3032
    %v3034 = vsel %vm703, %v2965, 0.0
    %3035 = vadd.xlane.f32.xlu0 %v3034
    %v3036 = vpop.xlane.xlu0 %3035
    %v3037 = vsel %vm703, %v2967, 0.0
    %3038 = vadd.xlane.f32.xlu0 %v3037
    %v3039 = vpop.xlane.xlu0 %3038
    %v3040 = vrcp.pop %v2970
    %v3041 = vrcp.pop %v2973
    %v3042 = vrcp.pop %v2976
    %v3043 = vrcp.pop %v2979
    %v3044 = vrcp.pop %v2982
    %v3045 = vrcp.pop %v2985
    %v3046 = vrcp.pop %v2988
    %v3047 = vrcp.pop %v2991
    %v3048 = vrcp.pop %v2994
    %v3049 = vrcp.pop %v2997
    %v3050 = vrcp.pop %v3000
    %v3051 = vrcp.pop %v3003
    %v3052 = vrcp.pop %v3006
    %v3053 = vrcp.pop %v3009
    %v3054 = vrcp.pop %v3012
    %v3055 = vrcp.pop %v3015
    %v3056 = vrcp.pop %v3018
    %v3057 = vrcp.pop %v3021
    %v3058 = vrcp.pop %v3024
    %v3059 = vrcp.pop %v3027
    %v3060 = vrcp.pop %v3030
    %v3061 = vrcp.pop %v3033
    %v3062 = vrcp.pop %v3036
    %v3063 = vrcp.pop %v3039
    %v3064 = vmul.f32 %v2921, %v3040
    %v3065 = vmul.f32 %v2923, %v3041
    %v3066 = vmul.f32 %v2925, %v3042
    %v3067 = vmul.f32 %v2927, %v3043
    %v3068 = vmul.f32 %v2929, %v3044
    %v3069 = vmul.f32 %v2931, %v3045
    %v3070 = vmul.f32 %v2933, %v3046
    %v3071 = vmul.f32 %v2935, %v3047
    %v3072 = vmul.f32 %v2937, %v3048
    %v3073 = vmul.f32 %v2939, %v3049
    %v3074 = vmul.f32 %v2941, %v3050
    %v3075 = vmul.f32 %v2943, %v3051
    %v3076 = vmul.f32 %v2945, %v3052
    %v3077 = vmul.f32 %v2947, %v3053
    %v3078 = vmul.f32 %v2949, %v3054
    %v3079 = vmul.f32 %v2951, %v3055
    %v3080 = vmul.f32 %v2953, %v3056
    %v3081 = vmul.f32 %v2955, %v3057
    %v3082 = vmul.f32 %v2957, %v3058
    %v3083 = vmul.f32 %v2959, %v3059
    %v3084 = vmul.f32 %v2961, %v3060
    %v3085 = vmul.f32 %v2963, %v3061
    %v3086 = vmul.f32 %v2965, %v3062
    %v3087 = vmul.f32 %v2967, %v3063
    %3088 = vst.msk [vmem:[%s22] sm:$0xff] %vm703, %v3064
    %3089 = vst.msk [vmem:[%s22 + $0x8] sm:$0xff] %vm703, %v3065
    %3090 = vst.msk [vmem:[%s22 + $0x10] sm:$0xff] %vm703, %v3066
    %3091 = vst.msk [vmem:[%s22 + $0x18] sm:$0xff] %vm703, %v3067
    %3092 = vst.msk [vmem:[%s22 + $0x20] sm:$0xff] %vm703, %v3068
    %3093 = vst.msk [vmem:[%s22 + $0x28] sm:$0xff] %vm703, %v3069
    %3094 = vst.msk [vmem:[%s22 + $0x30] sm:$0xff] %vm703, %v3070
    %3095 = vst.msk [vmem:[%s22 + $0x38] sm:$0xff] %vm703, %v3071
    %3096 = vst.msk [vmem:[%s22 + $0x40] sm:$0xff] %vm703, %v3072
    %3097 = vst.msk [vmem:[%s22 + $0x48] sm:$0xff] %vm703, %v3073
    %3098 = vst.msk [vmem:[%s22 + $0x50] sm:$0xff] %vm703, %v3074
    %3099 = vst.msk [vmem:[%s22 + $0x58] sm:$0xff] %vm703, %v3075
    %3100 = vst.msk [vmem:[%s22 + $0x60] sm:$0xff] %vm703, %v3076
    %3101 = vst.msk [vmem:[%s22 + $0x68] sm:$0xff] %vm703, %v3077
    %3102 = vst.msk [vmem:[%s22 + $0x70] sm:$0xff] %vm703, %v3078
    %3103 = vst.msk [vmem:[%s22 + $0x78] sm:$0xff] %vm703, %v3079
    %3104 = vst.msk [vmem:[%s22 + $0x80] sm:$0xff] %vm703, %v3080
    %3105 = vst.msk [vmem:[%s22 + $0x88] sm:$0xff] %vm703, %v3081
    %3106 = vst.msk [vmem:[%s22 + $0x90] sm:$0xff] %vm703, %v3082
    %3107 = vst.msk [vmem:[%s22 + $0x98] sm:$0xff] %vm703, %v3083
    %3108 = vst.msk [vmem:[%s22 + $0xa0] sm:$0xff] %vm703, %v3084
    %3109 = vst.msk [vmem:[%s22 + $0xa8] sm:$0xff] %vm703, %v3085
    %3110 = vst.msk [vmem:[%s22 + $0xb0] sm:$0xff] %vm703, %v3086
    %3111 = vst.msk [vmem:[%s22 + $0xb8] sm:$0xff] %vm703, %v3087
    %3115 = vrot.lane.b32.xlu0 %v3067, 24
    %v3116 = vpop.permute.xlu0 %3115
    %3117 = vrot.lane.b32.xlu0 %v3068, 24
    %v3118 = vpop.permute.xlu0 %3117
    %3119 = vrot.lane.b32.xlu0 %v3069, 24
    %v3120 = vpop.permute.xlu0 %3119
    %3127 = vrot.lane.b32.xlu0 %v3070, 48
    %v3128 = vpop.permute.xlu0 %3127
    %3129 = vrot.lane.b32.xlu0 %v3071, 48
    %v3130 = vpop.permute.xlu0 %3129
    %3131 = vrot.lane.b32.xlu0 %v3072, 48
    %v3132 = vpop.permute.xlu0 %3131
    %3139 = vrot.lane.b32.xlu0 %v3073, 72
    %v3140 = vpop.permute.xlu0 %3139
    %3141 = vrot.lane.b32.xlu0 %v3074, 72
    %v3142 = vpop.permute.xlu0 %3141
    %3143 = vrot.lane.b32.xlu0 %v3075, 72
    %v3144 = vpop.permute.xlu0 %3143
    %3151 = vrot.lane.b32.xlu0 %v3076, 96
    %v3152 = vpop.permute.xlu0 %3151
    %3153 = vrot.lane.b32.xlu0 %v3077, 96
    %v3154 = vpop.permute.xlu0 %3153
    %3155 = vrot.lane.b32.xlu0 %v3078, 96
    %v3156 = vpop.permute.xlu0 %3155
    %3163 = vrot.lane.b32.xlu0 %v3079, 120
    %v3164 = vpop.permute.xlu0 %3163
    %3165 = vrot.lane.b32.xlu0 %v3080, 120
    %v3166 = vpop.permute.xlu0 %3165
    %3167 = vrot.lane.b32.xlu0 %v3081, 120
    %v3168 = vpop.permute.xlu0 %3167
    %3175 = vrot.lane.b32.xlu0 %v3082, 16
    %v3176 = vpop.permute.xlu0 %3175
    %3177 = vrot.lane.b32.xlu0 %v3083, 16
    %v3178 = vpop.permute.xlu0 %3177
    %3179 = vrot.lane.b32.xlu0 %v3084, 16
    %v3180 = vpop.permute.xlu0 %3179
    %3187 = vrot.lane.b32.xlu0 %v3085, 40
    %v3188 = vpop.permute.xlu0 %3187
    %3189 = vrot.lane.b32.xlu0 %v3086, 40
    %v3190 = vpop.permute.xlu0 %3189
    %3191 = vrot.lane.b32.xlu0 %v3087, 40
    %v3192 = vpop.permute.xlu0 %3191
    %v3196 = vsel %vm703, %v3064, %v3116
    %v3197 = vsel %vm703, %v3065, %v3118
    %v3198 = vsel %vm703, %v3066, %v3120
    %v3199 = vsel %vm1055, %v3196, %v3128
    %v3200 = vsel %vm1055, %v3197, %v3130
    %v3201 = vsel %vm1055, %v3198, %v3132
    %v3202 = vsel %vm1059, %v3199, %v3140
    %v3203 = vsel %vm1059, %v3200, %v3142
    %v3204 = vsel %vm1059, %v3201, %v3144
    %v3205 = vsel %vm1063, %v3202, %v3152
    %v3206 = vsel %vm1063, %v3203, %v3154
    %v3207 = vsel %vm1063, %v3204, %v3156
    %v3208 = vsel %vm1067, %v3205, %v3164
    %v3209 = vsel %vm1067, %v3206, %v3166
    %v3210 = vsel %vm1067, %v3207, %v3168
    %v3211 = vsel %vm1071, %v3164, %v3176
    %v3212 = vsel %vm1071, %v3166, %v3178
    %v3213 = vsel %vm1071, %v3168, %v3180
    %v3214 = vsel %vm1075, %v3211, %v3188
    %v3215 = vsel %vm1075, %v3212, %v3190
    %v3216 = vsel %vm1075, %v3213, %v3192
    %v3217 = vpack.c.bf16 %v3209, %v3208
    %v3218 = vpack.c.bf16 %v3215, %v3214
    %v3219 = vpack.c.bf16 %v3210, %v3210
    %v3220 = vpack.c.bf16 %v3216, %v3216
    %v3221 = vpack.c.bf16 %v2499, %v2495
    %v3222 = vpack.c.bf16 %v2587, %v2505
    %v3223 = vpack.c.bf16 %v2591, %v2589
    %v3224 = vpack.c.bf16 %v2598, %v2596
    %v3225 = vpack.c.bf16 %v2605, %v2600
    %v3226 = vpack.c.bf16 %v2609, %v2607
    %v3227 = vpack.c.bf16 %v2501, %v2497
    %v3228 = vpack.c.bf16 %v2617, %v2507
    %v3229 = vpack.c.bf16 %v2621, %v2619
    %v3230 = vpack.c.bf16 %v2628, %v2626
    %v3231 = vpack.c.bf16 %v2635, %v2630
    %v3232 = vpack.c.bf16 %v2639, %v2637
    %v3234 = vsel %vm1095, %v3218, 0
    %v3237 = vsel %vm1095, %v3220, 0
    %3239 = vmatprep.subr.bf16.mxu0 0
    %3240 = vmatpush1.bf16.msra.mxu0 %v3221
    %3241 = vmatprep.subr.bf16.mxu0 0
    %3242 = vmatpush1.bf16.msra.mxu0 %v3222
    %3243 = vmatprep.subr.bf16.mxu0 0
    %3244 = vmatpush1.bf16.msra.mxu0 %v3223
    %3245 = vmatprep.subr.bf16.mxu0 0
    %3246 = vmatpush1.bf16.msra.mxu0 %v3224
    %3247 = vmatprep.subr.bf16.mxu0 0
    %3248 = vmatpush1.bf16.msra.mxu0 %v3225
    %3249 = vmatprep.subr.bf16.mxu0 0
    %3250 = vmatpush1.bf16.msra.mxu0 %v3226
    %3251 = vmatprep.subr.bf16.mxu0 0
    %3252 = vmatpush1.bf16.msra.mxu0 %v3227
    %3253 = vmatprep.subr.bf16.mxu0 0
    %3254 = vmatpush1.bf16.msra.mxu0 %v3228
    %3255 = vmatprep.subr.bf16.mxu0 0
    %3256 = vmatpush1.bf16.msra.mxu0 %v3229
    %3257 = vmatprep.subr.bf16.mxu0 0
    %3258 = vmatpush1.bf16.msra.mxu0 %v3230
    %3259 = vmatprep.subr.bf16.mxu0 0
    %3260 = vmatpush1.bf16.msra.mxu0 %v3231
    %3261 = vmatprep.subr.bf16.mxu0 0
    %3262 = vmatpush1.bf16.msra.mxu0 %v3232
    %3263 = vmatprep.subr.bf16.mxu0 0
    %3264 = vmatpush1.bf16.msra.mxu0 0
    %3265 = vmatprep.subr.bf16.mxu0 0
    %3266 = vmatpush1.bf16.msra.mxu0 0
    %3267 = vmatprep.subr.bf16.mxu0 0
    %3268 = vmatpush1.bf16.msra.mxu0 0
    %3269 = vmatprep.subr.bf16.mxu0 0
    %3270 = vmatpush1.bf16.msra.mxu0 0
    %3271 = vmatprep.mubr.bf16.mxu0 %v3234
    %3272 = vmatmul.mubr.bf16.gmra.mrb[0].mxu0 %v3217
    %v3273 = vpop.f32.mrb[0].mxu0
    %v3274 = vadd.f32 0.0, %v3273
    %v3275 = vpop.f32.mrb[0].mxu0
    %v3276 = vpop.f32.mrb[0].mxu0
    %v3277 = vadd.f32 0.0, %v3276
    %v3278 = vpop.f32.mrb[0].mxu0
    %3279 = vmatprep.mubr.bf16.mxu0 %v3237
    %3280 = vmatmul.mubr.bf16.gmra.mrb[0].mxu0 %v3219
    %v3281 = vpop.f32.mrb[0].mxu0
    %v3282 = vadd.f32 0.0, %v3281
    %v3283 = vpop.f32.mrb[0].mxu0
    %v3284 = vpop.f32.mrb[0].mxu0
    %v3285 = vpop.f32.mrb[0].mxu0
    %3286 = vdwg.mxu0
    %v3287 = vadd.f32 %v2330, %v3274
    %v3288 = vadd.f32 %v2331, %v3277
    %v3289 = vadd.f32 %v2332, %v3282
    %3293 = vrot.lane.b32.xlu0 %v2446, 96
    %v3294 = vpop.permute.xlu0 %3293
    %3295 = vrot.lane.b32.xlu0 %v2452, 96
    %v3296 = vpop.permute.xlu0 %3295
    %3297 = vrot.lane.b32.xlu0 %v2456, 96
    %v3298 = vpop.permute.xlu0 %3297
    %3302 = vrot.lane.b32.xlu0 %v2446, 64
    %v3303 = vpop.permute.xlu0 %3302
    %3304 = vrot.lane.b32.xlu0 %v2452, 64
    %v3305 = vpop.permute.xlu0 %3304
    %3306 = vrot.lane.b32.xlu0 %v2456, 64
    %v3307 = vpop.permute.xlu0 %3306
    %3311 = vrot.lane.b32.xlu0 %v2446, 32
    %v3312 = vpop.permute.xlu0 %3311
    %3313 = vrot.lane.b32.xlu0 %v2452, 32
    %v3314 = vpop.permute.xlu0 %3313
    %3315 = vrot.lane.b32.xlu0 %v2456, 32
    %v3316 = vpop.permute.xlu0 %3315
    %3323 = vrot.lane.b32.xlu0 %v2448, 96
    %v3324 = vpop.permute.xlu0 %3323
    %3325 = vrot.lane.b32.xlu0 %v2454, 96
    %v3326 = vpop.permute.xlu0 %3325
    %3327 = vrot.lane.b32.xlu0 %v2458, 96
    %v3328 = vpop.permute.xlu0 %3327
    %3332 = vrot.lane.b32.xlu0 %v2448, 64
    %v3333 = vpop.permute.xlu0 %3332
    %3334 = vrot.lane.b32.xlu0 %v2454, 64
    %v3335 = vpop.permute.xlu0 %3334
    %3336 = vrot.lane.b32.xlu0 %v2458, 64
    %v3337 = vpop.permute.xlu0 %3336
    %3341 = vrot.lane.b32.xlu0 %v2448, 32
    %v3342 = vpop.permute.xlu0 %3341
    %3343 = vrot.lane.b32.xlu0 %v2454, 32
    %v3344 = vpop.permute.xlu0 %3343
    %3345 = vrot.lane.b32.xlu0 %v2458, 32
    %v3346 = vpop.permute.xlu0 %3345
    %3353 = vrot.lane.b32.xlu0 %v2509, 96
    %v3354 = vpop.permute.xlu0 %3353
    %3355 = vrot.lane.b32.xlu0 %v2515, 96
    %v3356 = vpop.permute.xlu0 %3355
    %3357 = vrot.lane.b32.xlu0 %v2519, 96
    %v3358 = vpop.permute.xlu0 %3357
    %3362 = vrot.lane.b32.xlu0 %v2509, 64
    %v3363 = vpop.permute.xlu0 %3362
    %3364 = vrot.lane.b32.xlu0 %v2515, 64
    %v3365 = vpop.permute.xlu0 %3364
    %3366 = vrot.lane.b32.xlu0 %v2519, 64
    %v3367 = vpop.permute.xlu0 %3366
    %3371 = vrot.lane.b32.xlu0 %v2509, 32
    %v3372 = vpop.permute.xlu0 %3371
    %3373 = vrot.lane.b32.xlu0 %v2515, 32
    %v3374 = vpop.permute.xlu0 %3373
    %3375 = vrot.lane.b32.xlu0 %v2519, 32
    %v3376 = vpop.permute.xlu0 %3375
    %3383 = vrot.lane.b32.xlu0 %v2511, 96
    %v3384 = vpop.permute.xlu0 %3383
    %3385 = vrot.lane.b32.xlu0 %v2517, 96
    %v3386 = vpop.permute.xlu0 %3385
    %3387 = vrot.lane.b32.xlu0 %v2521, 96
    %v3388 = vpop.permute.xlu0 %3387
    %3392 = vrot.lane.b32.xlu0 %v2511, 64
    %v3393 = vpop.permute.xlu0 %3392
    %3394 = vrot.lane.b32.xlu0 %v2517, 64
    %v3395 = vpop.permute.xlu0 %3394
    %3396 = vrot.lane.b32.xlu0 %v2521, 64
    %v3397 = vpop.permute.xlu0 %3396
    %3401 = vrot.lane.b32.xlu0 %v2511, 32
    %v3402 = vpop.permute.xlu0 %3401
    %3403 = vrot.lane.b32.xlu0 %v2517, 32
    %v3404 = vpop.permute.xlu0 %3403
    %3405 = vrot.lane.b32.xlu0 %v2521, 32
    %v3406 = vpop.permute.xlu0 %3405
    %v3410 = vpack.c.bf16 %v2452, %v2446
    %v3411 = vpack.c.bf16 %v3294, %v2456
    %v3412 = vpack.c.bf16 %v3298, %v3296
    %v3413 = vpack.c.bf16 %v3305, %v3303
    %v3414 = vpack.c.bf16 %v3312, %v3307
    %v3415 = vpack.c.bf16 %v3316, %v3314
    %v3416 = vpack.c.bf16 %v2454, %v2448
    %v3417 = vpack.c.bf16 %v3324, %v2458
    %v3418 = vpack.c.bf16 %v3328, %v3326
    %v3419 = vpack.c.bf16 %v3335, %v3333
    %v3420 = vpack.c.bf16 %v3342, %v3337
    %v3421 = vpack.c.bf16 %v3346, %v3344
    %v3422 = vpack.c.bf16 %v2334, %v2333
    %v3423 = vpack.c.bf16 %v2335, %v2335
    %v3425 = vsel %vm260, %v3410, 0
    %v3428 = vsel %vm260, %v3411, 0
    %v3431 = vsel %vm260, %v3412, 0
    %v3434 = vsel %vm260, %v3413, 0
    %v3437 = vsel %vm260, %v3414, 0
    %v3440 = vsel %vm260, %v3415, 0
    %v3443 = vsel %vm260, %v3416, 0
    %v3446 = vsel %vm260, %v3417, 0
    %v3449 = vsel %vm260, %v3418, 0
    %v3452 = vsel %vm260, %v3419, 0
    %v3455 = vsel %vm260, %v3420, 0
    %v3458 = vsel %vm260, %v3421, 0
    %v3461 = vsel %vm260, %v3422, 0
    %v3464 = vsel %vm260, %v3423, 0
    %3466 = vmatprep.subr.bf16.mxu0 0
    %3467 = vmatpush1.bf16.xpose.msra.mxu0 %v3461
    %3468 = vmatprep.subr.bf16.mxu0 0
    %3469 = vmatpush1.bf16.xpose.msra.mxu0 %v3464
    %3470 = vmatprep.subr.bf16.mxu0 0
    %3471 = vmatpush1.bf16.xpose.msra.mxu0 0
    %3472 = vmatprep.subr.bf16.mxu0 0
    %3473 = vmatpush1.bf16.xpose.msra.mxu0 0
    %3474 = vmatprep.subr.bf16.mxu0 0
    %3475 = vmatpush1.bf16.xpose.msra.mxu0 0
    %3476 = vmatprep.subr.bf16.mxu0 0
    %3477 = vmatpush1.bf16.xpose.msra.mxu0 0
    %3478 = vmatprep.subr.bf16.mxu0 0
    %3479 = vmatpush1.bf16.xpose.msra.mxu0 0
    %3480 = vmatprep.subr.bf16.mxu0 0
    %3481 = vmatpush1.bf16.xpose.msra.mxu0 0
    %3482 = vmatprep.subr.bf16.mxu0 0
    %3483 = vmatpush1.bf16.xpose.msra.mxu0 0
    %3484 = vmatprep.subr.bf16.mxu0 0
    %3485 = vmatpush1.bf16.xpose.msra.mxu0 0
    %3486 = vmatprep.subr.bf16.mxu0 0
    %3487 = vmatpush1.bf16.xpose.msra.mxu0 0
    %3488 = vmatprep.subr.bf16.mxu0 0
    %3489 = vmatpush1.bf16.xpose.msra.mxu0 0
    %3490 = vmatprep.subr.bf16.mxu0 0
    %3491 = vmatpush1.bf16.xpose.msra.mxu0 0
    %3492 = vmatprep.subr.bf16.mxu0 0
    %3493 = vmatpush1.bf16.xpose.msra.mxu0 0
    %3494 = vmatprep.subr.bf16.mxu0 0
    %3495 = vmatpush1.bf16.xpose.msra.mxu0 0
    %3496 = vmatprep.subr.bf16.mxu0 0
    %3497 = vmatpush1.bf16.xpose.msra.mxu0 0
    %3498 = vmatprep.mubr.bf16.mxu0 0
    %3499 = vmatmul.mubr.bf16.gmra.mrb[0].mxu0 %v3425
    %v3500 = vpop.f32.mrb[0].mxu0
    %v3501 = vadd.f32 %v533, %v3500
    %v3502 = vpop.f32.mrb[0].mxu0
    %v3503 = vpop.f32.mrb[0].mxu0
    %v3504 = vadd.f32 %v533, %v3503
    %v3505 = vpop.f32.mrb[0].mxu0
    %3506 = vmatprep.mubr.bf16.mxu0 0
    %3507 = vmatmul.mubr.bf16.gmra.mrb[0].mxu0 %v3428
    %v3508 = vpop.f32.mrb[0].mxu0
    %v3509 = vadd.f32 %v533, %v3508
    %v3510 = vpop.f32.mrb[0].mxu0
    %v3511 = vpop.f32.mrb[0].mxu0
    %v3512 = vadd.f32 %v533, %v3511
    %v3513 = vpop.f32.mrb[0].mxu0
    %3514 = vmatprep.mubr.bf16.mxu0 0
    %3515 = vmatmul.mubr.bf16.gmra.mrb[0].mxu0 %v3431
    %v3516 = vpop.f32.mrb[0].mxu0
    %v3517 = vadd.f32 %v533, %v3516
    %v3518 = vpop.f32.mrb[0].mxu0
    %v3519 = vpop.f32.mrb[0].mxu0
    %v3520 = vadd.f32 %v533, %v3519
    %v3521 = vpop.f32.mrb[0].mxu0
    %3522 = vmatprep.mubr.bf16.mxu0 0
    %3523 = vmatmul.mubr.bf16.gmra.mrb[0].mxu0 %v3434
    %v3524 = vpop.f32.mrb[0].mxu0
    %v3525 = vadd.f32 %v533, %v3524
    %v3526 = vpop.f32.mrb[0].mxu0
    %v3527 = vpop.f32.mrb[0].mxu0
    %v3528 = vadd.f32 %v533, %v3527
    %v3529 = vpop.f32.mrb[0].mxu0
    %3530 = vmatprep.mubr.bf16.mxu0 0
    %3531 = vmatmul.mubr.bf16.gmra.mrb[0].mxu0 %v3437
    %v3532 = vpop.f32.mrb[0].mxu0
    %v3533 = vadd.f32 %v533, %v3532
    %v3534 = vpop.f32.mrb[0].mxu0
    %v3535 = vpop.f32.mrb[0].mxu0
    %v3536 = vadd.f32 %v533, %v3535
    %v3537 = vpop.f32.mrb[0].mxu0
    %3538 = vmatprep.mubr.bf16.mxu0 0
    %3539 = vmatmul.mubr.bf16.gmra.mrb[0].mxu0 %v3440
    %v3540 = vpop.f32.mrb[0].mxu0
    %v3541 = vadd.f32 %v533, %v3540
    %v3542 = vpop.f32.mrb[0].mxu0
    %v3543 = vpop.f32.mrb[0].mxu0
    %v3544 = vadd.f32 %v533, %v3543
    %v3545 = vpop.f32.mrb[0].mxu0
    %3546 = vmatprep.mubr.bf16.mxu0 0
    %3547 = vmatmul.mubr.bf16.gmra.mrb[0].mxu0 %v3443
    %v3548 = vpop.f32.mrb[0].mxu0
    %v3549 = vadd.f32 %v533, %v3548
    %v3550 = vpop.f32.mrb[0].mxu0
    %v3551 = vpop.f32.mrb[0].mxu0
    %v3552 = vadd.f32 %v533, %v3551
    %v3553 = vpop.f32.mrb[0].mxu0
    %3554 = vmatprep.mubr.bf16.mxu0 0
    %3555 = vmatmul.mubr.bf16.gmra.mrb[0].mxu0 %v3446
    %v3556 = vpop.f32.mrb[0].mxu0
    %v3557 = vadd.f32 %v533, %v3556
    %v3558 = vpop.f32.mrb[0].mxu0
    %v3559 = vpop.f32.mrb[0].mxu0
    %v3560 = vadd.f32 %v533, %v3559
    %v3561 = vpop.f32.mrb[0].mxu0
    %3562 = vmatprep.mubr.bf16.mxu0 0
    %3563 = vmatmul.mubr.bf16.gmra.mrb[0].mxu0 %v3449
    %v3564 = vpop.f32.mrb[0].mxu0
    %v3565 = vadd.f32 %v533, %v3564
    %v3566 = vpop.f32.mrb[0].mxu0
    %v3567 = vpop.f32.mrb[0].mxu0
    %v3568 = vadd.f32 %v533, %v3567
    %v3569 = vpop.f32.mrb[0].mxu0
    %3570 = vmatprep.mubr.bf16.mxu0 0
    %3571 = vmatmul.mubr.bf16.gmra.mrb[0].mxu0 %v3452
    %v3572 = vpop.f32.mrb[0].mxu0
    %v3573 = vadd.f32 %v533, %v3572
    %v3574 = vpop.f32.mrb[0].mxu0
    %v3575 = vpop.f32.mrb[0].mxu0
    %v3576 = vadd.f32 %v533, %v3575
    %v3577 = vpop.f32.mrb[0].mxu0
    %3578 = vmatprep.mubr.bf16.mxu0 0
    %3579 = vmatmul.mubr.bf16.gmra.mrb[0].mxu0 %v3455
    %v3580 = vpop.f32.mrb[0].mxu0
    %v3581 = vadd.f32 %v533, %v3580
    %v3582 = vpop.f32.mrb[0].mxu0
    %v3583 = vpop.f32.mrb[0].mxu0
    %v3584 = vadd.f32 %v533, %v3583
    %v3585 = vpop.f32.mrb[0].mxu0
    %3586 = vmatprep.mubr.bf16.mxu0 0
    %3587 = vmatmul.mubr.bf16.gmra.mrb[0].mxu0 %v3458
    %v3588 = vpop.f32.mrb[0].mxu0
    %v3589 = vadd.f32 %v533, %v3588
    %v3590 = vpop.f32.mrb[0].mxu0
    %v3591 = vpop.f32.mrb[0].mxu0
    %v3592 = vadd.f32 %v533, %v3591
    %v3593 = vpop.f32.mrb[0].mxu0
    %3594 = vdwg.mxu0
    %v3595 = vsel %vm703, %v3501, -inf
    %3596 = vmax.xlane.f32.xlu0 %v3595
    %v3597 = vpop.xlane.xlu0 %3596
    %v3598 = vsel %vm703, %v3504, -inf
    %3599 = vmax.xlane.f32.xlu0 %v3598
    %v3600 = vpop.xlane.xlu0 %3599
    %v3601 = vsel %vm703, %v3509, -inf
    %3602 = vmax.xlane.f32.xlu0 %v3601
    %v3603 = vpop.xlane.xlu0 %3602
    %v3604 = vsel %vm703, %v3512, -inf
    %3605 = vmax.xlane.f32.xlu0 %v3604
    %v3606 = vpop.xlane.xlu0 %3605
    %v3607 = vsel %vm703, %v3517, -inf
    %3608 = vmax.xlane.f32.xlu0 %v3607
    %v3609 = vpop.xlane.xlu0 %3608
    %v3610 = vsel %vm703, %v3520, -inf
    %3611 = vmax.xlane.f32.xlu0 %v3610
    %v3612 = vpop.xlane.xlu0 %3611
    %v3613 = vsel %vm703, %v3525, -inf
    %3614 = vmax.xlane.f32.xlu0 %v3613
    %v3615 = vpop.xlane.xlu0 %3614
    %v3616 = vsel %vm703, %v3528, -inf
    %3617 = vmax.xlane.f32.xlu0 %v3616
    %v3618 = vpop.xlane.xlu0 %3617
    %v3619 = vsel %vm703, %v3533, -inf
    %3620 = vmax.xlane.f32.xlu0 %v3619
    %v3621 = vpop.xlane.xlu0 %3620
    %v3622 = vsel %vm703, %v3536, -inf
    %3623 = vmax.xlane.f32.xlu0 %v3622
    %v3624 = vpop.xlane.xlu0 %3623
    %v3625 = vsel %vm703, %v3541, -inf
    %3626 = vmax.xlane.f32.xlu0 %v3625
    %v3627 = vpop.xlane.xlu0 %3626
    %v3628 = vsel %vm703, %v3544, -inf
    %3629 = vmax.xlane.f32.xlu0 %v3628
    %v3630 = vpop.xlane.xlu0 %3629
    %v3631 = vsel %vm703, %v3549, -inf
    %3632 = vmax.xlane.f32.xlu0 %v3631
    %v3633 = vpop.xlane.xlu0 %3632
    %v3634 = vsel %vm703, %v3552, -inf
    %3635 = vmax.xlane.f32.xlu0 %v3634
    %v3636 = vpop.xlane.xlu0 %3635
    %v3637 = vsel %vm703, %v3557, -inf
    %3638 = vmax.xlane.f32.xlu0 %v3637
    %v3639 = vpop.xlane.xlu0 %3638
    %v3640 = vsel %vm703, %v3560, -inf
    %3641 = vmax.xlane.f32.xlu0 %v3640
    %v3642 = vpop.xlane.xlu0 %3641
    %v3643 = vsel %vm703, %v3565, -inf
    %3644 = vmax.xlane.f32.xlu0 %v3643
    %v3645 = vpop.xlane.xlu0 %3644
    %v3646 = vsel %vm703, %v3568, -inf
    %3647 = vmax.xlane.f32.xlu0 %v3646
    %v3648 = vpop.xlane.xlu0 %3647
    %v3649 = vsel %vm703, %v3573, -inf
    %3650 = vmax.xlane.f32.xlu0 %v3649
    %v3651 = vpop.xlane.xlu0 %3650
    %v3652 = vsel %vm703, %v3576, -inf
    %3653 = vmax.xlane.f32.xlu0 %v3652
    %v3654 = vpop.xlane.xlu0 %3653
    %v3655 = vsel %vm703, %v3581, -inf
    %3656 = vmax.xlane.f32.xlu0 %v3655
    %v3657 = vpop.xlane.xlu0 %3656
    %v3658 = vsel %vm703, %v3584, -inf
    %3659 = vmax.xlane.f32.xlu0 %v3658
    %v3660 = vpop.xlane.xlu0 %3659
    %v3661 = vsel %vm703, %v3589, -inf
    %3662 = vmax.xlane.f32.xlu0 %v3661
    %v3663 = vpop.xlane.xlu0 %3662
    %v3664 = vsel %vm703, %v3592, -inf
    %3665 = vmax.xlane.f32.xlu0 %v3664
    %v3666 = vpop.xlane.xlu0 %3665
    %v3667 = vsub.f32 %v3501, %v3597
    %v3668 = vsub.f32 %v3504, %v3600
    %v3669 = vsub.f32 %v3509, %v3603
    %v3670 = vsub.f32 %v3512, %v3606
    %v3671 = vsub.f32 %v3517, %v3609
    %v3672 = vsub.f32 %v3520, %v3612
    %v3673 = vsub.f32 %v3525, %v3615
    %v3674 = vsub.f32 %v3528, %v3618
    %v3675 = vsub.f32 %v3533, %v3621
    %v3676 = vsub.f32 %v3536, %v3624
    %v3677 = vsub.f32 %v3541, %v3627
    %v3678 = vsub.f32 %v3544, %v3630
    %v3679 = vsub.f32 %v3549, %v3633
    %v3680 = vsub.f32 %v3552, %v3636
    %v3681 = vsub.f32 %v3557, %v3639
    %v3682 = vsub.f32 %v3560, %v3642
    %v3683 = vsub.f32 %v3565, %v3645
    %v3684 = vsub.f32 %v3568, %v3648
    %v3685 = vsub.f32 %v3573, %v3651
    %v3686 = vsub.f32 %v3576, %v3654
    %v3687 = vsub.f32 %v3581, %v3657
    %v3688 = vsub.f32 %v3584, %v3660
    %v3689 = vsub.f32 %v3589, %v3663
    %v3690 = vsub.f32 %v3592, %v3666
    %v3691 = vmul.f32 %v3667, 1.442695
    %v3692 = vpow.pop %v3691
    %v3693 = vmul.f32 %v3668, 1.442695
    %v3694 = vpow.pop %v3693
    %v3695 = vmul.f32 %v3669, 1.442695
    %v3696 = vpow.pop %v3695
    %v3697 = vmul.f32 %v3670, 1.442695
    %v3698 = vpow.pop %v3697
    %v3699 = vmul.f32 %v3671, 1.442695
    %v3700 = vpow.pop %v3699
    %v3701 = vmul.f32 %v3672, 1.442695
    %v3702 = vpow.pop %v3701
    %v3703 = vmul.f32 %v3673, 1.442695
    %v3704 = vpow.pop %v3703
    %v3705 = vmul.f32 %v3674, 1.442695
    %v3706 = vpow.pop %v3705
    %v3707 = vmul.f32 %v3675, 1.442695
    %v3708 = vpow.pop %v3707
    %v3709 = vmul.f32 %v3676, 1.442695
    %v3710 = vpow.pop %v3709
    %v3711 = vmul.f32 %v3677, 1.442695
    %v3712 = vpow.pop %v3711
    %v3713 = vmul.f32 %v3678, 1.442695
    %v3714 = vpow.pop %v3713
    %v3715 = vmul.f32 %v3679, 1.442695
    %v3716 = vpow.pop %v3715
    %v3717 = vmul.f32 %v3680, 1.442695
    %v3718 = vpow.pop %v3717
    %v3719 = vmul.f32 %v3681, 1.442695
    %v3720 = vpow.pop %v3719
    %v3721 = vmul.f32 %v3682, 1.442695
    %v3722 = vpow.pop %v3721
    %v3723 = vmul.f32 %v3683, 1.442695
    %v3724 = vpow.pop %v3723
    %v3725 = vmul.f32 %v3684, 1.442695
    %v3726 = vpow.pop %v3725
    %v3727 = vmul.f32 %v3685, 1.442695
    %v3728 = vpow.pop %v3727
    %v3729 = vmul.f32 %v3686, 1.442695
    %v3730 = vpow.pop %v3729
    %v3731 = vmul.f32 %v3687, 1.442695
    %v3732 = vpow.pop %v3731
    %v3733 = vmul.f32 %v3688, 1.442695
    %v3734 = vpow.pop %v3733
    %v3735 = vmul.f32 %v3689, 1.442695
    %v3736 = vpow.pop %v3735
    %v3737 = vmul.f32 %v3690, 1.442695
    %v3738 = vpow.pop %v3737
    %v3739 = vsel %vm703, %v3692, 0.0
    %3740 = vadd.xlane.f32.xlu0 %v3739
    %v3741 = vpop.xlane.xlu0 %3740
    %v3742 = vsel %vm703, %v3694, 0.0
    %3743 = vadd.xlane.f32.xlu0 %v3742
    %v3744 = vpop.xlane.xlu0 %3743
    %v3745 = vsel %vm703, %v3696, 0.0
    %3746 = vadd.xlane.f32.xlu0 %v3745
    %v3747 = vpop.xlane.xlu0 %3746
    %v3748 = vsel %vm703, %v3698, 0.0
    %3749 = vadd.xlane.f32.xlu0 %v3748
    %v3750 = vpop.xlane.xlu0 %3749
    %v3751 = vsel %vm703, %v3700, 0.0
    %3752 = vadd.xlane.f32.xlu0 %v3751
    %v3753 = vpop.xlane.xlu0 %3752
    %v3754 = vsel %vm703, %v3702, 0.0
    %3755 = vadd.xlane.f32.xlu0 %v3754
    %v3756 = vpop.xlane.xlu0 %3755
    %v3757 = vsel %vm703, %v3704, 0.0
    %3758 = vadd.xlane.f32.xlu0 %v3757
    %v3759 = vpop.xlane.xlu0 %3758
    %v3760 = vsel %vm703, %v3706, 0.0
    %3761 = vadd.xlane.f32.xlu0 %v3760
    %v3762 = vpop.xlane.xlu0 %3761
    %v3763 = vsel %vm703, %v3708, 0.0
    %3764 = vadd.xlane.f32.xlu0 %v3763
    %v3765 = vpop.xlane.xlu0 %3764
    %v3766 = vsel %vm703, %v3710, 0.0
    %3767 = vadd.xlane.f32.xlu0 %v3766
    %v3768 = vpop.xlane.xlu0 %3767
    %v3769 = vsel %vm703, %v3712, 0.0
    %3770 = vadd.xlane.f32.xlu0 %v3769
    %v3771 = vpop.xlane.xlu0 %3770
    %v3772 = vsel %vm703, %v3714, 0.0
    %3773 = vadd.xlane.f32.xlu0 %v3772
    %v3774 = vpop.xlane.xlu0 %3773
    %v3775 = vsel %vm703, %v3716, 0.0
    %3776 = vadd.xlane.f32.xlu0 %v3775
    %v3777 = vpop.xlane.xlu0 %3776
    %v3778 = vsel %vm703, %v3718, 0.0
    %3779 = vadd.xlane.f32.xlu0 %v3778
    %v3780 = vpop.xlane.xlu0 %3779
    %v3781 = vsel %vm703, %v3720, 0.0
    %3782 = vadd.xlane.f32.xlu0 %v3781
    %v3783 = vpop.xlane.xlu0 %3782
    %v3784 = vsel %vm703, %v3722, 0.0
    %3785 = vadd.xlane.f32.xlu0 %v3784
    %v3786 = vpop.xlane.xlu0 %3785
    %v3787 = vsel %vm703, %v3724, 0.0
    %3788 = vadd.xlane.f32.xlu0 %v3787
    %v3789 = vpop.xlane.xlu0 %3788
    %v3790 = vsel %vm703, %v3726, 0.0
    %3791 = vadd.xlane.f32.xlu0 %v3790
    %v3792 = vpop.xlane.xlu0 %3791
    %v3793 = vsel %vm703, %v3728, 0.0
    %3794 = vadd.xlane.f32.xlu0 %v3793
    %v3795 = vpop.xlane.xlu0 %3794
    %v3796 = vsel %vm703, %v3730, 0.0
    %3797 = vadd.xlane.f32.xlu0 %v3796
    %v3798 = vpop.xlane.xlu0 %3797
    %v3799 = vsel %vm703, %v3732, 0.0
    %3800 = vadd.xlane.f32.xlu0 %v3799
    %v3801 = vpop.xlane.xlu0 %3800
    %v3802 = vsel %vm703, %v3734, 0.0
    %3803 = vadd.xlane.f32.xlu0 %v3802
    %v3804 = vpop.xlane.xlu0 %3803
    %v3805 = vsel %vm703, %v3736, 0.0
    %3806 = vadd.xlane.f32.xlu0 %v3805
    %v3807 = vpop.xlane.xlu0 %3806
    %v3808 = vsel %vm703, %v3738, 0.0
    %3809 = vadd.xlane.f32.xlu0 %v3808
    %v3810 = vpop.xlane.xlu0 %3809
    %v3811 = vrcp.pop %v3741
    %v3812 = vrcp.pop %v3744
    %v3813 = vrcp.pop %v3747
    %v3814 = vrcp.pop %v3750
    %v3815 = vrcp.pop %v3753
    %v3816 = vrcp.pop %v3756
    %v3817 = vrcp.pop %v3759
    %v3818 = vrcp.pop %v3762
    %v3819 = vrcp.pop %v3765
    %v3820 = vrcp.pop %v3768
    %v3821 = vrcp.pop %v3771
    %v3822 = vrcp.pop %v3774
    %v3823 = vrcp.pop %v3777
    %v3824 = vrcp.pop %v3780
    %v3825 = vrcp.pop %v3783
    %v3826 = vrcp.pop %v3786
    %v3827 = vrcp.pop %v3789
    %v3828 = vrcp.pop %v3792
    %v3829 = vrcp.pop %v3795
    %v3830 = vrcp.pop %v3798
    %v3831 = vrcp.pop %v3801
    %v3832 = vrcp.pop %v3804
    %v3833 = vrcp.pop %v3807
    %v3834 = vrcp.pop %v3810
    %v3835 = vmul.f32 %v3692, %v3811
    %v3836 = vmul.f32 %v3694, %v3812
    %v3837 = vmul.f32 %v3696, %v3813
    %v3838 = vmul.f32 %v3698, %v3814
    %v3839 = vmul.f32 %v3700, %v3815
    %v3840 = vmul.f32 %v3702, %v3816
    %v3841 = vmul.f32 %v3704, %v3817
    %v3842 = vmul.f32 %v3706, %v3818
    %v3843 = vmul.f32 %v3708, %v3819
    %v3844 = vmul.f32 %v3710, %v3820
    %v3845 = vmul.f32 %v3712, %v3821
    %v3846 = vmul.f32 %v3714, %v3822
    %v3847 = vmul.f32 %v3716, %v3823
    %v3848 = vmul.f32 %v3718, %v3824
    %v3849 = vmul.f32 %v3720, %v3825
    %v3850 = vmul.f32 %v3722, %v3826
    %v3851 = vmul.f32 %v3724, %v3827
    %v3852 = vmul.f32 %v3726, %v3828
    %v3853 = vmul.f32 %v3728, %v3829
    %v3854 = vmul.f32 %v3730, %v3830
    %v3855 = vmul.f32 %v3732, %v3831
    %v3856 = vmul.f32 %v3734, %v3832
    %v3857 = vmul.f32 %v3736, %v3833
    %v3858 = vmul.f32 %v3738, %v3834
    %s3859 = scalar_lea.vmem %s22, 192
    %3860 = vst.msk [vmem:[%s3859] sm:$0xff] %vm703, %v3835
    %3861 = vst.msk [vmem:[%s3859 + $0x8] sm:$0xff] %vm703, %v3836
    %3862 = vst.msk [vmem:[%s3859 + $0x10] sm:$0xff] %vm703, %v3837
    %3863 = vst.msk [vmem:[%s3859 + $0x18] sm:$0xff] %vm703, %v3838
    %3864 = vst.msk [vmem:[%s3859 + $0x20] sm:$0xff] %vm703, %v3839
    %3865 = vst.msk [vmem:[%s3859 + $0x28] sm:$0xff] %vm703, %v3840
    %3866 = vst.msk [vmem:[%s3859 + $0x30] sm:$0xff] %vm703, %v3841
    %3867 = vst.msk [vmem:[%s3859 + $0x38] sm:$0xff] %vm703, %v3842
    %3868 = vst.msk [vmem:[%s3859 + $0x40] sm:$0xff] %vm703, %v3843
    %3869 = vst.msk [vmem:[%s3859 + $0x48] sm:$0xff] %vm703, %v3844
    %3870 = vst.msk [vmem:[%s3859 + $0x50] sm:$0xff] %vm703, %v3845
    %3871 = vst.msk [vmem:[%s3859 + $0x58] sm:$0xff] %vm703, %v3846
    %3872 = vst.msk [vmem:[%s3859 + $0x60] sm:$0xff] %vm703, %v3847
    %3873 = vst.msk [vmem:[%s3859 + $0x68] sm:$0xff] %vm703, %v3848
    %3874 = vst.msk [vmem:[%s3859 + $0x70] sm:$0xff] %vm703, %v3849
    %3875 = vst.msk [vmem:[%s3859 + $0x78] sm:$0xff] %vm703, %v3850
    %3876 = vst.msk [vmem:[%s3859 + $0x80] sm:$0xff] %vm703, %v3851
    %3877 = vst.msk [vmem:[%s3859 + $0x88] sm:$0xff] %vm703, %v3852
    %3878 = vst.msk [vmem:[%s3859 + $0x90] sm:$0xff] %vm703, %v3853
    %3879 = vst.msk [vmem:[%s3859 + $0x98] sm:$0xff] %vm703, %v3854
    %3880 = vst.msk [vmem:[%s3859 + $0xa0] sm:$0xff] %vm703, %v3855
    %3881 = vst.msk [vmem:[%s3859 + $0xa8] sm:$0xff] %vm703, %v3856
    %3882 = vst.msk [vmem:[%s3859 + $0xb0] sm:$0xff] %vm703, %v3857
    %3883 = vst.msk [vmem:[%s3859 + $0xb8] sm:$0xff] %vm703, %v3858
    %3887 = vrot.lane.b32.xlu0 %v3838, 24
    %v3888 = vpop.permute.xlu0 %3887
    %3889 = vrot.lane.b32.xlu0 %v3839, 24
    %v3890 = vpop.permute.xlu0 %3889
    %3891 = vrot.lane.b32.xlu0 %v3840, 24
    %v3892 = vpop.permute.xlu0 %3891
    %3899 = vrot.lane.b32.xlu0 %v3841, 48
    %v3900 = vpop.permute.xlu0 %3899
    %3901 = vrot.lane.b32.xlu0 %v3842, 48
    %v3902 = vpop.permute.xlu0 %3901
    %3903 = vrot.lane.b32.xlu0 %v3843, 48
    %v3904 = vpop.permute.xlu0 %3903
    %3911 = vrot.lane.b32.xlu0 %v3844, 72
    %v3912 = vpop.permute.xlu0 %3911
    %3913 = vrot.lane.b32.xlu0 %v3845, 72
    %v3914 = vpop.permute.xlu0 %3913
    %3915 = vrot.lane.b32.xlu0 %v3846, 72
    %v3916 = vpop.permute.xlu0 %3915
    %3923 = vrot.lane.b32.xlu0 %v3847, 96
    %v3924 = vpop.permute.xlu0 %3923
    %3925 = vrot.lane.b32.xlu0 %v3848, 96
    %v3926 = vpop.permute.xlu0 %3925
    %3927 = vrot.lane.b32.xlu0 %v3849, 96
    %v3928 = vpop.permute.xlu0 %3927
    %3935 = vrot.lane.b32.xlu0 %v3850, 120
    %v3936 = vpop.permute.xlu0 %3935
    %3937 = vrot.lane.b32.xlu0 %v3851, 120
    %v3938 = vpop.permute.xlu0 %3937
    %3939 = vrot.lane.b32.xlu0 %v3852, 120
    %v3940 = vpop.permute.xlu0 %3939
    %3947 = vrot.lane.b32.xlu0 %v3853, 16
    %v3948 = vpop.permute.xlu0 %3947
    %3949 = vrot.lane.b32.xlu0 %v3854, 16
    %v3950 = vpop.permute.xlu0 %3949
    %3951 = vrot.lane.b32.xlu0 %v3855, 16
    %v3952 = vpop.permute.xlu0 %3951
    %3959 = vrot.lane.b32.xlu0 %v3856, 40
    %v3960 = vpop.permute.xlu0 %3959
    %3961 = vrot.lane.b32.xlu0 %v3857, 40
    %v3962 = vpop.permute.xlu0 %3961
    %3963 = vrot.lane.b32.xlu0 %v3858, 40
    %v3964 = vpop.permute.xlu0 %3963
    %v3968 = vsel %vm703, %v3835, %v3888
    %v3969 = vsel %vm703, %v3836, %v3890
    %v3970 = vsel %vm703, %v3837, %v3892
    %v3971 = vsel %vm1055, %v3968, %v3900
    %v3972 = vsel %vm1055, %v3969, %v3902
    %v3973 = vsel %vm1055, %v3970, %v3904
    %v3974 = vsel %vm1059, %v3971, %v3912
    %v3975 = vsel %vm1059, %v3972, %v3914
    %v3976 = vsel %vm1059, %v3973, %v3916
    %v3977 = vsel %vm1063, %v3974, %v3924
    %v3978 = vsel %vm1063, %v3975, %v3926
    %v3979 = vsel %vm1063, %v3976, %v3928
    %v3980 = vsel %vm1067, %v3977, %v3936
    %v3981 = vsel %vm1067, %v3978, %v3938
    %v3982 = vsel %vm1067, %v3979, %v3940
    %v3983 = vsel %vm1071, %v3936, %v3948
    %v3984 = vsel %vm1071, %v3938, %v3950
    %v3985 = vsel %vm1071, %v3940, %v3952
    %v3986 = vsel %vm1075, %v3983, %v3960
    %v3987 = vsel %vm1075, %v3984, %v3962
    %v3988 = vsel %vm1075, %v3985, %v3964
    %v3989 = vpack.c.bf16 %v3981, %v3980
    %v3990 = vpack.c.bf16 %v3987, %v3986
    %v3991 = vpack.c.bf16 %v3982, %v3982
    %v3992 = vpack.c.bf16 %v3988, %v3988
    %v3993 = vpack.c.bf16 %v2515, %v2509
    %v3994 = vpack.c.bf16 %v3354, %v2519
    %v3995 = vpack.c.bf16 %v3358, %v3356
    %v3996 = vpack.c.bf16 %v3365, %v3363
    %v3997 = vpack.c.bf16 %v3372, %v3367
    %v3998 = vpack.c.bf16 %v3376, %v3374
    %v3999 = vpack.c.bf16 %v2517, %v2511
    %v4000 = vpack.c.bf16 %v3384, %v2521
    %v4001 = vpack.c.bf16 %v3388, %v3386
    %v4002 = vpack.c.bf16 %v3395, %v3393
    %v4003 = vpack.c.bf16 %v3402, %v3397
    %v4004 = vpack.c.bf16 %v3406, %v3404
    %v4006 = vsel %vm1095, %v3990, 0
    %v4009 = vsel %vm1095, %v3992, 0
    %4011 = vmatprep.subr.bf16.mxu0 0
    %4012 = vmatpush1.bf16.msra.mxu0 %v3993
    %4013 = vmatprep.subr.bf16.mxu0 0
    %4014 = vmatpush1.bf16.msra.mxu0 %v3994
    %4015 = vmatprep.subr.bf16.mxu0 0
    %4016 = vmatpush1.bf16.msra.mxu0 %v3995
    %4017 = vmatprep.subr.bf16.mxu0 0
    %4018 = vmatpush1.bf16.msra.mxu0 %v3996
    %4019 = vmatprep.subr.bf16.mxu0 0
    %4020 = vmatpush1.bf16.msra.mxu0 %v3997
    %4021 = vmatprep.subr.bf16.mxu0 0
    %4022 = vmatpush1.bf16.msra.mxu0 %v3998
    %4023 = vmatprep.subr.bf16.mxu0 0
    %4024 = vmatpush1.bf16.msra.mxu0 %v3999
    %4025 = vmatprep.subr.bf16.mxu0 0
    %4026 = vmatpush1.bf16.msra.mxu0 %v4000
    %4027 = vmatprep.subr.bf16.mxu0 0
    %4028 = vmatpush1.bf16.msra.mxu0 %v4001
    %4029 = vmatprep.subr.bf16.mxu0 0
    %4030 = vmatpush1.bf16.msra.mxu0 %v4002
    %4031 = vmatprep.subr.bf16.mxu0 0
    %4032 = vmatpush1.bf16.msra.mxu0 %v4003
    %4033 = vmatprep.subr.bf16.mxu0 0
    %4034 = vmatpush1.bf16.msra.mxu0 %v4004
    %4035 = vmatprep.subr.bf16.mxu0 0
    %4036 = vmatpush1.bf16.msra.mxu0 0
    %4037 = vmatprep.subr.bf16.mxu0 0
    %4038 = vmatpush1.bf16.msra.mxu0 0
    %4039 = vmatprep.subr.bf16.mxu0 0
    %4040 = vmatpush1.bf16.msra.mxu0 0
    %4041 = vmatprep.subr.bf16.mxu0 0
    %4042 = vmatpush1.bf16.msra.mxu0 0
    %4043 = vmatprep.mubr.bf16.mxu0 %v4006
    %4044 = vmatmul.mubr.bf16.gmra.mrb[0].mxu0 %v3989
    %v4045 = vpop.f32.mrb[0].mxu0
    %v4046 = vadd.f32 0.0, %v4045
    %v4047 = vpop.f32.mrb[0].mxu0
    %v4048 = vpop.f32.mrb[0].mxu0
    %v4049 = vadd.f32 0.0, %v4048
    %v4050 = vpop.f32.mrb[0].mxu0
    %4051 = vmatprep.mubr.bf16.mxu0 %v4009
    %4052 = vmatmul.mubr.bf16.gmra.mrb[0].mxu0 %v3991
    %v4053 = vpop.f32.mrb[0].mxu0
    %v4054 = vadd.f32 0.0, %v4053
    %v4055 = vpop.f32.mrb[0].mxu0
    %v4056 = vpop.f32.mrb[0].mxu0
    %v4057 = vpop.f32.mrb[0].mxu0
    %4058 = vdwg.mxu0
    %v4059 = vadd.f32 %v2333, %v4046
    %v4060 = vadd.f32 %v2334, %v4049
    %v4061 = vadd.f32 %v2335, %v4054
    %s4062 = scalar_lea.vmem %s6, 1
    %v4063 = vld [vmem:[%s4062] sm:$0x1]
    %s4064 = scalar_lea.vmem %s7, 1
    %v4065 = vld [vmem:[%s4064] sm:$0x1]
    %v4066 = vmul.f32 %v3287, %v1905
    %v4067 = vmul.f32 %v3288, %v1910
    %v4068 = vmul.f32 %v3289, %v1915
    %v4069 = vmul.f32 %v4059, %v1920
    %v4070 = vmul.f32 %v4060, %v1925
    %v4071 = vmul.f32 %v4061, %v1930
    %v4072 = vsel %vm260, %v4066, 0.0
    %v4073 = vsel %vm260, %v4067, 0.0
    %v4074 = vadd.f32 %v4072, %v4073
    %v4075 = vsel %vm260, %v4068, 0.0
    %v4076 = vadd.f32 %v4074, %v4075
    %v4077 = vsel %vm260, %v4069, 0.0
    %v4078 = vadd.f32 %v4076, %v4077
    %v4079 = vsel %vm260, %v4070, 0.0
    %v4080 = vadd.f32 %v4078, %v4079
    %v4081 = vsel %vm260, %v4071, 0.0
    %v4082 = vadd.f32 %v4080, %v4081
    %v4083 = vrot.slane %v4082, 4
    %v4084 = vadd.f32 %v4082, %v4083
    %v4085 = vrot.slane %v4084, 2
    %v4086 = vadd.f32 %v4084, %v4085
    %v4087 = vrot.slane %v4086, 1
    %v4088 = vadd.f32 %v4086, %v4087
    %v4089 = vmul.f32 %v4088, 0.025
    %v4090 = vsub.f32 %v3287, %v4089
    %v4091 = vsub.f32 %v3288, %v4089
    %v4092 = vsub.f32 %v3289, %v4089
    %v4093 = vsub.f32 %v4059, %v4089
    %v4094 = vsub.f32 %v4060, %v4089
    %v4095 = vsub.f32 %v4061, %v4089
    %v4096 = vmul.f32 %v4090, %v1905
    %v4097 = vmul.f32 %v4091, %v1910
    %v4098 = vmul.f32 %v4092, %v1915
    %v4099 = vmul.f32 %v4093, %v1920
    %v4100 = vmul.f32 %v4094, %v1925
    %v4101 = vmul.f32 %v4095, %v1930
    %v4102 = vmul.f32 %v4096, %v4096
    %v4103 = vmul.f32 %v4097, %v4097
    %v4104 = vmul.f32 %v4098, %v4098
    %v4105 = vmul.f32 %v4099, %v4099
    %v4106 = vmul.f32 %v4100, %v4100
    %v4107 = vmul.f32 %v4101, %v4101
    %v4108 = vsel %vm260, %v4102, 0.0
    %v4109 = vsel %vm260, %v4103, 0.0
    %v4110 = vadd.f32 %v4108, %v4109
    %v4111 = vsel %vm260, %v4104, 0.0
    %v4112 = vadd.f32 %v4110, %v4111
    %v4113 = vsel %vm260, %v4105, 0.0
    %v4114 = vadd.f32 %v4112, %v4113
    %v4115 = vsel %vm260, %v4106, 0.0
    %v4116 = vadd.f32 %v4114, %v4115
    %v4117 = vsel %vm260, %v4107, 0.0
    %v4118 = vadd.f32 %v4116, %v4117
    %v4119 = vrot.slane %v4118, 4
    %v4120 = vadd.f32 %v4118, %v4119
    %v4121 = vrot.slane %v4120, 2
    %v4122 = vadd.f32 %v4120, %v4121
    %v4123 = vrot.slane %v4122, 1
    %v4124 = vadd.f32 %v4122, %v4123
    %v4125 = vmul.f32 %v4124, 0.025
    %v4126 = vadd.f32 %v4125, 1e-05
    %v4127 = vrsqrt.pop %v4126
    %v4128 = vmul.f32 %v4090, %v4127
    %v4129 = vmul.f32 %v4091, %v4127
    %v4130 = vmul.f32 %v4092, %v4127
    %v4131 = vmul.f32 %v4093, %v4127
    %v4132 = vmul.f32 %v4094, %v4127
    %v4133 = vmul.f32 %v4095, %v4127
    %v4135 = vlaneseq
    %v4136 = vshrl.u32 %v4135, 7
    %v4137 = vsub.s32 0, %v4136
    %v4138 = vrot.slane %v4063, %v4137
    %v4140 = vmul.f32 %v4128, %v4138
    %v4141 = vmul.f32 %v4129, %v4138
    %v4142 = vmul.f32 %v4130, %v4138
    %v4143 = vmul.f32 %v4131, %v4138
    %v4144 = vmul.f32 %v4132, %v4138
    %v4145 = vmul.f32 %v4133, %v4138
    %v4147 = vlaneseq
    %v4148 = vshrl.u32 %v4147, 7
    %v4149 = vsub.s32 0, %v4148
    %v4150 = vrot.slane %v4065, %v4149
    %v4152 = vadd.f32 %v4140, %v4150
    %v4153 = vadd.f32 %v4141, %v4150
    %v4154 = vadd.f32 %v4142, %v4150
    %v4155 = vadd.f32 %v4143, %v4150
    %v4156 = vadd.f32 %v4144, %v4150
    %v4157 = vadd.f32 %v4145, %v4150
    %s4158 = scalar_lea.vmem %s8, 16
    %v4159 = vld [vmem:[%s4158] sm:$0xf]
    %v4160 = vld [vmem:[%s4158 + $0x4] sm:$0xf]
    %v4161 = vld [vmem:[%s4158 + $0x8] sm:$0xf]
    %v4162 = vld [vmem:[%s4158 + $0xc] sm:$0xf]
    %v4163 = vpack.c.bf16 %v4153, %v4152
    %v4164 = vpack.c.bf16 %v4155, %v4154
    %v4165 = vpack.c.bf16 %v4157, %v4156
    %s4166 = scalar_lea.vmem %s9, 1
    %v4167 = vld [vmem:[%s4166] sm:$0x1]
    %v4169 = vlaneseq
    %v4170 = vshrl.u32 %v4169, 7
    %v4171 = vsub.s32 0, %v4170
    %v4172 = vrot.slane %v4167, %v4171
    %v4178 = vunpack.c.l.b16 %v4159
    %v4179 = vunpack.c.l.b16 %v4160
    %v4180 = vunpack.c.l.b16 %v4161
    %v4181 = vunpack.c.l.b16 %v4162
    %v4182 = vpack.c.b16 %v4179, %v4178
    %v4183 = vpack.c.b16 %v4181, %v4180
    %v4187 = vsel %vm260, %v4163, 0
    %v4190 = vsel %vm260, %v4164, 0
    %v4193 = vsel %vm260, %v4165, 0
    %4195 = vmatprep.subr.bf16.mxu0 0
    %4196 = vmatpush1.bf16.msra.mxu0 %v4182
    %4197 = vmatprep.subr.bf16.mxu0 0
    %4198 = vmatpush1.bf16.msra.mxu0 %v4183
    %4199 = vmatprep.subr.bf16.mxu0 0
    %4200 = vmatpush1.bf16.msra.mxu0 0
    %4201 = vmatprep.subr.bf16.mxu0 0
    %4202 = vmatpush1.bf16.msra.mxu0 0
    %4203 = vmatprep.subr.bf16.mxu0 0
    %4204 = vmatpush1.bf16.msra.mxu0 0
    %4205 = vmatprep.subr.bf16.mxu0 0
    %4206 = vmatpush1.bf16.msra.mxu0 0
    %4207 = vmatprep.subr.bf16.mxu0 0
    %4208 = vmatpush1.bf16.msra.mxu0 0
    %4209 = vmatprep.subr.bf16.mxu0 0
    %4210 = vmatpush1.bf16.msra.mxu0 0
    %4211 = vmatprep.subr.bf16.mxu0 0
    %4212 = vmatpush1.bf16.msra.mxu0 0
    %4213 = vmatprep.subr.bf16.mxu0 0
    %4214 = vmatpush1.bf16.msra.mxu0 0
    %4215 = vmatprep.subr.bf16.mxu0 0
    %4216 = vmatpush1.bf16.msra.mxu0 0
    %4217 = vmatprep.subr.bf16.mxu0 0
    %4218 = vmatpush1.bf16.msra.mxu0 0
    %4219 = vmatprep.subr.bf16.mxu0 0
    %4220 = vmatpush1.bf16.msra.mxu0 0
    %4221 = vmatprep.subr.bf16.mxu0 0
    %4222 = vmatpush1.bf16.msra.mxu0 0
    %4223 = vmatprep.subr.bf16.mxu0 0
    %4224 = vmatpush1.bf16.msra.mxu0 0
    %4225 = vmatprep.subr.bf16.mxu0 0
    %4226 = vmatpush1.bf16.msra.mxu0 0
    %4227 = vmatprep.mubr.bf16.mxu0 0
    %4228 = vmatmul.mubr.bf16.gmra.mrb[0].mxu0 %v4187
    %v4229 = vpop.f32.mrb[0].mxu0
    %v4230 = vadd.f32 %v4172, %v4229
    %v4231 = vpop.f32.mrb[0].mxu0
    %v4232 = vpop.f32.mrb[0].mxu0
    %v4233 = vadd.f32 %v4172, %v4232
    %v4234 = vpop.f32.mrb[0].mxu0
    %4235 = vmatprep.mubr.bf16.mxu0 0
    %4236 = vmatmul.mubr.bf16.gmra.mrb[0].mxu0 %v4190
    %v4237 = vpop.f32.mrb[0].mxu0
    %v4238 = vadd.f32 %v4172, %v4237
    %v4239 = vpop.f32.mrb[0].mxu0
    %v4240 = vpop.f32.mrb[0].mxu0
    %v4241 = vadd.f32 %v4172, %v4240
    %v4242 = vpop.f32.mrb[0].mxu0
    %4243 = vmatprep.mubr.bf16.mxu0 0
    %4244 = vmatmul.mubr.bf16.gmra.mrb[0].mxu0 %v4193
    %v4245 = vpop.f32.mrb[0].mxu0
    %v4246 = vadd.f32 %v4172, %v4245
    %v4247 = vpop.f32.mrb[0].mxu0
    %v4248 = vpop.f32.mrb[0].mxu0
    %v4249 = vadd.f32 %v4172, %v4248
    %v4250 = vpop.f32.mrb[0].mxu0
    %4251 = vdwg.mxu0
    %v4252 = vmax.f32 %v4230, 0.0
    %v4253 = vmax.f32 %v4233, 0.0
    %v4254 = vmax.f32 %v4238, 0.0
    %v4255 = vmax.f32 %v4241, 0.0
    %v4256 = vmax.f32 %v4246, 0.0
    %v4257 = vmax.f32 %v4249, 0.0
    %s4258 = scalar_lea.vmem %s10, 32
    %v4259 = vld [vmem:[%s4258] sm:$0xf]
    %v4260 = vld [vmem:[%s4258 + $0x4] sm:$0xf]
    %v4261 = vld [vmem:[%s4258 + $0x8] sm:$0xf]
    %v4262 = vld [vmem:[%s4258 + $0xc] sm:$0xf]
    %v4263 = vld [vmem:[%s4258 + $0x10] sm:$0xf]
    %v4264 = vld [vmem:[%s4258 + $0x14] sm:$0xf]
    %v4265 = vld [vmem:[%s4258 + $0x18] sm:$0xf]
    %v4266 = vld [vmem:[%s4258 + $0x1c] sm:$0xf]
    %v4267 = vpack.c.bf16 %v4253, %v4252
    %v4268 = vpack.c.bf16 %v4255, %v4254
    %v4269 = vpack.c.bf16 %v4257, %v4256
    %v4278 = vunpack.c.l.b16 %v4259
    %v4279 = vunpack.c.l.b16 %v4260
    %v4280 = vunpack.c.l.b16 %v4261
    %v4281 = vunpack.c.l.b16 %v4262
    %v4282 = vunpack.c.l.b16 %v4263
    %v4283 = vunpack.c.l.b16 %v4264
    %v4284 = vunpack.c.l.b16 %v4265
    %v4285 = vunpack.c.l.b16 %v4266
    %v4286 = vpack.c.b16 %v4279, %v4278
    %v4287 = vpack.c.b16 %v4281, %v4280
    %v4288 = vpack.c.b16 %v4283, %v4282
    %v4289 = vpack.c.b16 %v4285, %v4284
    %v4295 = vsel %vm1095, %v4267, 0
    %v4298 = vsel %vm1095, %v4268, 0
    %v4301 = vsel %vm1095, %v4269, 0
    %4303 = vmatprep.subr.bf16.mxu0 0
    %4304 = vmatpush1.bf16.msra.mxu0 %v4286
    %4305 = vmatprep.subr.bf16.mxu0 0
    %4306 = vmatpush1.bf16.msra.mxu0 %v4287
    %4307 = vmatprep.subr.bf16.mxu0 0
    %4308 = vmatpush1.bf16.msra.mxu0 %v4288
    %4309 = vmatprep.subr.bf16.mxu0 0
    %4310 = vmatpush1.bf16.msra.mxu0 %v4289
    %4311 = vmatprep.subr.bf16.mxu0 0
    %4312 = vmatpush1.bf16.msra.mxu0 0
    %4313 = vmatprep.subr.bf16.mxu0 0
    %4314 = vmatpush1.bf16.msra.mxu0 0
    %4315 = vmatprep.subr.bf16.mxu0 0
    %4316 = vmatpush1.bf16.msra.mxu0 0
    %4317 = vmatprep.subr.bf16.mxu0 0
    %4318 = vmatpush1.bf16.msra.mxu0 0
    %4319 = vmatprep.subr.bf16.mxu0 0
    %4320 = vmatpush1.bf16.msra.mxu0 0
    %4321 = vmatprep.subr.bf16.mxu0 0
    %4322 = vmatpush1.bf16.msra.mxu0 0
    %4323 = vmatprep.subr.bf16.mxu0 0
    %4324 = vmatpush1.bf16.msra.mxu0 0
    %4325 = vmatprep.subr.bf16.mxu0 0
    %4326 = vmatpush1.bf16.msra.mxu0 0
    %4327 = vmatprep.subr.bf16.mxu0 0
    %4328 = vmatpush1.bf16.msra.mxu0 0
    %4329 = vmatprep.subr.bf16.mxu0 0
    %4330 = vmatpush1.bf16.msra.mxu0 0
    %4331 = vmatprep.subr.bf16.mxu0 0
    %4332 = vmatpush1.bf16.msra.mxu0 0
    %4333 = vmatprep.subr.bf16.mxu0 0
    %4334 = vmatpush1.bf16.msra.mxu0 0
    %4335 = vmatprep.mubr.bf16.mxu0 0
    %4336 = vmatmul.mubr.bf16.gmra.mrb[0].mxu0 %v4295
    %v4337 = vpop.f32.mrb[0].mxu0
    %v4338 = vadd.f32 0.0, %v4337
    %v4339 = vpop.f32.mrb[0].mxu0
    %v4340 = vpop.f32.mrb[0].mxu0
    %v4341 = vadd.f32 0.0, %v4340
    %v4342 = vpop.f32.mrb[0].mxu0
    %4343 = vmatprep.mubr.bf16.mxu0 0
    %4344 = vmatmul.mubr.bf16.gmra.mrb[0].mxu0 %v4298
    %v4345 = vpop.f32.mrb[0].mxu0
    %v4346 = vadd.f32 0.0, %v4345
    %v4347 = vpop.f32.mrb[0].mxu0
    %v4348 = vpop.f32.mrb[0].mxu0
    %v4349 = vadd.f32 0.0, %v4348
    %v4350 = vpop.f32.mrb[0].mxu0
    %4351 = vmatprep.mubr.bf16.mxu0 0
    %4352 = vmatmul.mubr.bf16.gmra.mrb[0].mxu0 %v4301
    %v4353 = vpop.f32.mrb[0].mxu0
    %v4354 = vadd.f32 0.0, %v4353
    %v4355 = vpop.f32.mrb[0].mxu0
    %v4356 = vpop.f32.mrb[0].mxu0
    %v4357 = vadd.f32 0.0, %v4356
    %v4358 = vpop.f32.mrb[0].mxu0
    %4359 = vdwg.mxu0
    %v4360 = vadd.f32 %v4152, %v4338
    %v4361 = vadd.f32 %v4153, %v4341
    %v4362 = vadd.f32 %v4154, %v4346
    %v4363 = vadd.f32 %v4155, %v4349
    %v4364 = vadd.f32 %v4156, %v4354
    %v4365 = vadd.f32 %v4157, %v4357
    %s4366 = scalar_lea.vmem %s11, 1
    %v4367 = vld [vmem:[%s4366] sm:$0x1]
    %v4369 = vlaneseq
    %v4370 = vshrl.u32 %v4369, 7
    %v4371 = vsub.s32 0, %v4370
    %v4372 = vrot.slane %v4367, %v4371
    %v4374 = vadd.f32 %v4360, %v4372
    %v4375 = vadd.f32 %v4361, %v4372
    %v4376 = vadd.f32 %v4362, %v4372
    %v4377 = vadd.f32 %v4363, %v4372
    %v4378 = vadd.f32 %v4364, %v4372
    %v4379 = vadd.f32 %v4365, %v4372
    %s4380 = scalar_lea.vmem %s12, 1
    %v4381 = vld [vmem:[%s4380] sm:$0x1]
    %s4382 = scalar_lea.vmem %s13, 1
    %v4383 = vld [vmem:[%s4382] sm:$0x1]
    %v4384 = vmul.f32 %v4374, %v1905
    %v4385 = vmul.f32 %v4375, %v1910
    %v4386 = vmul.f32 %v4376, %v1915
    %v4387 = vmul.f32 %v4377, %v1920
    %v4388 = vmul.f32 %v4378, %v1925
    %v4389 = vmul.f32 %v4379, %v1930
    %v4390 = vsel %vm260, %v4384, 0.0
    %v4391 = vsel %vm260, %v4385, 0.0
    %v4392 = vadd.f32 %v4390, %v4391
    %v4393 = vsel %vm260, %v4386, 0.0
    %v4394 = vadd.f32 %v4392, %v4393
    %v4395 = vsel %vm260, %v4387, 0.0
    %v4396 = vadd.f32 %v4394, %v4395
    %v4397 = vsel %vm260, %v4388, 0.0
    %v4398 = vadd.f32 %v4396, %v4397
    %v4399 = vsel %vm260, %v4389, 0.0
    %v4400 = vadd.f32 %v4398, %v4399
    %v4401 = vrot.slane %v4400, 4
    %v4402 = vadd.f32 %v4400, %v4401
    %v4403 = vrot.slane %v4402, 2
    %v4404 = vadd.f32 %v4402, %v4403
    %v4405 = vrot.slane %v4404, 1
    %v4406 = vadd.f32 %v4404, %v4405
    %v4407 = vmul.f32 %v4406, 0.025
    %v4408 = vsub.f32 %v4374, %v4407
    %v4409 = vsub.f32 %v4375, %v4407
    %v4410 = vsub.f32 %v4376, %v4407
    %v4411 = vsub.f32 %v4377, %v4407
    %v4412 = vsub.f32 %v4378, %v4407
    %v4413 = vsub.f32 %v4379, %v4407
    %v4414 = vmul.f32 %v4408, %v1905
    %v4415 = vmul.f32 %v4409, %v1910
    %v4416 = vmul.f32 %v4410, %v1915
    %v4417 = vmul.f32 %v4411, %v1920
    %v4418 = vmul.f32 %v4412, %v1925
    %v4419 = vmul.f32 %v4413, %v1930
    %v4420 = vmul.f32 %v4414, %v4414
    %v4421 = vmul.f32 %v4415, %v4415
    %v4422 = vmul.f32 %v4416, %v4416
    %v4423 = vmul.f32 %v4417, %v4417
    %v4424 = vmul.f32 %v4418, %v4418
    %v4425 = vmul.f32 %v4419, %v4419
    %v4426 = vsel %vm260, %v4420, 0.0
    %v4427 = vsel %vm260, %v4421, 0.0
    %v4428 = vadd.f32 %v4426, %v4427
    %v4429 = vsel %vm260, %v4422, 0.0
    %v4430 = vadd.f32 %v4428, %v4429
    %v4431 = vsel %vm260, %v4423, 0.0
    %v4432 = vadd.f32 %v4430, %v4431
    %v4433 = vsel %vm260, %v4424, 0.0
    %v4434 = vadd.f32 %v4432, %v4433
    %v4435 = vsel %vm260, %v4425, 0.0
    %v4436 = vadd.f32 %v4434, %v4435
    %v4437 = vrot.slane %v4436, 4
    %v4438 = vadd.f32 %v4436, %v4437
    %v4439 = vrot.slane %v4438, 2
    %v4440 = vadd.f32 %v4438, %v4439
    %v4441 = vrot.slane %v4440, 1
    %v4442 = vadd.f32 %v4440, %v4441
    %v4443 = vmul.f32 %v4442, 0.025
    %v4444 = vadd.f32 %v4443, 1e-05
    %v4445 = vrsqrt.pop %v4444
    %v4446 = vmul.f32 %v4408, %v4445
    %v4447 = vmul.f32 %v4409, %v4445
    %v4448 = vmul.f32 %v4410, %v4445
    %v4449 = vmul.f32 %v4411, %v4445
    %v4450 = vmul.f32 %v4412, %v4445
    %v4451 = vmul.f32 %v4413, %v4445
    %v4453 = vlaneseq
    %v4454 = vshrl.u32 %v4453, 7
    %v4455 = vsub.s32 0, %v4454
    %v4456 = vrot.slane %v4381, %v4455
    %v4458 = vmul.f32 %v4446, %v4456
    %v4459 = vmul.f32 %v4447, %v4456
    %v4460 = vmul.f32 %v4448, %v4456
    %v4461 = vmul.f32 %v4449, %v4456
    %v4462 = vmul.f32 %v4450, %v4456
    %v4463 = vmul.f32 %v4451, %v4456
    %v4465 = vlaneseq
    %v4466 = vshrl.u32 %v4465, 7
    %v4467 = vsub.s32 0, %v4466
    %v4468 = vrot.slane %v4383, %v4467
    %v4470 = vadd.f32 %v4458, %v4468
    %v4471 = vadd.f32 %v4459, %v4468
    %v4472 = vadd.f32 %v4460, %v4468
    %v4473 = vadd.f32 %v4461, %v4468
    %v4474 = vadd.f32 %v4462, %v4468
    %v4475 = vadd.f32 %v4463, %v4468
    %v4477 = vrot.slane %v4470, 1
    %4478 = vrot.lane.b32.xlu0 %v4477, 32
    %v4479 = vpop.permute.xlu0 %4478
    %v4481 = vrot.slane %v4470, 2
    %4482 = vrot.lane.b32.xlu0 %v4481, 64
    %v4483 = vpop.permute.xlu0 %4482
    %v4485 = vrot.slane %v4470, 3
    %4486 = vrot.lane.b32.xlu0 %v4485, 96
    %v4487 = vpop.permute.xlu0 %4486
    %v4489 = vrot.slane %v4470, 4
    %v4491 = vrot.slane %v4470, 5
    %4492 = vrot.lane.b32.xlu0 %v4491, 32
    %v4493 = vpop.permute.xlu0 %4492
    %v4495 = vrot.slane %v4470, 6
    %4496 = vrot.lane.b32.xlu0 %v4495, 64
    %v4497 = vpop.permute.xlu0 %4496
    %v4499 = vrot.slane %v4470, 7
    %4500 = vrot.lane.b32.xlu0 %v4499, 96
    %v4501 = vpop.permute.xlu0 %4500
    %v4504 = vrot.slane %v4471, 1
    %4505 = vrot.lane.b32.xlu0 %v4504, 32
    %v4506 = vpop.permute.xlu0 %4505
    %v4508 = vrot.slane %v4471, 2
    %4509 = vrot.lane.b32.xlu0 %v4508, 64
    %v4510 = vpop.permute.xlu0 %4509
    %v4512 = vrot.slane %v4471, 3
    %4513 = vrot.lane.b32.xlu0 %v4512, 96
    %v4514 = vpop.permute.xlu0 %4513
    %v4516 = vrot.slane %v4471, 4
    %v4518 = vrot.slane %v4471, 5
    %4519 = vrot.lane.b32.xlu0 %v4518, 32
    %v4520 = vpop.permute.xlu0 %4519
    %v4522 = vrot.slane %v4471, 6
    %4523 = vrot.lane.b32.xlu0 %v4522, 64
    %v4524 = vpop.permute.xlu0 %4523
    %v4526 = vrot.slane %v4471, 7
    %4527 = vrot.lane.b32.xlu0 %v4526, 96
    %v4528 = vpop.permute.xlu0 %4527
    %v4530 = vsel %vm260, %v4470, %v4479
    %v4531 = vsel %vm1095, %v4530, %v4483
    %v4532 = vsel %vm1063, %v4531, %v4487
    %v4533 = vsel %vm260, %v4489, %v4493
    %v4534 = vsel %vm1095, %v4533, %v4497
    %v4535 = vsel %vm1063, %v4534, %v4501
    %v4536 = vsel %vm260, %v4471, %v4506
    %v4537 = vsel %vm1095, %v4536, %v4510
    %v4538 = vsel %vm1063, %v4537, %v4514
    %v4539 = vsel %vm260, %v4516, %v4520
    %v4540 = vsel %vm1095, %v4539, %v4524
    %v4541 = vsel %vm1063, %v4540, %v4528
    %v4543 = vrot.slane %v4472, 1
    %4544 = vrot.lane.b32.xlu0 %v4543, 32
    %v4545 = vpop.permute.xlu0 %4544
    %v4547 = vrot.slane %v4472, 2
    %4548 = vrot.lane.b32.xlu0 %v4547, 64
    %v4549 = vpop.permute.xlu0 %4548
    %v4551 = vrot.slane %v4472, 3
    %4552 = vrot.lane.b32.xlu0 %v4551, 96
    %v4553 = vpop.permute.xlu0 %4552
    %v4555 = vsel %vm260, %v4472, %v4545
    %v4556 = vsel %vm1095, %v4555, %v4549
    %v4557 = vsel %vm1063, %v4556, %v4553
    %v4559 = vrot.slane %v4473, 1
    %4560 = vrot.lane.b32.xlu0 %v4559, 32
    %v4561 = vpop.permute.xlu0 %4560
    %v4563 = vrot.slane %v4473, 2
    %4564 = vrot.lane.b32.xlu0 %v4563, 64
    %v4565 = vpop.permute.xlu0 %4564
    %v4567 = vrot.slane %v4473, 3
    %4568 = vrot.lane.b32.xlu0 %v4567, 96
    %v4569 = vpop.permute.xlu0 %4568
    %v4571 = vrot.slane %v4473, 4
    %v4573 = vrot.slane %v4473, 5
    %4574 = vrot.lane.b32.xlu0 %v4573, 32
    %v4575 = vpop.permute.xlu0 %4574
    %v4577 = vrot.slane %v4473, 6
    %4578 = vrot.lane.b32.xlu0 %v4577, 64
    %v4579 = vpop.permute.xlu0 %4578
    %v4581 = vrot.slane %v4473, 7
    %4582 = vrot.lane.b32.xlu0 %v4581, 96
    %v4583 = vpop.permute.xlu0 %4582
    %v4586 = vrot.slane %v4474, 1
    %4587 = vrot.lane.b32.xlu0 %v4586, 32
    %v4588 = vpop.permute.xlu0 %4587
    %v4590 = vrot.slane %v4474, 2
    %4591 = vrot.lane.b32.xlu0 %v4590, 64
    %v4592 = vpop.permute.xlu0 %4591
    %v4594 = vrot.slane %v4474, 3
    %4595 = vrot.lane.b32.xlu0 %v4594, 96
    %v4596 = vpop.permute.xlu0 %4595
    %v4598 = vrot.slane %v4474, 4
    %v4600 = vrot.slane %v4474, 5
    %4601 = vrot.lane.b32.xlu0 %v4600, 32
    %v4602 = vpop.permute.xlu0 %4601
    %v4604 = vrot.slane %v4474, 6
    %4605 = vrot.lane.b32.xlu0 %v4604, 64
    %v4606 = vpop.permute.xlu0 %4605
    %v4608 = vrot.slane %v4474, 7
    %4609 = vrot.lane.b32.xlu0 %v4608, 96
    %v4610 = vpop.permute.xlu0 %4609
    %v4612 = vsel %vm260, %v4473, %v4561
    %v4613 = vsel %vm1095, %v4612, %v4565
    %v4614 = vsel %vm1063, %v4613, %v4569
    %v4615 = vsel %vm260, %v4571, %v4575
    %v4616 = vsel %vm1095, %v4615, %v4579
    %v4617 = vsel %vm1063, %v4616, %v4583
    %v4618 = vsel %vm260, %v4474, %v4588
    %v4619 = vsel %vm1095, %v4618, %v4592
    %v4620 = vsel %vm1063, %v4619, %v4596
    %v4621 = vsel %vm260, %v4598, %v4602
    %v4622 = vsel %vm1095, %v4621, %v4606
    %v4623 = vsel %vm1063, %v4622, %v4610
    %v4625 = vrot.slane %v4475, 1
    %4626 = vrot.lane.b32.xlu0 %v4625, 32
    %v4627 = vpop.permute.xlu0 %4626
    %v4629 = vrot.slane %v4475, 2
    %4630 = vrot.lane.b32.xlu0 %v4629, 64
    %v4631 = vpop.permute.xlu0 %4630
    %v4633 = vrot.slane %v4475, 3
    %4634 = vrot.lane.b32.xlu0 %v4633, 96
    %v4635 = vpop.permute.xlu0 %4634
    %v4637 = vsel %vm260, %v4475, %v4627
    %v4638 = vsel %vm1095, %v4637, %v4631
    %v4639 = vsel %vm1063, %v4638, %v4635
    %v4645 = vrot.slane %v4614, 7
    %v4646 = vrot.slane %v4617, 7
    %v4647 = vrot.slane %v4620, 7
    %v4648 = vrot.slane %v4623, 7
    %v4649 = vrot.slane %v4639, 7
    %vm4655 = vcmask 1040384
    %v4656 = vsel %vm4655, %v4532, %v4645
    %v4657 = vsel %vm4655, %v4535, %v4646
    %v4658 = vsel %vm4655, %v4538, %v4647
    %v4659 = vsel %vm4655, %v4541, %v4648
    %v4660 = vsel %vm4655, %v4557, %v4649
    %v4666 = vcombine.low %v4656, %v4657
    %v4667 = vcombine.low %v4658, %v4659
    %v4669 = vunpack.c.l.s4 1983009808
    %v4670 = vunpack.c.0.s8 %v4669
    %v4671 = vlaneseq
    %v4672 = vshrl.u32 %v4671, 7
    %v4673 = vsub.s32 %v4670, %v4672
    %v4674 = vrot.slane %v4666, %v4673
    %v4676 = vunpack.c.l.s4 1983009808
    %v4677 = vunpack.c.0.s8 %v4676
    %v4678 = vlaneseq
    %v4679 = vshrl.u32 %v4678, 7
    %v4680 = vsub.s32 %v4677, %v4679
    %v4681 = vrot.slane %v4667, %v4680
    %v4682 = vcombine.low %v4674, %v4681
    %v4684 = vunpack.c.l.s4 1983009808
    %v4685 = vunpack.c.0.s8 %v4684
    %v4686 = vlaneseq
    %v4687 = vshrl.u32 %v4686, 7
    %v4688 = vsub.s32 %v4685, %v4687
    %v4689 = vrot.slane %v4660, %v4688
    %4692 = vst [vmem:[#allocation4] sm:$0xff] %v4682
    %4693 = vst [vmem:[#allocation4 + $0x8] sm:$0x3] %v4689
    %v4694 = vld [vmem:[%s14] sm:$0xf]
    %v4695 = vld [vmem:[%s14 + $0x4] sm:$0xf]
    %v4696 = vld [vmem:[%s14 + $0x8] sm:$0xf]
    %v4697 = vld [vmem:[%s14 + $0xc] sm:$0xf]
    %v4698 = vld [vmem:[%s14 + $0x10] sm:$0xf]
    %v4699 = vld [vmem:[%s14 + $0x14] sm:$0xf]
    %v4700 = vld [vmem:[%s14 + $0x18] sm:$0xf]
    %v4701 = vld [vmem:[%s14 + $0x1c] sm:$0xf]
    %v4702 = vld [vmem:[%s14 + $0x20] sm:$0xf]
    %v4703 = vld [vmem:[%s14 + $0x24] sm:$0xf]
    %v4704 = vld [vmem:[%s14 + $0x28] sm:$0xf]
    %v4705 = vld [vmem:[%s14 + $0x2c] sm:$0xf]
    %v4706 = vld [vmem:[%s14 + $0x30] sm:$0xf]
    %v4707 = vld [vmem:[%s14 + $0x34] sm:$0xf]
    %v4708 = vld [vmem:[%s14 + $0x38] sm:$0xf]
    %v4709 = vld [vmem:[%s14 + $0x3c] sm:$0xf]
    %v4710 = vld [vmem:[%s14 + $0x40] sm:$0xf]
    %v4711 = vld [vmem:[%s14 + $0x44] sm:$0xf]
    %v4712 = vld [vmem:[%s14 + $0x48] sm:$0xf]
    %v4713 = vld [vmem:[%s14 + $0x4c] sm:$0xf]
    %v4714 = vld [vmem:[%s14 + $0x50] sm:$0xf]
    %v4715 = vld [vmem:[%s14 + $0x54] sm:$0xf]
    %v4716 = vld [vmem:[%s14 + $0x58] sm:$0xf]
    %v4717 = vld [vmem:[%s14 + $0x5c] sm:$0xf]
    %v4718 = vld [vmem:[%s14 + $0x60] sm:$0xf]
    %v4719 = vld [vmem:[%s14 + $0x64] sm:$0xf]
    %v4720 = vld [vmem:[%s14 + $0x68] sm:$0xf]
    %v4721 = vld [vmem:[%s14 + $0x6c] sm:$0xf]
    %v4722 = vld [vmem:[%s14 + $0x70] sm:$0xf]
    %v4723 = vld [vmem:[%s14 + $0x74] sm:$0xf]
    %v4724 = vld [vmem:[%s14 + $0x78] sm:$0xf]
    %v4725 = vld [vmem:[%s14 + $0x7c] sm:$0xf]
    %v4726 = vld [vmem:[%s14 + $0x80] sm:$0xf]
    %v4727 = vld [vmem:[%s14 + $0x84] sm:$0xf]
    %v4728 = vld [vmem:[%s14 + $0x88] sm:$0xf]
    %v4729 = vld [vmem:[%s14 + $0x8c] sm:$0xf]
    %v4730 = vld [vmem:[%s14 + $0x90] sm:$0xf]
    %v4731 = vld [vmem:[%s14 + $0x94] sm:$0xf]
    %v4732 = vld [vmem:[%s14 + $0x98] sm:$0xf]
    %v4733 = vld [vmem:[%s14 + $0x9c] sm:$0xf]
    %v4734 = vld [vmem:[%s14 + $0xa0] sm:$0xf]
    %v4735 = vld [vmem:[%s14 + $0xa4] sm:$0xf]
    %v4736 = vld [vmem:[%s14 + $0xa8] sm:$0xf]
    %v4737 = vld [vmem:[%s14 + $0xac] sm:$0xf]
    %v4738 = vld [vmem:[%s14 + $0xb0] sm:$0xf]
    %v4739 = vld [vmem:[%s14 + $0xb4] sm:$0xf]
    %v4740 = vld [vmem:[%s14 + $0xb8] sm:$0xf]
    %v4741 = vld [vmem:[%s14 + $0xbc] sm:$0xf]
    %v4742 = vld [vmem:[%s14 + $0xc0] sm:$0xf]
    %v4743 = vld [vmem:[%s14 + $0xc4] sm:$0xf]
    %v4744 = vld [vmem:[%s14 + $0xc8] sm:$0xf]
    %v4745 = vld [vmem:[%s14 + $0xcc] sm:$0xf]
    %v4746 = vld [vmem:[%s14 + $0xd0] sm:$0xf]
    %v4747 = vld [vmem:[%s14 + $0xd4] sm:$0xf]
    %v4748 = vld [vmem:[%s14 + $0xd8] sm:$0xf]
    %v4749 = vld [vmem:[%s14 + $0xdc] sm:$0xf]
    %v4750 = vld [vmem:[%s14 + $0xe0] sm:$0xf]
    %v4751 = vld [vmem:[%s14 + $0xe4] sm:$0xf]
    %v4752 = vld [vmem:[%s14 + $0xe8] sm:$0xf]
    %v4753 = vld [vmem:[%s14 + $0xec] sm:$0xf]
    %v4754 = vld [vmem:[%s14 + $0xf0] sm:$0xf]
    %v4755 = vld [vmem:[%s14 + $0xf4] sm:$0xf]
    %v4756 = vld [vmem:[%s14 + $0xf8] sm:$0xf]
    %v4757 = vld [vmem:[%s14 + $0xfc] sm:$0xf]
    %v4758 = vld [vmem:[%s14 + $0x100] sm:$0xf]
    %v4759 = vld [vmem:[%s14 + $0x104] sm:$0xf]
    %v4760 = vld [vmem:[%s14 + $0x108] sm:$0xf]
    %v4761 = vld [vmem:[%s14 + $0x10c] sm:$0xf]
    %v4762 = vld [vmem:[%s14 + $0x110] sm:$0xf]
    %v4763 = vld [vmem:[%s14 + $0x114] sm:$0xf]
    %v4764 = vld [vmem:[%s14 + $0x118] sm:$0xf]
    %v4765 = vld [vmem:[%s14 + $0x11c] sm:$0xf]
    %v4766 = vld [vmem:[%s14 + $0x120] sm:$0xf]
    %v4767 = vld [vmem:[%s14 + $0x124] sm:$0xf]
    %v4768 = vld [vmem:[%s14 + $0x128] sm:$0xf]
    %v4769 = vld [vmem:[%s14 + $0x12c] sm:$0xf]
    %v4770 = vld [vmem:[%s14 + $0x130] sm:$0xf]
    %v4771 = vld [vmem:[%s14 + $0x134] sm:$0xf]
    %v4772 = vld [vmem:[%s14 + $0x138] sm:$0xf]
    %v4773 = vld [vmem:[%s14 + $0x13c] sm:$0xf]
    %v4774 = vpack.c.bf16 %v4656, %v4656
    %v4775 = vpack.c.bf16 %v4657, %v4657
    %v4776 = vpack.c.bf16 %v4658, %v4658
    %v4777 = vpack.c.bf16 %v4659, %v4659
    %v4778 = vpack.c.bf16 %v4660, %v4660
    %v4779 = vld [vmem:[%s15] sm:$0x1]
    %v4781 = vlaneseq
    %v4782 = vshrl.u32 %v4781, 7
    %v4783 = vsub.s32 0, %v4782
    %v4784 = vrot.slane %v4779, %v4783
    %v4866 = vunpack.c.l.b16 %v4694
    %v4867 = vunpack.c.l.b16 %v4695
    %v4868 = vunpack.c.l.b16 %v4696
    %v4869 = vunpack.c.l.b16 %v4697
    %v4870 = vunpack.c.l.b16 %v4698
    %v4871 = vunpack.c.l.b16 %v4699
    %v4872 = vunpack.c.l.b16 %v4700
    %v4873 = vunpack.c.l.b16 %v4701
    %v4874 = vunpack.c.l.b16 %v4702
    %v4875 = vunpack.c.l.b16 %v4703
    %v4876 = vunpack.c.l.b16 %v4704
    %v4877 = vunpack.c.l.b16 %v4705
    %v4878 = vunpack.c.l.b16 %v4706
    %v4879 = vunpack.c.l.b16 %v4707
    %v4880 = vunpack.c.l.b16 %v4708
    %v4881 = vunpack.c.l.b16 %v4709
    %v4882 = vunpack.c.l.b16 %v4710
    %v4883 = vunpack.c.l.b16 %v4711
    %v4884 = vunpack.c.l.b16 %v4712
    %v4885 = vunpack.c.l.b16 %v4713
    %v4886 = vunpack.c.l.b16 %v4714
    %v4887 = vunpack.c.l.b16 %v4715
    %v4888 = vunpack.c.l.b16 %v4716
    %v4889 = vunpack.c.l.b16 %v4717
    %v4890 = vunpack.c.l.b16 %v4718
    %v4891 = vunpack.c.l.b16 %v4719
    %v4892 = vunpack.c.l.b16 %v4720
    %v4893 = vunpack.c.l.b16 %v4721
    %v4894 = vunpack.c.l.b16 %v4722
    %v4895 = vunpack.c.l.b16 %v4723
    %v4896 = vunpack.c.l.b16 %v4724
    %v4897 = vunpack.c.l.b16 %v4725
    %v4898 = vunpack.c.l.b16 %v4726
    %v4899 = vunpack.c.l.b16 %v4727
    %v4900 = vunpack.c.l.b16 %v4728
    %v4901 = vunpack.c.l.b16 %v4729
    %v4902 = vunpack.c.l.b16 %v4730
    %v4903 = vunpack.c.l.b16 %v4731
    %v4904 = vunpack.c.l.b16 %v4732
    %v4905 = vunpack.c.l.b16 %v4733
    %v4906 = vunpack.c.l.b16 %v4734
    %v4907 = vunpack.c.l.b16 %v4735
    %v4908 = vunpack.c.l.b16 %v4736
    %v4909 = vunpack.c.l.b16 %v4737
    %v4910 = vunpack.c.l.b16 %v4738
    %v4911 = vunpack.c.l.b16 %v4739
    %v4912 = vunpack.c.l.b16 %v4740
    %v4913 = vunpack.c.l.b16 %v4741
    %v4914 = vunpack.c.l.b16 %v4742
    %v4915 = vunpack.c.l.b16 %v4743
    %v4916 = vunpack.c.l.b16 %v4744
    %v4917 = vunpack.c.l.b16 %v4745
    %v4918 = vunpack.c.l.b16 %v4746
    %v4919 = vunpack.c.l.b16 %v4747
    %v4920 = vunpack.c.l.b16 %v4748
    %v4921 = vunpack.c.l.b16 %v4749
    %v4922 = vunpack.c.l.b16 %v4750
    %v4923 = vunpack.c.l.b16 %v4751
    %v4924 = vunpack.c.l.b16 %v4752
    %v4925 = vunpack.c.l.b16 %v4753
    %v4926 = vunpack.c.l.b16 %v4754
    %v4927 = vunpack.c.l.b16 %v4755
    %v4928 = vunpack.c.l.b16 %v4756
    %v4929 = vunpack.c.l.b16 %v4757
    %v4930 = vunpack.c.l.b16 %v4758
    %v4931 = vunpack.c.l.b16 %v4759
    %v4932 = vunpack.c.l.b16 %v4760
    %v4933 = vunpack.c.l.b16 %v4761
    %v4934 = vunpack.c.l.b16 %v4762
    %v4935 = vunpack.c.l.b16 %v4763
    %v4936 = vunpack.c.l.b16 %v4764
    %v4937 = vunpack.c.l.b16 %v4765
    %v4938 = vunpack.c.l.b16 %v4766
    %v4939 = vunpack.c.l.b16 %v4767
    %v4940 = vunpack.c.l.b16 %v4768
    %v4941 = vunpack.c.l.b16 %v4769
    %v4942 = vunpack.c.l.b16 %v4770
    %v4943 = vunpack.c.l.b16 %v4771
    %v4944 = vunpack.c.l.b16 %v4772
    %v4945 = vunpack.c.l.b16 %v4773
    %v4946 = vpack.c.b16 %v4867, %v4866
    %v4947 = vpack.c.b16 %v4869, %v4868
    %v4948 = vpack.c.b16 %v4871, %v4870
    %v4949 = vpack.c.b16 %v4873, %v4872
    %v4950 = vpack.c.b16 %v4875, %v4874
    %v4951 = vpack.c.b16 %v4877, %v4876
    %v4952 = vpack.c.b16 %v4879, %v4878
    %v4953 = vpack.c.b16 %v4881, %v4880
    %v4954 = vpack.c.b16 %v4883, %v4882
    %v4955 = vpack.c.b16 %v4885, %v4884
    %v4956 = vpack.c.b16 %v4887, %v4886
    %v4957 = vpack.c.b16 %v4889, %v4888
    %v4958 = vpack.c.b16 %v4891, %v4890
    %v4959 = vpack.c.b16 %v4893, %v4892
    %v4960 = vpack.c.b16 %v4895, %v4894
    %v4961 = vpack.c.b16 %v4897, %v4896
    %v4962 = vpack.c.b16 %v4899, %v4898
    %v4963 = vpack.c.b16 %v4901, %v4900
    %v4964 = vpack.c.b16 %v4903, %v4902
    %v4965 = vpack.c.b16 %v4905, %v4904
    %v4966 = vpack.c.b16 %v4907, %v4906
    %v4967 = vpack.c.b16 %v4909, %v4908
    %v4968 = vpack.c.b16 %v4911, %v4910
    %v4969 = vpack.c.b16 %v4913, %v4912
    %v4970 = vpack.c.b16 %v4915, %v4914
    %v4971 = vpack.c.b16 %v4917, %v4916
    %v4972 = vpack.c.b16 %v4919, %v4918
    %v4973 = vpack.c.b16 %v4921, %v4920
    %v4974 = vpack.c.b16 %v4923, %v4922
    %v4975 = vpack.c.b16 %v4925, %v4924
    %v4976 = vpack.c.b16 %v4927, %v4926
    %v4977 = vpack.c.b16 %v4929, %v4928
    %v4978 = vpack.c.b16 %v4931, %v4930
    %v4979 = vpack.c.b16 %v4933, %v4932
    %v4980 = vpack.c.b16 %v4935, %v4934
    %v4981 = vpack.c.b16 %v4937, %v4936
    %v4982 = vpack.c.b16 %v4939, %v4938
    %v4983 = vpack.c.b16 %v4941, %v4940
    %v4984 = vpack.c.b16 %v4943, %v4942
    %v4985 = vpack.c.b16 %v4945, %v4944
    %5026 = vmatprep.subr.bf16.mxu0 0
    %5027 = vmatpush1.bf16.msra.mxu0 %v4946
    %5028 = vmatprep.subr.bf16.mxu0 0
    %5029 = vmatpush1.bf16.msra.mxu0 %v4947
    %5030 = vmatprep.subr.bf16.mxu0 0
    %5031 = vmatpush1.bf16.msra.mxu0 %v4948
    %5032 = vmatprep.subr.bf16.mxu0 0
    %5033 = vmatpush1.bf16.msra.mxu0 %v4949
    %5034 = vmatprep.subr.bf16.mxu0 0
    %5035 = vmatpush1.bf16.msra.mxu0 %v4950
    %5036 = vmatprep.subr.bf16.mxu0 0
    %5037 = vmatpush1.bf16.msra.mxu0 %v4951
    %5038 = vmatprep.subr.bf16.mxu0 0
    %5039 = vmatpush1.bf16.msra.mxu0 %v4952
    %5040 = vmatprep.subr.bf16.mxu0 0
    %5041 = vmatpush1.bf16.msra.mxu0 %v4953
    %5042 = vmatprep.subr.bf16.mxu0 0
    %5043 = vmatpush1.bf16.msra.mxu0 %v4954
    %5044 = vmatprep.subr.bf16.mxu0 0
    %5045 = vmatpush1.bf16.msra.mxu0 %v4955
    %5046 = vmatprep.subr.bf16.mxu0 0
    %5047 = vmatpush1.bf16.msra.mxu0 %v4956
    %5048 = vmatprep.subr.bf16.mxu0 0
    %5049 = vmatpush1.bf16.msra.mxu0 %v4957
    %5050 = vmatprep.subr.bf16.mxu0 0
    %5051 = vmatpush1.bf16.msra.mxu0 %v4958
    %5052 = vmatprep.subr.bf16.mxu0 0
    %5053 = vmatpush1.bf16.msra.mxu0 %v4959
    %5054 = vmatprep.subr.bf16.mxu0 0
    %5055 = vmatpush1.bf16.msra.mxu0 %v4960
    %5056 = vmatprep.subr.bf16.mxu0 0
    %5057 = vmatpush1.bf16.msra.mxu0 %v4961
    %5058 = vmatprep.mubr.bf16.mxu0 %v4775
    %5059 = vmatmul.mubr.bf16.gmra.mrb[0].mxu0 %v4774
    %v5060 = vpop.f32.mrb[0].mxu0
    %v5061 = vadd.f32 %v4784, %v5060
    %v5062 = vpop.f32.mrb[0].mxu0
    %v5063 = vpop.f32.mrb[0].mxu0
    %v5064 = vpop.f32.mrb[0].mxu0
    %5065 = vdwg.mxu0
    %5066 = vmatprep.subr.bf16.mxu0 0
    %5067 = vmatpush1.bf16.msra.mxu0 %v4962
    %5068 = vmatprep.subr.bf16.mxu0 0
    %5069 = vmatpush1.bf16.msra.mxu0 %v4963
    %5070 = vmatprep.subr.bf16.mxu0 0
    %5071 = vmatpush1.bf16.msra.mxu0 %v4964
    %5072 = vmatprep.subr.bf16.mxu0 0
    %5073 = vmatpush1.bf16.msra.mxu0 %v4965
    %5074 = vmatprep.subr.bf16.mxu0 0
    %5075 = vmatpush1.bf16.msra.mxu0 %v4966
    %5076 = vmatprep.subr.bf16.mxu0 0
    %5077 = vmatpush1.bf16.msra.mxu0 %v4967
    %5078 = vmatprep.subr.bf16.mxu0 0
    %5079 = vmatpush1.bf16.msra.mxu0 %v4968
    %5080 = vmatprep.subr.bf16.mxu0 0
    %5081 = vmatpush1.bf16.msra.mxu0 %v4969
    %5082 = vmatprep.subr.bf16.mxu0 0
    %5083 = vmatpush1.bf16.msra.mxu0 %v4970
    %5084 = vmatprep.subr.bf16.mxu0 0
    %5085 = vmatpush1.bf16.msra.mxu0 %v4971
    %5086 = vmatprep.subr.bf16.mxu0 0
    %5087 = vmatpush1.bf16.msra.mxu0 %v4972
    %5088 = vmatprep.subr.bf16.mxu0 0
    %5089 = vmatpush1.bf16.msra.mxu0 %v4973
    %5090 = vmatprep.subr.bf16.mxu0 0
    %5091 = vmatpush1.bf16.msra.mxu0 %v4974
    %5092 = vmatprep.subr.bf16.mxu0 0
    %5093 = vmatpush1.bf16.msra.mxu0 %v4975
    %5094 = vmatprep.subr.bf16.mxu0 0
    %5095 = vmatpush1.bf16.msra.mxu0 %v4976
    %5096 = vmatprep.subr.bf16.mxu0 0
    %5097 = vmatpush1.bf16.msra.mxu0 %v4977
    %5098 = vmatprep.mubr.bf16.mxu0 %v4777
    %5099 = vmatmul.mubr.bf16.gmra.mrb[0].mxu0 %v4776
    %v5100 = vpop.f32.mrb[0].mxu0
    %v5101 = vadd.f32 %v5061, %v5100
    %v5102 = vpop.f32.mrb[0].mxu0
    %v5103 = vpop.f32.mrb[0].mxu0
    %v5104 = vpop.f32.mrb[0].mxu0
    %5105 = vdwg.mxu0
    %5106 = vmatprep.subr.bf16.mxu0 0
    %5107 = vmatpush1.bf16.msra.mxu0 %v4978
    %5108 = vmatprep.subr.bf16.mxu0 0
    %5109 = vmatpush1.bf16.msra.mxu0 %v4979
    %5110 = vmatprep.subr.bf16.mxu0 0
    %5111 = vmatpush1.bf16.msra.mxu0 %v4980
    %5112 = vmatprep.subr.bf16.mxu0 0
    %5113 = vmatpush1.bf16.msra.mxu0 %v4981
    %5114 = vmatprep.subr.bf16.mxu0 0
    %5115 = vmatpush1.bf16.msra.mxu0 %v4982
    %5116 = vmatprep.subr.bf16.mxu0 0
    %5117 = vmatpush1.bf16.msra.mxu0 %v4983
    %5118 = vmatprep.subr.bf16.mxu0 0
    %5119 = vmatpush1.bf16.msra.mxu0 %v4984
    %5120 = vmatprep.subr.bf16.mxu0 0
    %5121 = vmatpush1.bf16.msra.mxu0 %v4985
    %5122 = vmatprep.subr.bf16.mxu0 0
    %5123 = vmatpush1.bf16.msra.mxu0 0
    %5124 = vmatprep.subr.bf16.mxu0 0
    %5125 = vmatpush1.bf16.msra.mxu0 0
    %5126 = vmatprep.subr.bf16.mxu0 0
    %5127 = vmatpush1.bf16.msra.mxu0 0
    %5128 = vmatprep.subr.bf16.mxu0 0
    %5129 = vmatpush1.bf16.msra.mxu0 0
    %5130 = vmatprep.subr.bf16.mxu0 0
    %5131 = vmatpush1.bf16.msra.mxu0 0
    %5132 = vmatprep.subr.bf16.mxu0 0
    %5133 = vmatpush1.bf16.msra.mxu0 0
    %5134 = vmatprep.subr.bf16.mxu0 0
    %5135 = vmatpush1.bf16.msra.mxu0 0
    %5136 = vmatprep.subr.bf16.mxu0 0
    %5137 = vmatpush1.bf16.msra.mxu0 0
    %5138 = vmatprep.mubr.bf16.mxu0 0
    %5139 = vmatmul.mubr.bf16.gmra.mrb[0].mxu0 %v4778
    %v5140 = vpop.f32.mrb[0].mxu0
    %v5141 = vadd.f32 %v5101, %v5140
    %v5142 = vpop.f32.mrb[0].mxu0
    %v5143 = vpop.f32.mrb[0].mxu0
    %v5144 = vpop.f32.mrb[0].mxu0
    %5145 = vdwg.mxu0
    %vm5146 = vcmask 254976
    %v5147 = vsel %vm5146, %v5141, 0.0
    %5148 = vadd.xlane.f32.xlu0 %v5147
    %v5149 = vpop.xlane.xlu0 %5148
    %v5150 = vrcp.pop 32.0
    %v5151 = vmul.f32 %v5149, %v5150
    %v5152 = vsub.f32 %v5141, %v5151
    %v5153 = vmul.f32 %v5152, %v5152
    %v5154 = vsel %vm5146, %v5153, 0.0
    %5155 = vadd.xlane.f32.xlu0 %v5154
    %v5156 = vpop.xlane.xlu0 %5155
    %v5157 = vmul.f32 %v5156, %v5150
    %v5158 = vadd.f32 %v5157, 1e-05
    %v5159 = vrsqrt.pop %v5158
    %v5160 = vmul.f32 %v5152, %v5159
    %v5161 = vld [vmem:[%s16] sm:$0x1]
    %v5163 = vlaneseq
    %v5164 = vshrl.u32 %v5163, 7
    %v5165 = vsub.s32 0, %v5164
    %v5166 = vrot.slane %v5161, %v5165
    %v5168 = vmul.f32 %v5160, %v5166
    %v5169 = vld [vmem:[%s17] sm:$0x1]
    %v5171 = vlaneseq
    %v5172 = vshrl.u32 %v5171, 7
    %v5173 = vsub.s32 0, %v5172
    %v5174 = vrot.slane %v5169, %v5173
    %v5176 = vadd.f32 %v5168, %v5174
    %v5177 = vld [vmem:[%s18] sm:$0xf]
    %v5178 = vld [vmem:[%s18 + $0x4] sm:$0xf]
    %v5179 = vld [vmem:[%s18 + $0x8] sm:$0xf]
    %v5180 = vld [vmem:[%s18 + $0xc] sm:$0xf]
    %v5181 = vpack.c.bf16 %v5176, %v5176
    %v5182 = vld [vmem:[%s19] sm:$0x1]
    %v5184 = vlaneseq
    %v5185 = vshrl.u32 %v5184, 7
    %v5186 = vsub.s32 0, %v5185
    %v5187 = vrot.slane %v5182, %v5186
    %v5193 = vunpack.c.l.b16 %v5177
    %v5194 = vunpack.c.l.b16 %v5178
    %v5195 = vunpack.c.l.b16 %v5179
    %v5196 = vunpack.c.l.b16 %v5180
    %v5197 = vpack.c.b16 %v5194, %v5193
    %v5198 = vpack.c.b16 %v5196, %v5195
    %v5202 = vsel %vm260, %v5181, 0
    %5204 = vmatprep.subr.bf16.mxu0 0
    %5205 = vmatpush1.bf16.msra.mxu0 %v5197
    %5206 = vmatprep.subr.bf16.mxu0 0
    %5207 = vmatpush1.bf16.msra.mxu0 %v5198
    %5208 = vmatprep.subr.bf16.mxu0 0
    %5209 = vmatpush1.bf16.msra.mxu0 0
    %5210 = vmatprep.subr.bf16.mxu0 0
    %5211 = vmatpush1.bf16.msra.mxu0 0
    %5212 = vmatprep.subr.bf16.mxu0 0
    %5213 = vmatpush1.bf16.msra.mxu0 0
    %5214 = vmatprep.subr.bf16.mxu0 0
    %5215 = vmatpush1.bf16.msra.mxu0 0
    %5216 = vmatprep.subr.bf16.mxu0 0
    %5217 = vmatpush1.bf16.msra.mxu0 0
    %5218 = vmatprep.subr.bf16.mxu0 0
    %5219 = vmatpush1.bf16.msra.mxu0 0
    %5220 = vmatprep.subr.bf16.mxu0 0
    %5221 = vmatpush1.bf16.msra.mxu0 0
    %5222 = vmatprep.subr.bf16.mxu0 0
    %5223 = vmatpush1.bf16.msra.mxu0 0
    %5224 = vmatprep.subr.bf16.mxu0 0
    %5225 = vmatpush1.bf16.msra.mxu0 0
    %5226 = vmatprep.subr.bf16.mxu0 0
    %5227 = vmatpush1.bf16.msra.mxu0 0
    %5228 = vmatprep.subr.bf16.mxu0 0
    %5229 = vmatpush1.bf16.msra.mxu0 0
    %5230 = vmatprep.subr.bf16.mxu0 0
    %5231 = vmatpush1.bf16.msra.mxu0 0
    %5232 = vmatprep.subr.bf16.mxu0 0
    %5233 = vmatpush1.bf16.msra.mxu0 0
    %5234 = vmatprep.subr.bf16.mxu0 0
    %5235 = vmatpush1.bf16.msra.mxu0 0
    %5236 = vmatprep.mubr.bf16.mxu0 0
    %5237 = vmatmul.mubr.bf16.gmra.mrb[0].mxu0 %v5202
    %v5238 = vpop.f32.mrb[0].mxu0
    %v5239 = vadd.f32 %v5187, %v5238
    %v5240 = vpop.f32.mrb[0].mxu0
    %v5241 = vpop.f32.mrb[0].mxu0
    %v5242 = vpop.f32.mrb[0].mxu0
    %5243 = vdwg.mxu0
    %vm5244 = vcmask 58368
    %5245 = vst.msk [vmem:[#allocation2] sm:$0x3] %vm5244, %v5239
    // Predicated region
    $region82: #{attention_model_forward.1} parent=1 // pred_check
      _
    $region83: #{attention_model_forward.1} parent=1 // pred_check_branch
      %5247 = sbr.rel (0) target = $region85
    $region84: #{attention_model_forward.1} parent=1 // pred_region
      %s5249 = ssub.s32 32, 32
      %5250 = vsyncadd [#allocation3], %s5249
      %s5252 = sshll.u32 [#allocation2], 4
      %s5253 = int_to_ptr.vmem [resolvable:$true] %s5252
      %5255 = dma.vmem_to_hbm [thread:$0]  %s5253, 32, %s20, [#allocation3]
    $region85: #{attention_model_forward.1} parent=1 // pred_fallthru
      _
    // Predicated region
    $region86: #{attention_model_forward.1} parent=1 // pred_check
      _
    $region87: #{attention_model_forward.1} parent=1 // pred_check_branch
      %5257 = sbr.rel (0) target = $region89
    $region88: #{attention_model_forward.1} parent=1 // pred_region
      %s5259 = ssub.s32 160, 160
      %5260 = vsyncadd [#allocation5], %s5259
      %s5262 = sshll.u32 [#allocation4], 4
      %s5263 = int_to_ptr.vmem [resolvable:$true] %s5262
      %5265 = dma.vmem_to_hbm [thread:$0]  %s5263, 160, %s21, [#allocation5]
    $region89: #{attention_model_forward.1} parent=1 // pred_fallthru
      _
    // Predicated region
    $region90: #{attention_model_forward.1} parent=1 // pred_check
      _
    $region91: #{attention_model_forward.1} parent=1 // pred_check_branch
      %5267 = sbr.rel (0) target = $region93
    $region92: #{attention_model_forward.1} parent=1 // pred_region
      _
    $region93: #{attention_model_forward.1} parent=1 // pred_fallthru
      _
    // Predicated region
    $region94: #{attention_model_forward.1} parent=1 // pred_check
      _
    $region95: #{attention_model_forward.1} parent=1 // pred_check_branch
      %5269 = sbr.rel (0) target = $region97
    $region96: #{attention_model_forward.1} parent=1 // pred_region
      %5270 = dma.done [#allocation3], 32
    $region97: #{attention_model_forward.1} parent=1 // pred_fallthru
      _
    // Predicated region
    $region98: #{attention_model_forward.1} parent=1 // pred_check
      _
    $region99: #{attention_model_forward.1} parent=1 // pred_check_branch
      %5272 = sbr.rel (0) target = $region101
    $region100: #{attention_model_forward.1} parent=1 // pred_region
      %5273 = dma.done [#allocation5], 160
    $region101: #{attention_model_forward.1} parent=1 // pred_fallthru
      _
    // Predicated region
    $region102: #{attention_model_forward.1} parent=1 // pred_check
      _
    $region103: #{attention_model_forward.1} parent=1 // pred_check_branch
      %5275 = sbr.rel (0) target = $region105
    $region104: #{attention_model_forward.1} parent=1 // pred_region
      _
    $region105: #{attention_model_forward.1} parent=1 // pred_fallthru
      _
    %5276 = vsyncpa [#allocation3], 1
    %5277 = vsyncpa [#allocation5], 1

</llo_original>
